<compile_context>
chip_gen: v7x
topology: tpu7x:2x2x1
jax: 0.10.0
libtpu: 0.0.40
codegen_flags: <defaults>
</compile_context>

<pallas_src>
import functools
import math

import jax
import jax.numpy as jnp
from jax.experimental import pallas as pl
from jax.experimental.pallas import tpu as pltpu


# ----------------------------------------------------------------------------
# In-kernel helpers
# ----------------------------------------------------------------------------
def _layer_norm(x, g, b, eps=1e-5):
    # x: (N, D); g, b: (1, D).  Biased variance — matches torch.nn.LayerNorm.
    mu = jnp.mean(x, axis=-1, keepdims=True)
    xc = x - mu
    var = jnp.mean(xc * xc, axis=-1, keepdims=True)
    return xc * jax.lax.rsqrt(var + eps) * g + b


# ----------------------------------------------------------------------------
# Fused encoder-stack kernel
# ----------------------------------------------------------------------------
def encoder_stack_kernel(x_ref,
                         ln1_g_ref, ln1_b_ref,
                         wqkv_ref, bqkv_ref,
                         wo_ref, bo_ref,
                         ln2_g_ref, ln2_b_ref,
                         w1_ref, b1_ref,
                         w2_ref, b2_ref,
                         fg_ref, fb_ref,
                         out_ref,
                         *, nhead, batch_block, seq_len):
    layer = pl.program_id(1)
    n_layers = pl.num_programs(1)

    # First layer for this batch block: pull the input tile into the resident
    # output block (acts as the VMEM activation accumulator across layers).
    @pl.when(layer == 0)
    def _():
        out_ref[...] = x_ref[...]

    x = out_ref[...]                               # (batch_block*S, D), f32
    BS, D = x.shape
    H = nhead
    hd = D // H
    scale = 1.0 / math.sqrt(hd)

    # ---------------- self-attention sublayer (pre-norm) -------------------
    xn = _layer_norm(x, ln1_g_ref[0], ln1_b_ref[0])
    qkv = (jnp.dot(xn, wqkv_ref[0], preferred_element_type=jnp.float32)
           + bqkv_ref[0])                          # (BS, 3D) fused QKV matmul
    q = qkv[:, :D] * scale
    k = qkv[:, D:2 * D]
    v = qkv[:, 2 * D:]

    head_outs = []
    for h in range(H):                             # static loop over heads
        sl = slice(h * hd, (h + 1) * hd)
        qh = q[:, sl].reshape(batch_block, seq_len, hd)
        kh = k[:, sl].reshape(batch_block, seq_len, hd)
        vh = v[:, sl].reshape(batch_block, seq_len, hd)
        s = jnp.einsum('bqd,bkd->bqk', qh, kh,
                       preferred_element_type=jnp.float32)    # (bb, S, S)
        m = jnp.max(s, axis=-1, keepdims=True)
        e = jnp.exp(s - m)
        denom = jnp.sum(e, axis=-1, keepdims=True)
        p = e * pl.reciprocal(denom, approx=True)
        ctx = jnp.einsum('bqk,bkd->bqd', p, vh,
                         preferred_element_type=jnp.float32)  # (bb, S, hd)
        head_outs.append(ctx.reshape(BS, hd))
    attn = jnp.concatenate(head_outs, axis=-1)                 # (BS, D)
    attn = (jnp.dot(attn, wo_ref[0], preferred_element_type=jnp.float32)
            + bo_ref[0])
    x = x + attn                                   # dropout1 == identity

    # ---------------- feed-forward sublayer (pre-norm) ---------------------
    xn2 = _layer_norm(x, ln2_g_ref[0], ln2_b_ref[0])
    h1 = jnp.dot(xn2, w1_ref[0], preferred_element_type=jnp.float32) + b1_ref[0]
    h1 = jnp.maximum(h1, 0.0)                      # ReLU; dropout == identity
    x = x + (jnp.dot(h1, w2_ref[0], preferred_element_type=jnp.float32)
             + b2_ref[0])                          # dropout2 == identity

    # Keep the activation resident for the next layer; on the last layer apply
    # the stack's final LayerNorm and emit the result.
    @pl.when(layer < n_layers - 1)
    def _():
        out_ref[...] = x

    @pl.when(layer == n_layers - 1)
    def _():
        out_ref[...] = _layer_norm(x, fg_ref[...], fb_ref[...])


# ----------------------------------------------------------------------------
# Wrapper: stack per-layer weights, build BlockSpecs, single pallas_call
# ----------------------------------------------------------------------------
def _stack_layer_params(layer_params):
    stk = lambda name: jnp.stack([p[name] for p in layer_params])
    wqkv = jnp.stack([jnp.concatenate([p["wq"], p["wk"], p["wv"]], axis=-1)
                      for p in layer_params])
    bqkv = jnp.stack([jnp.concatenate([p["bq"], p["bk"], p["bv"]], axis=-1)
                      for p in layer_params])
    return [stk("ln1_g"), stk("ln1_b"),
            wqkv, bqkv,
            stk("wo"), stk("bo"),
            stk("ln2_g"), stk("ln2_b"),
            stk("w1"), stk("b1"),
            stk("w2"), stk("b2")]


def transformer_encoder(x_sbd, layer_params, final_g, final_b, nhead,
                        *, batch_block=None):
    """x_sbd: (S, B, D) — same convention as the PyTorch module (eval mode).

    batch_block: batch elements processed per grid step.  Default = B (whole
    batch folded into the matmul M dim).  Set batch_block = B // 2 on v7x to
    give both TensorCores work via the 'parallel' batch axis.
    """
    S, B, D = x_sbd.shape
    L = len(layer_params)
    if batch_block is None:
        batch_block = B
    assert B % batch_block == 0
    n_bb = B // batch_block

    x_flat = jnp.transpose(x_sbd, (1, 0, 2)).reshape(B * S, D)
    weights = _stack_layer_params(layer_params)

    def weight_spec(arr):
        _, a, b = arr.shape
        return pl.BlockSpec((1, a, b), lambda bb, l: (l, 0, 0))

    act_spec = pl.BlockSpec((batch_block * S, D), lambda bb, l: (bb, 0))
    final_spec = pl.BlockSpec(final_g.shape, lambda bb, l: (0, 0))

    kernel = functools.partial(encoder_stack_kernel, nhead=nhead,
                               batch_block=batch_block, seq_len=S)

    out = pl.pallas_call(
        kernel,
        out_shape=jax.ShapeDtypeStruct((B * S, D), jnp.float32),
        grid=(n_bb, L),
        in_specs=([act_spec]
                  + [weight_spec(w) for w in weights]
                  + [final_spec, final_spec]),
        out_specs=act_spec,
        compiler_params=pltpu.CompilerParams(
            dimension_semantics=("parallel", "arbitrary")),
    )(x_flat, *weights, final_g, final_b)

    return jnp.transpose(out.reshape(B, S, D), (1, 0, 2))


# ----------------------------------------------------------------------------
# Deterministic synthetic parameter init (weights stored in x @ W orientation)
# ----------------------------------------------------------------------------
def init_layer_params(key, d_model, dim_ff):
    ks = jax.random.split(key, 10)
    s = 0.05
    f32 = jnp.float32
    return {
        "ln1_g": jnp.ones((1, d_model), f32),
        "ln1_b": jnp.zeros((1, d_model), f32),
        "wq": (jax.random.normal(ks[0], (d_model, d_model)) * s).astype(f32),
        "wk": (jax.random.normal(ks[1], (d_model, d_model)) * s).astype(f32),
        "wv": (jax.random.normal(ks[2], (d_model, d_model)) * s).astype(f32),
        "bq": (jax.random.normal(ks[3], (1, d_model)) * s).astype(f32),
        "bk": (jax.random.normal(ks[4], (1, d_model)) * s).astype(f32),
        "bv": (jax.random.normal(ks[5], (1, d_model)) * s).astype(f32),
        "wo": (jax.random.normal(ks[6], (d_model, d_model)) * s).astype(f32),
        "bo": jnp.zeros((1, d_model), f32),
        "ln2_g": jnp.ones((1, d_model), f32),
        "ln2_b": jnp.zeros((1, d_model), f32),
        "w1": (jax.random.normal(ks[7], (d_model, dim_ff)) * s).astype(f32),
        "b1": (jax.random.normal(ks[8], (1, dim_ff)) * s).astype(f32),
        "w2": (jax.random.normal(ks[9], (dim_ff, d_model)) * s).astype(f32),
        "b2": jnp.zeros((1, d_model), f32),
    }


# ----------------------------------------------------------------------------
# Pure-JAX reference (mirrors the PyTorch forward, eval mode) for verification
# ----------------------------------------------------------------------------
def reference_encoder(x_sbd, layer_params, final_g, final_b, nhead):
    def ln(x, g, b):
        mu = jnp.mean(x, axis=-1, keepdims=True)
        var = jnp.mean((x - mu) ** 2, axis=-1, keepdims=True)
        return (x - mu) / jnp.sqrt(var + 1e-5) * g + b

    x = jnp.transpose(x_sbd, (1, 0, 2))            # (B, S, D)
    B, S, D = x.shape
    hd = D // nhead
    for p in layer_params:
        xn = ln(x, p["ln1_g"], p["ln1_b"])
        q = xn @ p["wq"] + p["bq"]
        k = xn @ p["wk"] + p["bk"]
        v = xn @ p["wv"] + p["bv"]
        q = q.reshape(B, S, nhead, hd).transpose(0, 2, 1, 3) / math.sqrt(hd)
        k = k.reshape(B, S, nhead, hd).transpose(0, 2, 1, 3)
        v = v.reshape(B, S, nhead, hd).transpose(0, 2, 1, 3)
        scores = jnp.einsum("bhqd,bhkd->bhqk", q, k)
        probs = jax.nn.softmax(scores, axis=-1)
        attn = jnp.einsum("bhqk,bhkd->bhqd", probs, v)
        attn = attn.transpose(0, 2, 1, 3).reshape(B, S, D)
        x = x + (attn @ p["wo"] + p["bo"])
        xn2 = ln(x, p["ln2_g"], p["ln2_b"])
        h = jnp.maximum(xn2 @ p["w1"] + p["b1"], 0.0)
        x = x + (h @ p["w2"] + p["b2"])
    x = ln(x, final_g, final_b)
    return jnp.transpose(x, (1, 0, 2))


# ----------------------------------------------------------------------------
# Main
# ----------------------------------------------------------------------------
if __name__ == "__main__":
    d_model = 32
    nhead = 4
    num_layers = 2
    dim_ff = 64
    seq = 8
    batch = 2

    key = jax.random.PRNGKey(0)
    kx, *layer_keys = jax.random.split(key, num_layers + 1)

    # Input in PyTorch MHA convention: (seq, batch, d_model)
    x = jax.random.normal(kx, (seq, batch, d_model), dtype=jnp.float32)

    layer_params = [init_layer_params(k, d_model, dim_ff) for k in layer_keys]
    final_g = jnp.ones((1, d_model), jnp.float32)
    final_b = jnp.zeros((1, d_model), jnp.float32)

    out = transformer_encoder(x, layer_params, final_g, final_b, nhead)
    out = jax.block_until_ready(out)

    ref = reference_encoder(x, layer_params, final_g, final_b, nhead)
    ref = jax.block_until_ready(ref)

    assert out.shape == (seq, batch, d_model)
    assert bool(jnp.allclose(out, ref, rtol=5e-3, atol=5e-3)), "mismatch vs reference"

    print("KERNEL_OK")
</pallas_src>

<mosaic_0001>
module attributes {stable_mosaic.version = 11 : i64} {
  func.func @encoder_stack_kernel(%arg0: i32, %arg1: i32, %arg2: memref<16x32xf32, #tpu.memory_space<vmem>>, %arg3: memref<1x1x32xf32, #tpu.memory_space<vmem>>, %arg4: memref<1x1x32xf32, #tpu.memory_space<vmem>>, %arg5: memref<1x32x96xf32, #tpu.memory_space<vmem>>, %arg6: memref<1x1x96xf32, #tpu.memory_space<vmem>>, %arg7: memref<1x32x32xf32, #tpu.memory_space<vmem>>, %arg8: memref<1x1x32xf32, #tpu.memory_space<vmem>>, %arg9: memref<1x1x32xf32, #tpu.memory_space<vmem>>, %arg10: memref<1x1x32xf32, #tpu.memory_space<vmem>>, %arg11: memref<1x32x64xf32, #tpu.memory_space<vmem>>, %arg12: memref<1x1x64xf32, #tpu.memory_space<vmem>>, %arg13: memref<1x64x32xf32, #tpu.memory_space<vmem>>, %arg14: memref<1x1x32xf32, #tpu.memory_space<vmem>>, %arg15: memref<1x32xf32, #tpu.memory_space<vmem>>, %arg16: memref<1x32xf32, #tpu.memory_space<vmem>>, %arg17: memref<16x32xf32, #tpu.memory_space<vmem>>) attributes {dimension_semantics = [#tpu.dimension_semantics<parallel>, #tpu.dimension_semantics<arbitrary>], iteration_bounds = array<i64: 1, 2>, scalar_prefetch = 0 : i64, scratch_operands = 0 : i64, tpu.core_type = #tpu.core_type<tc>, window_params = [{transform_indices = @transform_0, window_bounds = array<i64: 16, 32>}, {transform_indices = @transform_1, window_bounds = array<i64: 1, 1, 32>}, {transform_indices = @transform_2, window_bounds = array<i64: 1, 1, 32>}, {transform_indices = @transform_3, window_bounds = array<i64: 1, 32, 96>}, {transform_indices = @transform_4, window_bounds = array<i64: 1, 1, 96>}, {transform_indices = @transform_5, window_bounds = array<i64: 1, 32, 32>}, {transform_indices = @transform_6, window_bounds = array<i64: 1, 1, 32>}, {transform_indices = @transform_7, window_bounds = array<i64: 1, 1, 32>}, {transform_indices = @transform_8, window_bounds = array<i64: 1, 1, 32>}, {transform_indices = @transform_9, window_bounds = array<i64: 1, 32, 64>}, {transform_indices = @transform_10, window_bounds = array<i64: 1, 1, 64>}, {transform_indices = @transform_11, window_bounds = array<i64: 1, 64, 32>}, {transform_indices = @transform_12, window_bounds = array<i64: 1, 1, 32>}, {pipeline_mode = #tpu.pipeline_mode<synchronous>, transform_indices = @transform_13, window_bounds = array<i64: 1, 32>}, {pipeline_mode = #tpu.pipeline_mode<synchronous>, transform_indices = @transform_14, window_bounds = array<i64: 1, 32>}, {transform_indices = @transform_15, window_bounds = array<i64: 16, 32>}]} {
    %c0_i32 = arith.constant 0 : i32
    %0 = arith.cmpi eq, %arg1, %c0_i32 : i32
    %1 = arith.extui %0 : i1 to i32
    %c0_i32_0 = arith.constant 0 : i32
    %2 = arith.cmpi ne, %1, %c0_i32_0 : i32
    scf.if %2 {
      %c0_72 = arith.constant 0 : index
      %c0_73 = arith.constant 0 : index
      %172 = vector.load %arg2[%c0_72, %c0_73] : memref<16x32xf32, #tpu.memory_space<vmem>>, vector<16x32xf32>
      %c0_74 = arith.constant 0 : index
      %c0_75 = arith.constant 0 : index
      %173 = vector.load %arg17[%c0_74, %c0_75] : memref<16x32xf32, #tpu.memory_space<vmem>>, vector<16x32xf32>
      tpu.vector_store %arg17[%c0_74, %c0_75], %172 {strides = array<i32>} : memref<16x32xf32, #tpu.memory_space<vmem>>, vector<16x32xf32>,
    } else {
    }
    %c0 = arith.constant 0 : index
    %c0_1 = arith.constant 0 : index
    %3 = vector.load %arg17[%c0, %c0_1] : memref<16x32xf32, #tpu.memory_space<vmem>>, vector<16x32xf32>
    %c0_2 = arith.constant 0 : index
    %c0_3 = arith.constant 0 : index
    %c0_4 = arith.constant 0 : index
    %4 = vector.load %arg3[%c0_2, %c0_3, %c0_4] : memref<1x1x32xf32, #tpu.memory_space<vmem>>, vector<1x1x32xf32>
    %5 = vector.shape_cast %4 : vector<1x1x32xf32> to vector<1x32xf32>
    %c0_5 = arith.constant 0 : index
    %c0_6 = arith.constant 0 : index
    %c0_7 = arith.constant 0 : index
    %6 = vector.load %arg4[%c0_5, %c0_6, %c0_7] : memref<1x1x32xf32, #tpu.memory_space<vmem>>, vector<1x1x32xf32>
    %7 = vector.shape_cast %6 : vector<1x1x32xf32> to vector<1x32xf32>
    %cst = arith.constant dense<0.000000e+00> : vector<16xf32>
    %8 = vector.multi_reduction <add>, %3, %cst [1] : vector<16x32xf32> to vector<16xf32>
    %9 = vector.shape_cast %8 : vector<16xf32> to vector<16x1xf32>
    %cst_8 = arith.constant 3.200000e+01 : f32
    %10 = vector.broadcast %cst_8 : f32 to vector<16x1xf32>
    %11 = arith.divf %9, %10 : vector<16x1xf32>
    %12 = vector.broadcast %11 : vector<16x1xf32> to vector<16x32xf32>
    %13 = arith.subf %3, %12 : vector<16x32xf32>
    %14 = arith.mulf %13, %13 : vector<16x32xf32>
    %cst_9 = arith.constant dense<0.000000e+00> : vector<16xf32>
    %15 = vector.multi_reduction <add>, %14, %cst_9 [1] : vector<16x32xf32> to vector<16xf32>
    %16 = vector.shape_cast %15 : vector<16xf32> to vector<16x1xf32>
    %cst_10 = arith.constant 3.200000e+01 : f32
    %17 = vector.broadcast %cst_10 : f32 to vector<16x1xf32>
    %18 = arith.divf %16, %17 : vector<16x1xf32>
    %cst_11 = arith.constant 9.99999974E-6 : f32
    %19 = vector.broadcast %cst_11 : f32 to vector<16x1xf32>
    %20 = arith.addf %18, %19 : vector<16x1xf32>
    %21 = math.rsqrt %20 : vector<16x1xf32>
    %22 = vector.broadcast %21 : vector<16x1xf32> to vector<16x32xf32>
    %23 = arith.mulf %13, %22 : vector<16x32xf32>
    %24 = vector.broadcast %5 : vector<1x32xf32> to vector<16x32xf32>
    %25 = arith.mulf %23, %24 : vector<16x32xf32>
    %26 = vector.broadcast %7 : vector<1x32xf32> to vector<16x32xf32>
    %27 = arith.addf %25, %26 : vector<16x32xf32>
    %c0_12 = arith.constant 0 : index
    %c0_13 = arith.constant 0 : index
    %c0_14 = arith.constant 0 : index
    %28 = vector.load %arg5[%c0_12, %c0_13, %c0_14] : memref<1x32x96xf32, #tpu.memory_space<vmem>>, vector<1x32x96xf32>
    %29 = vector.shape_cast %28 : vector<1x32x96xf32> to vector<32x96xf32>
    %cst_15 = arith.constant dense<0.000000e+00> : vector<16x96xf32>
    %30 = tpu.matmul %27, %29, %cst_15 {dimension_numbers = #tpu.dot_dimension_numbers<[1], [0], [0], [1], [0, 0, 1, 1], [], []>} : vector<16x32xf32>, vector<32x96xf32>, vector<16x96xf32> -> vector<16x96xf32>
    %c0_16 = arith.constant 0 : index
    %c0_17 = arith.constant 0 : index
    %c0_18 = arith.constant 0 : index
    %31 = vector.load %arg6[%c0_16, %c0_17, %c0_18] : memref<1x1x96xf32, #tpu.memory_space<vmem>>, vector<1x1x96xf32>
    %32 = vector.shape_cast %31 : vector<1x1x96xf32> to vector<1x96xf32>
    %33 = vector.broadcast %32 : vector<1x96xf32> to vector<16x96xf32>
    %34 = arith.addf %30, %33 : vector<16x96xf32>
    %35 = vector.extract_strided_slice %34 {offsets = [0, 0], sizes = [16, 32], strides = [1, 1]} : vector<16x96xf32> to vector<16x32xf32>
    %cst_19 = arith.constant 0.353553385 : f32
    %36 = vector.broadcast %cst_19 : f32 to vector<16x32xf32>
    %37 = arith.mulf %35, %36 : vector<16x32xf32>
    %38 = vector.extract_strided_slice %34 {offsets = [0, 32], sizes = [16, 32], strides = [1, 1]} : vector<16x96xf32> to vector<16x32xf32>
    %39 = vector.extract_strided_slice %34 {offsets = [0, 64], sizes = [16, 32], strides = [1, 1]} : vector<16x96xf32> to vector<16x32xf32>
    %40 = vector.extract_strided_slice %37 {offsets = [0, 0], sizes = [16, 8], strides = [1, 1]} : vector<16x32xf32> to vector<16x8xf32>
    %41 = vector.shape_cast %40 : vector<16x8xf32> to vector<2x8x8xf32>
    %42 = vector.extract_strided_slice %38 {offsets = [0, 0], sizes = [16, 8], strides = [1, 1]} : vector<16x32xf32> to vector<16x8xf32>
    %43 = vector.shape_cast %42 : vector<16x8xf32> to vector<2x8x8xf32>
    %44 = vector.extract_strided_slice %39 {offsets = [0, 0], sizes = [16, 8], strides = [1, 1]} : vector<16x32xf32> to vector<16x8xf32>
    %45 = vector.shape_cast %44 : vector<16x8xf32> to vector<2x8x8xf32>
    "tpu.trace_start"() <{level = 10 : i32, message = "bqd,bkd->bqk"}> : () -> ()
    %cst_20 = arith.constant dense<0.000000e+00> : vector<2x8x8xf32>
    %46 = tpu.matmul %41, %43, %cst_20 {dimension_numbers = #tpu.dot_dimension_numbers<[2], [2], [1], [1], [0, 0, 0, 1, 1, 1], [0], [0]>} : vector<2x8x8xf32>, vector<2x8x8xf32>, vector<2x8x8xf32> -> vector<2x8x8xf32>
    "tpu.trace_stop"() : () -> ()
    %cst_21 = arith.constant dense<0xFF800000> : vector<2x8xf32>
    %47 = vector.multi_reduction <maximumf>, %46, %cst_21 [2] : vector<2x8x8xf32> to vector<2x8xf32>
    %48 = vector.shape_cast %47 : vector<2x8xf32> to vector<2x8x1xf32>
    %49 = vector.broadcast %48 : vector<2x8x1xf32> to vector<2x8x8xf32>
    %50 = arith.subf %46, %49 : vector<2x8x8xf32>
    %51 = math.exp %50 : vector<2x8x8xf32>
    %cst_22 = arith.constant dense<0.000000e+00> : vector<2x8xf32>
    %52 = vector.multi_reduction <add>, %51, %cst_22 [2] : vector<2x8x8xf32> to vector<2x8xf32>
    %53 = vector.shape_cast %52 : vector<2x8xf32> to vector<2x8x1xf32>
    %54 = tpu.reciprocal %53 {approx = true} : vector<2x8x1xf32> -> vector<2x8x1xf32>
    %55 = vector.broadcast %54 : vector<2x8x1xf32> to vector<2x8x8xf32>
    %56 = arith.mulf %51, %55 : vector<2x8x8xf32>
    "tpu.trace_start"() <{level = 10 : i32, message = "bqk,bkd->bqd"}> : () -> ()
    %cst_23 = arith.constant dense<0.000000e+00> : vector<2x8x8xf32>
    %57 = tpu.matmul %56, %45, %cst_23 {dimension_numbers = #tpu.dot_dimension_numbers<[2], [1], [1], [2], [0, 0, 0, 1, 1, 2], [0], [0]>} : vector<2x8x8xf32>, vector<2x8x8xf32>, vector<2x8x8xf32> -> vector<2x8x8xf32>
    "tpu.trace_stop"() : () -> ()
    %58 = vector.shape_cast %57 : vector<2x8x8xf32> to vector<16x8xf32>
    %59 = vector.extract_strided_slice %37 {offsets = [0, 8], sizes = [16, 8], strides = [1, 1]} : vector<16x32xf32> to vector<16x8xf32>
    %60 = vector.shape_cast %59 : vector<16x8xf32> to vector<2x8x8xf32>
    %61 = vector.extract_strided_slice %38 {offsets = [0, 8], sizes = [16, 8], strides = [1, 1]} : vector<16x32xf32> to vector<16x8xf32>
    %62 = vector.shape_cast %61 : vector<16x8xf32> to vector<2x8x8xf32>
    %63 = vector.extract_strided_slice %39 {offsets = [0, 8], sizes = [16, 8], strides = [1, 1]} : vector<16x32xf32> to vector<16x8xf32>
    %64 = vector.shape_cast %63 : vector<16x8xf32> to vector<2x8x8xf32>
    "tpu.trace_start"() <{level = 10 : i32, message = "bqd,bkd->bqk"}> : () -> ()
    %cst_24 = arith.constant dense<0.000000e+00> : vector<2x8x8xf32>
    %65 = tpu.matmul %60, %62, %cst_24 {dimension_numbers = #tpu.dot_dimension_numbers<[2], [2], [1], [1], [0, 0, 0, 1, 1, 1], [0], [0]>} : vector<2x8x8xf32>, vector<2x8x8xf32>, vector<2x8x8xf32> -> vector<2x8x8xf32>
    "tpu.trace_stop"() : () -> ()
    %cst_25 = arith.constant dense<0xFF800000> : vector<2x8xf32>
    %66 = vector.multi_reduction <maximumf>, %65, %cst_25 [2] : vector<2x8x8xf32> to vector<2x8xf32>
    %67 = vector.shape_cast %66 : vector<2x8xf32> to vector<2x8x1xf32>
    %68 = vector.broadcast %67 : vector<2x8x1xf32> to vector<2x8x8xf32>
    %69 = arith.subf %65, %68 : vector<2x8x8xf32>
    %70 = math.exp %69 : vector<2x8x8xf32>
    %cst_26 = arith.constant dense<0.000000e+00> : vector<2x8xf32>
    %71 = vector.multi_reduction <add>, %70, %cst_26 [2] : vector<2x8x8xf32> to vector<2x8xf32>
    %72 = vector.shape_cast %71 : vector<2x8xf32> to vector<2x8x1xf32>
    %73 = tpu.reciprocal %72 {approx = true} : vector<2x8x1xf32> -> vector<2x8x1xf32>
    %74 = vector.broadcast %73 : vector<2x8x1xf32> to vector<2x8x8xf32>
    %75 = arith.mulf %70, %74 : vector<2x8x8xf32>
    "tpu.trace_start"() <{level = 10 : i32, message = "bqk,bkd->bqd"}> : () -> ()
    %cst_27 = arith.constant dense<0.000000e+00> : vector<2x8x8xf32>
    %76 = tpu.matmul %75, %64, %cst_27 {dimension_numbers = #tpu.dot_dimension_numbers<[2], [1], [1], [2], [0, 0, 0, 1, 1, 2], [0], [0]>} : vector<2x8x8xf32>, vector<2x8x8xf32>, vector<2x8x8xf32> -> vector<2x8x8xf32>
    "tpu.trace_stop"() : () -> ()
    %77 = vector.shape_cast %76 : vector<2x8x8xf32> to vector<16x8xf32>
    %78 = vector.extract_strided_slice %37 {offsets = [0, 16], sizes = [16, 8], strides = [1, 1]} : vector<16x32xf32> to vector<16x8xf32>
    %79 = vector.shape_cast %78 : vector<16x8xf32> to vector<2x8x8xf32>
    %80 = vector.extract_strided_slice %38 {offsets = [0, 16], sizes = [16, 8], strides = [1, 1]} : vector<16x32xf32> to vector<16x8xf32>
    %81 = vector.shape_cast %80 : vector<16x8xf32> to vector<2x8x8xf32>
    %82 = vector.extract_strided_slice %39 {offsets = [0, 16], sizes = [16, 8], strides = [1, 1]} : vector<16x32xf32> to vector<16x8xf32>
    %83 = vector.shape_cast %82 : vector<16x8xf32> to vector<2x8x8xf32>
    "tpu.trace_start"() <{level = 10 : i32, message = "bqd,bkd->bqk"}> : () -> ()
    %cst_28 = arith.constant dense<0.000000e+00> : vector<2x8x8xf32>
    %84 = tpu.matmul %79, %81, %cst_28 {dimension_numbers = #tpu.dot_dimension_numbers<[2], [2], [1], [1], [0, 0, 0, 1, 1, 1], [0], [0]>} : vector<2x8x8xf32>, vector<2x8x8xf32>, vector<2x8x8xf32> -> vector<2x8x8xf32>
    "tpu.trace_stop"() : () -> ()
    %cst_29 = arith.constant dense<0xFF800000> : vector<2x8xf32>
    %85 = vector.multi_reduction <maximumf>, %84, %cst_29 [2] : vector<2x8x8xf32> to vector<2x8xf32>
    %86 = vector.shape_cast %85 : vector<2x8xf32> to vector<2x8x1xf32>
    %87 = vector.broadcast %86 : vector<2x8x1xf32> to vector<2x8x8xf32>
    %88 = arith.subf %84, %87 : vector<2x8x8xf32>
    %89 = math.exp %88 : vector<2x8x8xf32>
    %cst_30 = arith.constant dense<0.000000e+00> : vector<2x8xf32>
    %90 = vector.multi_reduction <add>, %89, %cst_30 [2] : vector<2x8x8xf32> to vector<2x8xf32>
    %91 = vector.shape_cast %90 : vector<2x8xf32> to vector<2x8x1xf32>
    %92 = tpu.reciprocal %91 {approx = true} : vector<2x8x1xf32> -> vector<2x8x1xf32>
    %93 = vector.broadcast %92 : vector<2x8x1xf32> to vector<2x8x8xf32>
    %94 = arith.mulf %89, %93 : vector<2x8x8xf32>
    "tpu.trace_start"() <{level = 10 : i32, message = "bqk,bkd->bqd"}> : () -> ()
    %cst_31 = arith.constant dense<0.000000e+00> : vector<2x8x8xf32>
    %95 = tpu.matmul %94, %83, %cst_31 {dimension_numbers = #tpu.dot_dimension_numbers<[2], [1], [1], [2], [0, 0, 0, 1, 1, 2], [0], [0]>} : vector<2x8x8xf32>, vector<2x8x8xf32>, vector<2x8x8xf32> -> vector<2x8x8xf32>
    "tpu.trace_stop"() : () -> ()
    %96 = vector.shape_cast %95 : vector<2x8x8xf32> to vector<16x8xf32>
    %97 = vector.extract_strided_slice %37 {offsets = [0, 24], sizes = [16, 8], strides = [1, 1]} : vector<16x32xf32> to vector<16x8xf32>
    %98 = vector.shape_cast %97 : vector<16x8xf32> to vector<2x8x8xf32>
    %99 = vector.extract_strided_slice %38 {offsets = [0, 24], sizes = [16, 8], strides = [1, 1]} : vector<16x32xf32> to vector<16x8xf32>
    %100 = vector.shape_cast %99 : vector<16x8xf32> to vector<2x8x8xf32>
    %101 = vector.extract_strided_slice %39 {offsets = [0, 24], sizes = [16, 8], strides = [1, 1]} : vector<16x32xf32> to vector<16x8xf32>
    %102 = vector.shape_cast %101 : vector<16x8xf32> to vector<2x8x8xf32>
    "tpu.trace_start"() <{level = 10 : i32, message = "bqd,bkd->bqk"}> : () -> ()
    %cst_32 = arith.constant dense<0.000000e+00> : vector<2x8x8xf32>
    %103 = tpu.matmul %98, %100, %cst_32 {dimension_numbers = #tpu.dot_dimension_numbers<[2], [2], [1], [1], [0, 0, 0, 1, 1, 1], [0], [0]>} : vector<2x8x8xf32>, vector<2x8x8xf32>, vector<2x8x8xf32> -> vector<2x8x8xf32>
    "tpu.trace_stop"() : () -> ()
    %cst_33 = arith.constant dense<0xFF800000> : vector<2x8xf32>
    %104 = vector.multi_reduction <maximumf>, %103, %cst_33 [2] : vector<2x8x8xf32> to vector<2x8xf32>
    %105 = vector.shape_cast %104 : vector<2x8xf32> to vector<2x8x1xf32>
    %106 = vector.broadcast %105 : vector<2x8x1xf32> to vector<2x8x8xf32>
    %107 = arith.subf %103, %106 : vector<2x8x8xf32>
    %108 = math.exp %107 : vector<2x8x8xf32>
    %cst_34 = arith.constant dense<0.000000e+00> : vector<2x8xf32>
    %109 = vector.multi_reduction <add>, %108, %cst_34 [2] : vector<2x8x8xf32> to vector<2x8xf32>
    %110 = vector.shape_cast %109 : vector<2x8xf32> to vector<2x8x1xf32>
    %111 = tpu.reciprocal %110 {approx = true} : vector<2x8x1xf32> -> vector<2x8x1xf32>
    %112 = vector.broadcast %111 : vector<2x8x1xf32> to vector<2x8x8xf32>
    %113 = arith.mulf %108, %112 : vector<2x8x8xf32>
    "tpu.trace_start"() <{level = 10 : i32, message = "bqk,bkd->bqd"}> : () -> ()
    %cst_35 = arith.constant dense<0.000000e+00> : vector<2x8x8xf32>
    %114 = tpu.matmul %113, %102, %cst_35 {dimension_numbers = #tpu.dot_dimension_numbers<[2], [1], [1], [2], [0, 0, 0, 1, 1, 2], [0], [0]>} : vector<2x8x8xf32>, vector<2x8x8xf32>, vector<2x8x8xf32> -> vector<2x8x8xf32>
    "tpu.trace_stop"() : () -> ()
    %115 = vector.shape_cast %114 : vector<2x8x8xf32> to vector<16x8xf32>
    %116 = tpu.concatenate %58, %77, %96, %115 in 1 : vector<16x8xf32>, vector<16x8xf32>, vector<16x8xf32>, vector<16x8xf32> -> vector<16x32xf32>
    %c0_36 = arith.constant 0 : index
    %c0_37 = arith.constant 0 : index
    %c0_38 = arith.constant 0 : index
    %117 = vector.load %arg7[%c0_36, %c0_37, %c0_38] : memref<1x32x32xf32, #tpu.memory_space<vmem>>, vector<1x32x32xf32>
    %118 = vector.shape_cast %117 : vector<1x32x32xf32> to vector<32x32xf32>
    %cst_39 = arith.constant dense<0.000000e+00> : vector<16x32xf32>
    %119 = tpu.matmul %116, %118, %cst_39 {dimension_numbers = #tpu.dot_dimension_numbers<[1], [0], [0], [1], [0, 0, 1, 1], [], []>} : vector<16x32xf32>, vector<32x32xf32>, vector<16x32xf32> -> vector<16x32xf32>
    %c0_40 = arith.constant 0 : index
    %c0_41 = arith.constant 0 : index
    %c0_42 = arith.constant 0 : index
    %120 = vector.load %arg8[%c0_40, %c0_41, %c0_42] : memref<1x1x32xf32, #tpu.memory_space<vmem>>, vector<1x1x32xf32>
    %121 = vector.shape_cast %120 : vector<1x1x32xf32> to vector<1x32xf32>
    %122 = vector.broadcast %121 : vector<1x32xf32> to vector<16x32xf32>
    %123 = arith.addf %119, %122 : vector<16x32xf32>
    %124 = arith.addf %3, %123 : vector<16x32xf32>
    %c0_43 = arith.constant 0 : index
    %c0_44 = arith.constant 0 : index
    %c0_45 = arith.constant 0 : index
    %125 = vector.load %arg9[%c0_43, %c0_44, %c0_45] : memref<1x1x32xf32, #tpu.memory_space<vmem>>, vector<1x1x32xf32>
    %126 = vector.shape_cast %125 : vector<1x1x32xf32> to vector<1x32xf32>
    %c0_46 = arith.constant 0 : index
    %c0_47 = arith.constant 0 : index
    %c0_48 = arith.constant 0 : index
    %127 = vector.load %arg10[%c0_46, %c0_47, %c0_48] : memref<1x1x32xf32, #tpu.memory_space<vmem>>, vector<1x1x32xf32>
    %128 = vector.shape_cast %127 : vector<1x1x32xf32> to vector<1x32xf32>
    %cst_49 = arith.constant dense<0.000000e+00> : vector<16xf32>
    %129 = vector.multi_reduction <add>, %124, %cst_49 [1] : vector<16x32xf32> to vector<16xf32>
    %130 = vector.shape_cast %129 : vector<16xf32> to vector<16x1xf32>
    %cst_50 = arith.constant 3.200000e+01 : f32
    %131 = vector.broadcast %cst_50 : f32 to vector<16x1xf32>
    %132 = arith.divf %130, %131 : vector<16x1xf32>
    %133 = vector.broadcast %132 : vector<16x1xf32> to vector<16x32xf32>
    %134 = arith.subf %124, %133 : vector<16x32xf32>
    %135 = arith.mulf %134, %134 : vector<16x32xf32>
    %cst_51 = arith.constant dense<0.000000e+00> : vector<16xf32>
    %136 = vector.multi_reduction <add>, %135, %cst_51 [1] : vector<16x32xf32> to vector<16xf32>
    %137 = vector.shape_cast %136 : vector<16xf32> to vector<16x1xf32>
    %cst_52 = arith.constant 3.200000e+01 : f32
    %138 = vector.broadcast %cst_52 : f32 to vector<16x1xf32>
    %139 = arith.divf %137, %138 : vector<16x1xf32>
    %cst_53 = arith.constant 9.99999974E-6 : f32
    %140 = vector.broadcast %cst_53 : f32 to vector<16x1xf32>
    %141 = arith.addf %139, %140 : vector<16x1xf32>
    %142 = math.rsqrt %141 : vector<16x1xf32>
    %143 = vector.broadcast %142 : vector<16x1xf32> to vector<16x32xf32>
    %144 = arith.mulf %134, %143 : vector<16x32xf32>
    %145 = vector.broadcast %126 : vector<1x32xf32> to vector<16x32xf32>
    %146 = arith.mulf %144, %145 : vector<16x32xf32>
    %147 = vector.broadcast %128 : vector<1x32xf32> to vector<16x32xf32>
    %148 = arith.addf %146, %147 : vector<16x32xf32>
    %c0_54 = arith.constant 0 : index
    %c0_55 = arith.constant 0 : index
    %c0_56 = arith.constant 0 : index
    %149 = vector.load %arg11[%c0_54, %c0_55, %c0_56] : memref<1x32x64xf32, #tpu.memory_space<vmem>>, vector<1x32x64xf32>
    %150 = vector.shape_cast %149 : vector<1x32x64xf32> to vector<32x64xf32>
    %cst_57 = arith.constant dense<0.000000e+00> : vector<16x64xf32>
    %151 = tpu.matmul %148, %150, %cst_57 {dimension_numbers = #tpu.dot_dimension_numbers<[1], [0], [0], [1], [0, 0, 1, 1], [], []>} : vector<16x32xf32>, vector<32x64xf32>, vector<16x64xf32> -> vector<16x64xf32>
    %c0_58 = arith.constant 0 : index
    %c0_59 = arith.constant 0 : index
    %c0_60 = arith.constant 0 : index
    %152 = vector.load %arg12[%c0_58, %c0_59, %c0_60] : memref<1x1x64xf32, #tpu.memory_space<vmem>>, vector<1x1x64xf32>
    %153 = vector.shape_cast %152 : vector<1x1x64xf32> to vector<1x64xf32>
    %154 = vector.broadcast %153 : vector<1x64xf32> to vector<16x64xf32>
    %155 = arith.addf %151, %154 : vector<16x64xf32>
    %cst_61 = arith.constant 0.000000e+00 : f32
    %156 = vector.broadcast %cst_61 : f32 to vector<16x64xf32>
    %157 = arith.maximumf %155, %156 : vector<16x64xf32>
    %c0_62 = arith.constant 0 : index
    %c0_63 = arith.constant 0 : index
    %c0_64 = arith.constant 0 : index
    %158 = vector.load %arg13[%c0_62, %c0_63, %c0_64] : memref<1x64x32xf32, #tpu.memory_space<vmem>>, vector<1x64x32xf32>
    %159 = vector.shape_cast %158 : vector<1x64x32xf32> to vector<64x32xf32>
    %cst_65 = arith.constant dense<0.000000e+00> : vector<16x32xf32>
    %160 = tpu.matmul %157, %159, %cst_65 {dimension_numbers = #tpu.dot_dimension_numbers<[1], [0], [0], [1], [0, 0, 1, 1], [], []>} : vector<16x64xf32>, vector<64x32xf32>, vector<16x32xf32> -> vector<16x32xf32>
    %c0_66 = arith.constant 0 : index
    %c0_67 = arith.constant 0 : index
    %c0_68 = arith.constant 0 : index
    %161 = vector.load %arg14[%c0_66, %c0_67, %c0_68] : memref<1x1x32xf32, #tpu.memory_space<vmem>>, vector<1x1x32xf32>
    %162 = vector.shape_cast %161 : vector<1x1x32xf32> to vector<1x32xf32>
    %163 = vector.broadcast %162 : vector<1x32xf32> to vector<16x32xf32>
    %164 = arith.addf %160, %163 : vector<16x32xf32>
    %165 = arith.addf %124, %164 : vector<16x32xf32>
    %c1_i32 = arith.constant 1 : i32
    %166 = arith.cmpi slt, %arg1, %c1_i32 : i32
    %167 = arith.extui %166 : i1 to i32
    %c0_i32_69 = arith.constant 0 : i32
    %168 = arith.cmpi ne, %167, %c0_i32_69 : i32
    scf.if %168 {
      %c0_72 = arith.constant 0 : index
      %c0_73 = arith.constant 0 : index
      %172 = vector.load %arg17[%c0_72, %c0_73] : memref<16x32xf32, #tpu.memory_space<vmem>>, vector<16x32xf32>
      tpu.vector_store %arg17[%c0_72, %c0_73], %165 {strides = array<i32>} : memref<16x32xf32, #tpu.memory_space<vmem>>, vector<16x32xf32>,
    } else {
    }
    %c1_i32_70 = arith.constant 1 : i32
    %169 = arith.cmpi eq, %arg1, %c1_i32_70 : i32
    %170 = arith.extui %169 : i1 to i32
    %c0_i32_71 = arith.constant 0 : i32
    %171 = arith.cmpi ne, %170, %c0_i32_71 : i32
    scf.if %171 {
      %c0_72 = arith.constant 0 : index
      %c0_73 = arith.constant 0 : index
      %172 = vector.load %arg15[%c0_72, %c0_73] : memref<1x32xf32, #tpu.memory_space<vmem>>, vector<1x32xf32>
      %c0_74 = arith.constant 0 : index
      %c0_75 = arith.constant 0 : index
      %173 = vector.load %arg16[%c0_74, %c0_75] : memref<1x32xf32, #tpu.memory_space<vmem>>, vector<1x32xf32>
      %cst_76 = arith.constant dense<0.000000e+00> : vector<16xf32>
      %174 = vector.multi_reduction <add>, %165, %cst_76 [1] : vector<16x32xf32> to vector<16xf32>
      %175 = vector.shape_cast %174 : vector<16xf32> to vector<16x1xf32>
      %cst_77 = arith.constant 3.200000e+01 : f32
      %176 = vector.broadcast %cst_77 : f32 to vector<16x1xf32>
      %177 = arith.divf %175, %176 : vector<16x1xf32>
      %178 = vector.broadcast %177 : vector<16x1xf32> to vector<16x32xf32>
      %179 = arith.subf %165, %178 : vector<16x32xf32>
      %180 = arith.mulf %179, %179 : vector<16x32xf32>
      %cst_78 = arith.constant dense<0.000000e+00> : vector<16xf32>
      %181 = vector.multi_reduction <add>, %180, %cst_78 [1] : vector<16x32xf32> to vector<16xf32>
      %182 = vector.shape_cast %181 : vector<16xf32> to vector<16x1xf32>
      %cst_79 = arith.constant 3.200000e+01 : f32
      %183 = vector.broadcast %cst_79 : f32 to vector<16x1xf32>
      %184 = arith.divf %182, %183 : vector<16x1xf32>
      %cst_80 = arith.constant 9.99999974E-6 : f32
      %185 = vector.broadcast %cst_80 : f32 to vector<16x1xf32>
      %186 = arith.addf %184, %185 : vector<16x1xf32>
      %187 = math.rsqrt %186 : vector<16x1xf32>
      %188 = vector.broadcast %187 : vector<16x1xf32> to vector<16x32xf32>
      %189 = arith.mulf %179, %188 : vector<16x32xf32>
      %190 = vector.broadcast %172 : vector<1x32xf32> to vector<16x32xf32>
      %191 = arith.mulf %189, %190 : vector<16x32xf32>
      %192 = vector.broadcast %173 : vector<1x32xf32> to vector<16x32xf32>
      %193 = arith.addf %191, %192 : vector<16x32xf32>
      %c0_81 = arith.constant 0 : index
      %c0_82 = arith.constant 0 : index
      %194 = vector.load %arg17[%c0_81, %c0_82] : memref<16x32xf32, #tpu.memory_space<vmem>>, vector<16x32xf32>
      tpu.vector_store %arg17[%c0_81, %c0_82], %193 {strides = array<i32>} : memref<16x32xf32, #tpu.memory_space<vmem>>, vector<16x32xf32>,
    } else {
    }
    return
  }
  func.func @transform_0(%arg0: i32, %arg1: i32) -> (i32, i32) {
    %c0_i32 = arith.constant 0 : i32
    %c0_i32_0 = arith.constant 0 : i32
    return %arg0, %c0_i32 : i32, i32
  }
  func.func @transform_1(%arg0: i32, %arg1: i32) -> (i32, i32, i32) {
    %c0_i32 = arith.constant 0 : i32
    %c0_i32_0 = arith.constant 0 : i32
    %c0_i32_1 = arith.constant 0 : i32
    return %arg1, %c0_i32, %c0_i32_0 : i32, i32, i32
  }
  func.func @transform_2(%arg0: i32, %arg1: i32) -> (i32, i32, i32) {
    %c0_i32 = arith.constant 0 : i32
    %c0_i32_0 = arith.constant 0 : i32
    %c0_i32_1 = arith.constant 0 : i32
    return %arg1, %c0_i32, %c0_i32_0 : i32, i32, i32
  }
  func.func @transform_3(%arg0: i32, %arg1: i32) -> (i32, i32, i32) {
    %c0_i32 = arith.constant 0 : i32
    %c0_i32_0 = arith.constant 0 : i32
    %c0_i32_1 = arith.constant 0 : i32
    return %arg1, %c0_i32, %c0_i32_0 : i32, i32, i32
  }
  func.func @transform_4(%arg0: i32, %arg1: i32) -> (i32, i32, i32) {
    %c0_i32 = arith.constant 0 : i32
    %c0_i32_0 = arith.constant 0 : i32
    %c0_i32_1 = arith.constant 0 : i32
    return %arg1, %c0_i32, %c0_i32_0 : i32, i32, i32
  }
  func.func @transform_5(%arg0: i32, %arg1: i32) -> (i32, i32, i32) {
    %c0_i32 = arith.constant 0 : i32
    %c0_i32_0 = arith.constant 0 : i32
    %c0_i32_1 = arith.constant 0 : i32
    return %arg1, %c0_i32, %c0_i32_0 : i32, i32, i32
  }
  func.func @transform_6(%arg0: i32, %arg1: i32) -> (i32, i32, i32) {
    %c0_i32 = arith.constant 0 : i32
    %c0_i32_0 = arith.constant 0 : i32
    %c0_i32_1 = arith.constant 0 : i32
    return %arg1, %c0_i32, %c0_i32_0 : i32, i32, i32
  }
  func.func @transform_7(%arg0: i32, %arg1: i32) -> (i32, i32, i32) {
    %c0_i32 = arith.constant 0 : i32
    %c0_i32_0 = arith.constant 0 : i32
    %c0_i32_1 = arith.constant 0 : i32
    return %arg1, %c0_i32, %c0_i32_0 : i32, i32, i32
  }
  func.func @transform_8(%arg0: i32, %arg1: i32) -> (i32, i32, i32) {
    %c0_i32 = arith.constant 0 : i32
    %c0_i32_0 = arith.constant 0 : i32
    %c0_i32_1 = arith.constant 0 : i32
    return %arg1, %c0_i32, %c0_i32_0 : i32, i32, i32
  }
  func.func @transform_9(%arg0: i32, %arg1: i32) -> (i32, i32, i32) {
    %c0_i32 = arith.constant 0 : i32
    %c0_i32_0 = arith.constant 0 : i32
    %c0_i32_1 = arith.constant 0 : i32
    return %arg1, %c0_i32, %c0_i32_0 : i32, i32, i32
  }
  func.func @transform_10(%arg0: i32, %arg1: i32) -> (i32, i32, i32) {
    %c0_i32 = arith.constant 0 : i32
    %c0_i32_0 = arith.constant 0 : i32
    %c0_i32_1 = arith.constant 0 : i32
    return %arg1, %c0_i32, %c0_i32_0 : i32, i32, i32
  }
  func.func @transform_11(%arg0: i32, %arg1: i32) -> (i32, i32, i32) {
    %c0_i32 = arith.constant 0 : i32
    %c0_i32_0 = arith.constant 0 : i32
    %c0_i32_1 = arith.constant 0 : i32
    return %arg1, %c0_i32, %c0_i32_0 : i32, i32, i32
  }
  func.func @transform_12(%arg0: i32, %arg1: i32) -> (i32, i32, i32) {
    %c0_i32 = arith.constant 0 : i32
    %c0_i32_0 = arith.constant 0 : i32
    %c0_i32_1 = arith.constant 0 : i32
    return %arg1, %c0_i32, %c0_i32_0 : i32, i32, i32
  }
  func.func @transform_13(%arg0: i32, %arg1: i32) -> (i32, i32) {
    %c0_i32 = arith.constant 0 : i32
    %c0_i32_0 = arith.constant 0 : i32
    %c0_i32_1 = arith.constant 0 : i32
    return %c0_i32, %c0_i32_0 : i32, i32
  }
  func.func @transform_14(%arg0: i32, %arg1: i32) -> (i32, i32) {
    %c0_i32 = arith.constant 0 : i32
    %c0_i32_0 = arith.constant 0 : i32
    %c0_i32_1 = arith.constant 0 : i32
    return %c0_i32, %c0_i32_0 : i32, i32
  }
  func.func @transform_15(%arg0: i32, %arg1: i32) -> (i32, i32) {
    %c0_i32 = arith.constant 0 : i32
    %c0_i32_0 = arith.constant 0 : i32
    return %arg0, %c0_i32 : i32, i32
  }
}

</mosaic_0001>

<llo_original>
// kernel: tpu_custom_call.1
$region0: #{tpu_custom_call.1}
  #allocation0 [shape = 'u32[]', space=smem, size = 0x4, offset = 0x4, fixed_abs, tag = 'smem constant byte address 0x4 - core index']
  #allocation1 [shape = 'u32[144,128]{1,0:T(1,128)}', space=vmem, size = 0x12000, scoped, tag = 'internal scratch']
  %s0 = inlined_call_operand.hbm [shape: f32[16,32], index: 0, kind: input, shape index: {}]
  %s1 = inlined_call_operand.vmem [shape: f32[2,1,32], index: 1, kind: input, shape index: {}]
  %s2 = inlined_call_operand.vmem [shape: f32[2,1,32], index: 2, kind: input, shape index: {}]
  %s3 = inlined_call_operand.vmem [shape: f32[2,32,96], index: 3, kind: input, shape index: {}]
  %s4 = inlined_call_operand.vmem [shape: f32[2,1,96], index: 4, kind: input, shape index: {}]
  %s5 = inlined_call_operand.vmem [shape: f32[2,32,32], index: 5, kind: input, shape index: {}]
  %s6 = inlined_call_operand.vmem [shape: f32[2,1,32], index: 6, kind: input, shape index: {}]
  %s7 = inlined_call_operand.vmem [shape: f32[2,1,32], index: 7, kind: input, shape index: {}]
  %s8 = inlined_call_operand.vmem [shape: f32[2,1,32], index: 8, kind: input, shape index: {}]
  %s9 = inlined_call_operand.vmem [shape: f32[2,32,64], index: 9, kind: input, shape index: {}]
  %s10 = inlined_call_operand.vmem [shape: f32[2,1,64], index: 10, kind: input, shape index: {}]
  %s11 = inlined_call_operand.vmem [shape: f32[2,64,32], index: 11, kind: input, shape index: {}]
  %s12 = inlined_call_operand.vmem [shape: f32[2,1,32], index: 12, kind: input, shape index: {}]
  %s13 = inlined_call_operand.vmem [shape: f32[1,32], index: 13, kind: input, shape index: {}]
  %s14 = inlined_call_operand.vmem [shape: f32[1,32], index: 14, kind: input, shape index: {}]
  %s15 = inlined_call_operand.hbm [shape: f32[16,32], index: 15, kind: output, shape index: {}]
  %s16 = sld [smem:[#allocation0]]
  $region109: #{tpu_custom_call.1} parent=0
    _
  %s18 = ssub.s32 1, %s16
  %s19 = scalar_select 0, %s18, %s16
  $region1: #{tpu_custom_call.1} parent=0
    #allocation2 [shape = 'u8[8192]{0}', space=vmem, size = 0x2000, scoped, tag = 'input window, operand 0, single buffered']
    #allocation3 [shape = 's32[2]{0}', space=sflag, size = 0x8, scoped, tag = 'scoped memory for tpu_custom_call.1']
    #allocation4 [shape = 's32[2]{0}', space=sflag, size = 0x8, scoped, tag = 'scoped memory for tpu_custom_call.1']
    #allocation5 [shape = 'u8[8192]{0}', space=vmem, size = 0x2000, scoped, tag = 'output window, operand 0, single buffered']
    %20 = vsyncpa [#allocation3], 0
    %21 = vsyncpa [#allocation4], 0
    loop: start=0, step=1, limit=4
    $region2: #{tpu_custom_call.1} parent=1 // loop_pre_header
      _
    $region3: #{tpu_custom_call.1} parent=1 // loop_header
      %s23 = sphi 0, %s27
      %p24 = scmp.ge.s32.totalorder %s23, 4
      %s30 = sphi 0, %s42
      %s31 = sphi 0, %s38
      %s32 = sphi 0, %s30
      %s33 = sphi 0, %s31
      %s34 = sphi 0, %s32
      %s35 = sphi 0, %s33
      %s45 = sphi 0, %s47
      %s48 = sphi 0, %s45
      %s49 = sphi 0, %s48
      %s65 = sphi 0, %s49
      %s71 = sphi 0, %s73
      %s74 = sphi 0, %s71
      %s75 = sphi 0, %s74
      %s91 = sphi 0, %s75
      %s97 = sphi 0, %s99
      %s100 = sphi 0, %s97
      %s101 = sphi 0, %s100
      %s117 = sphi 0, %s101
      %s123 = sphi 0, %s125
      %s126 = sphi 0, %s123
      %s127 = sphi 0, %s126
      %s143 = sphi 0, %s127
      %s149 = sphi 0, %s151
      %s152 = sphi 0, %s149
      %s153 = sphi 0, %s152
      %s169 = sphi 0, %s153
      %s175 = sphi 0, %s177
      %s178 = sphi 0, %s175
      %s179 = sphi 0, %s178
      %s195 = sphi 0, %s179
      %s201 = sphi 0, %s203
      %s204 = sphi 0, %s201
      %s205 = sphi 0, %s204
      %s221 = sphi 0, %s205
      %s227 = sphi 0, %s229
      %s230 = sphi 0, %s227
      %s231 = sphi 0, %s230
      %s247 = sphi 0, %s231
      %s253 = sphi 0, %s255
      %s256 = sphi 0, %s253
      %s257 = sphi 0, %s256
      %s273 = sphi 0, %s257
      %s279 = sphi 0, %s281
      %s282 = sphi 0, %s279
      %s283 = sphi 0, %s282
      %s299 = sphi 0, %s283
      %s305 = sphi 0, %s307
      %s308 = sphi 0, %s305
      %s309 = sphi 0, %s308
      %s325 = sphi 0, %s309
      %s331 = sphi 0, %s333
      %s334 = sphi 0, %s331
      %s335 = sphi 0, %s334
      %s351 = sphi 0, %s335
      %s357 = sphi 0, %s359
      %s360 = sphi 0, %s357
      %s361 = sphi 0, %s360
      %s377 = sphi 0, %s361
      %s381 = sphi 0, %s381
      %s383 = sphi 0, %s381
      %s384 = sphi 0, %s383
      %s398 = sphi 0, %s384
      %s402 = sphi 0, %s402
      %s404 = sphi 0, %s402
      %s405 = sphi 0, %s404
      %s419 = sphi 0, %s405
      %s425 = sphi 0, %s427
      %s428 = sphi 0, %s425
      %s429 = sphi 0, %s428
      %s445 = sphi 0, %s429
    $region4: #{tpu_custom_call.1} parent=1 // loop_header_branch
      %26 = sbr.rel (%p24) target = $region8
    $region5: #{tpu_custom_call.1} parent=1 // loop_body
      %s28 = ssub.s32 %s23, 1
      %s29 = ssub.s32 %s23, 2
      %s36 = sadd.s32 1, %s31
      %p37 = scmp.ge.s32.totalorder %s36, 2
      %s38 = scalar_select %p37, 0, %s36
      %s39 = sadd.s32 1, %s30
      %s40 = scalar_select %p37, %s39, %s30
      %p41 = scmp.ge.s32.totalorder %s40, 1
      %s42 = scalar_select %p41, 0, %s40
      %s43 = ssub.s32 %s30, %s42
      %p44 = scmp.eq.s32.totalorder %s43, 0
      %s46 = sadd.s32 %s45, 1
      %s47 = scalar_select %p44, %s45, %s46
      %p50 = pneg %p44
      %p51 = scmp.eq.s32.totalorder %s23, 1
      %p52 = por %p50, %p51
      %p53 = scmp.ne.s32.totalorder %s45, %s48
      %p54 = scmp.eq.s32.totalorder %s23, 0
      %p55 = por %p53, %p54
      %p56 = scmp.ne.s32.totalorder %s45, %s48
      %p57 = scmp.eq.s32.totalorder %s28, 1
      %p58 = por %p56, %p57
      %p59 = scmp.ne.s32.totalorder %s48, %s49
      %p60 = scmp.eq.s32.totalorder %s28, 0
      %p61 = por %p59, %p60
      %p62 = scmp.ne.s32.totalorder %s48, %s49
      %p63 = scmp.eq.s32.totalorder %s29, 1
      %p64 = por %p62, %p63
      %p66 = scmp.ne.s32.totalorder %s49, %s65
      %p67 = scmp.eq.s32.totalorder %s29, 0
      %p68 = por %p66, %p67
      %s69 = ssub.s32 %s31, %s38
      %p70 = scmp.eq.s32.totalorder %s69, 0
      %s72 = sadd.s32 %s71, 1
      %s73 = scalar_select %p70, %s71, %s72
      %p76 = pneg %p70
      %p77 = scmp.eq.s32.totalorder %s23, 1
      %p78 = por %p76, %p77
      %p79 = scmp.ne.s32.totalorder %s71, %s74
      %p80 = scmp.eq.s32.totalorder %s23, 0
      %p81 = por %p79, %p80
      %p82 = scmp.ne.s32.totalorder %s71, %s74
      %p83 = scmp.eq.s32.totalorder %s28, 1
      %p84 = por %p82, %p83
      %p85 = scmp.ne.s32.totalorder %s74, %s75
      %p86 = scmp.eq.s32.totalorder %s28, 0
      %p87 = por %p85, %p86
      %p88 = scmp.ne.s32.totalorder %s74, %s75
      %p89 = scmp.eq.s32.totalorder %s29, 1
      %p90 = por %p88, %p89
      %p92 = scmp.ne.s32.totalorder %s75, %s91
      %p93 = scmp.eq.s32.totalorder %s29, 0
      %p94 = por %p92, %p93
      %s95 = ssub.s32 %s31, %s38
      %p96 = scmp.eq.s32.totalorder %s95, 0
      %s98 = sadd.s32 %s97, 1
      %s99 = scalar_select %p96, %s97, %s98
      %p102 = pneg %p96
      %p103 = scmp.eq.s32.totalorder %s23, 1
      %p104 = por %p102, %p103
      %p105 = scmp.ne.s32.totalorder %s97, %s100
      %p106 = scmp.eq.s32.totalorder %s23, 0
      %p107 = por %p105, %p106
      %p108 = scmp.ne.s32.totalorder %s97, %s100
      %p109 = scmp.eq.s32.totalorder %s28, 1
      %p110 = por %p108, %p109
      %p111 = scmp.ne.s32.totalorder %s100, %s101
      %p112 = scmp.eq.s32.totalorder %s28, 0
      %p113 = por %p111, %p112
      %p114 = scmp.ne.s32.totalorder %s100, %s101
      %p115 = scmp.eq.s32.totalorder %s29, 1
      %p116 = por %p114, %p115
      %p118 = scmp.ne.s32.totalorder %s101, %s117
      %p119 = scmp.eq.s32.totalorder %s29, 0
      %p120 = por %p118, %p119
      %s121 = ssub.s32 %s31, %s38
      %p122 = scmp.eq.s32.totalorder %s121, 0
      %s124 = sadd.s32 %s123, 1
      %s125 = scalar_select %p122, %s123, %s124
      %p128 = pneg %p122
      %p129 = scmp.eq.s32.totalorder %s23, 1
      %p130 = por %p128, %p129
      %p131 = scmp.ne.s32.totalorder %s123, %s126
      %p132 = scmp.eq.s32.totalorder %s23, 0
      %p133 = por %p131, %p132
      %p134 = scmp.ne.s32.totalorder %s123, %s126
      %p135 = scmp.eq.s32.totalorder %s28, 1
      %p136 = por %p134, %p135
      %p137 = scmp.ne.s32.totalorder %s126, %s127
      %p138 = scmp.eq.s32.totalorder %s28, 0
      %p139 = por %p137, %p138
      %p140 = scmp.ne.s32.totalorder %s126, %s127
      %p141 = scmp.eq.s32.totalorder %s29, 1
      %p142 = por %p140, %p141
      %p144 = scmp.ne.s32.totalorder %s127, %s143
      %p145 = scmp.eq.s32.totalorder %s29, 0
      %p146 = por %p144, %p145
      %s147 = ssub.s32 %s31, %s38
      %p148 = scmp.eq.s32.totalorder %s147, 0
      %s150 = sadd.s32 %s149, 1
      %s151 = scalar_select %p148, %s149, %s150
      %p154 = pneg %p148
      %p155 = scmp.eq.s32.totalorder %s23, 1
      %p156 = por %p154, %p155
      %p157 = scmp.ne.s32.totalorder %s149, %s152
      %p158 = scmp.eq.s32.totalorder %s23, 0
      %p159 = por %p157, %p158
      %p160 = scmp.ne.s32.totalorder %s149, %s152
      %p161 = scmp.eq.s32.totalorder %s28, 1
      %p162 = por %p160, %p161
      %p163 = scmp.ne.s32.totalorder %s152, %s153
      %p164 = scmp.eq.s32.totalorder %s28, 0
      %p165 = por %p163, %p164
      %p166 = scmp.ne.s32.totalorder %s152, %s153
      %p167 = scmp.eq.s32.totalorder %s29, 1
      %p168 = por %p166, %p167
      %p170 = scmp.ne.s32.totalorder %s153, %s169
      %p171 = scmp.eq.s32.totalorder %s29, 0
      %p172 = por %p170, %p171
      %s173 = ssub.s32 %s31, %s38
      %p174 = scmp.eq.s32.totalorder %s173, 0
      %s176 = sadd.s32 %s175, 1
      %s177 = scalar_select %p174, %s175, %s176
      %p180 = pneg %p174
      %p181 = scmp.eq.s32.totalorder %s23, 1
      %p182 = por %p180, %p181
      %p183 = scmp.ne.s32.totalorder %s175, %s178
      %p184 = scmp.eq.s32.totalorder %s23, 0
      %p185 = por %p183, %p184
      %p186 = scmp.ne.s32.totalorder %s175, %s178
      %p187 = scmp.eq.s32.totalorder %s28, 1
      %p188 = por %p186, %p187
      %p189 = scmp.ne.s32.totalorder %s178, %s179
      %p190 = scmp.eq.s32.totalorder %s28, 0
      %p191 = por %p189, %p190
      %p192 = scmp.ne.s32.totalorder %s178, %s179
      %p193 = scmp.eq.s32.totalorder %s29, 1
      %p194 = por %p192, %p193
      %p196 = scmp.ne.s32.totalorder %s179, %s195
      %p197 = scmp.eq.s32.totalorder %s29, 0
      %p198 = por %p196, %p197
      %s199 = ssub.s32 %s31, %s38
      %p200 = scmp.eq.s32.totalorder %s199, 0
      %s202 = sadd.s32 %s201, 1
      %s203 = scalar_select %p200, %s201, %s202
      %p206 = pneg %p200
      %p207 = scmp.eq.s32.totalorder %s23, 1
      %p208 = por %p206, %p207
      %p209 = scmp.ne.s32.totalorder %s201, %s204
      %p210 = scmp.eq.s32.totalorder %s23, 0
      %p211 = por %p209, %p210
      %p212 = scmp.ne.s32.totalorder %s201, %s204
      %p213 = scmp.eq.s32.totalorder %s28, 1
      %p214 = por %p212, %p213
      %p215 = scmp.ne.s32.totalorder %s204, %s205
      %p216 = scmp.eq.s32.totalorder %s28, 0
      %p217 = por %p215, %p216
      %p218 = scmp.ne.s32.totalorder %s204, %s205
      %p219 = scmp.eq.s32.totalorder %s29, 1
      %p220 = por %p218, %p219
      %p222 = scmp.ne.s32.totalorder %s205, %s221
      %p223 = scmp.eq.s32.totalorder %s29, 0
      %p224 = por %p222, %p223
      %s225 = ssub.s32 %s31, %s38
      %p226 = scmp.eq.s32.totalorder %s225, 0
      %s228 = sadd.s32 %s227, 1
      %s229 = scalar_select %p226, %s227, %s228
      %p232 = pneg %p226
      %p233 = scmp.eq.s32.totalorder %s23, 1
      %p234 = por %p232, %p233
      %p235 = scmp.ne.s32.totalorder %s227, %s230
      %p236 = scmp.eq.s32.totalorder %s23, 0
      %p237 = por %p235, %p236
      %p238 = scmp.ne.s32.totalorder %s227, %s230
      %p239 = scmp.eq.s32.totalorder %s28, 1
      %p240 = por %p238, %p239
      %p241 = scmp.ne.s32.totalorder %s230, %s231
      %p242 = scmp.eq.s32.totalorder %s28, 0
      %p243 = por %p241, %p242
      %p244 = scmp.ne.s32.totalorder %s230, %s231
      %p245 = scmp.eq.s32.totalorder %s29, 1
      %p246 = por %p244, %p245
      %p248 = scmp.ne.s32.totalorder %s231, %s247
      %p249 = scmp.eq.s32.totalorder %s29, 0
      %p250 = por %p248, %p249
      %s251 = ssub.s32 %s31, %s38
      %p252 = scmp.eq.s32.totalorder %s251, 0
      %s254 = sadd.s32 %s253, 1
      %s255 = scalar_select %p252, %s253, %s254
      %p258 = pneg %p252
      %p259 = scmp.eq.s32.totalorder %s23, 1
      %p260 = por %p258, %p259
      %p261 = scmp.ne.s32.totalorder %s253, %s256
      %p262 = scmp.eq.s32.totalorder %s23, 0
      %p263 = por %p261, %p262
      %p264 = scmp.ne.s32.totalorder %s253, %s256
      %p265 = scmp.eq.s32.totalorder %s28, 1
      %p266 = por %p264, %p265
      %p267 = scmp.ne.s32.totalorder %s256, %s257
      %p268 = scmp.eq.s32.totalorder %s28, 0
      %p269 = por %p267, %p268
      %p270 = scmp.ne.s32.totalorder %s256, %s257
      %p271 = scmp.eq.s32.totalorder %s29, 1
      %p272 = por %p270, %p271
      %p274 = scmp.ne.s32.totalorder %s257, %s273
      %p275 = scmp.eq.s32.totalorder %s29, 0
      %p276 = por %p274, %p275
      %s277 = ssub.s32 %s31, %s38
      %p278 = scmp.eq.s32.totalorder %s277, 0
      %s280 = sadd.s32 %s279, 1
      %s281 = scalar_select %p278, %s279, %s280
      %p284 = pneg %p278
      %p285 = scmp.eq.s32.totalorder %s23, 1
      %p286 = por %p284, %p285
      %p287 = scmp.ne.s32.totalorder %s279, %s282
      %p288 = scmp.eq.s32.totalorder %s23, 0
      %p289 = por %p287, %p288
      %p290 = scmp.ne.s32.totalorder %s279, %s282
      %p291 = scmp.eq.s32.totalorder %s28, 1
      %p292 = por %p290, %p291
      %p293 = scmp.ne.s32.totalorder %s282, %s283
      %p294 = scmp.eq.s32.totalorder %s28, 0
      %p295 = por %p293, %p294
      %p296 = scmp.ne.s32.totalorder %s282, %s283
      %p297 = scmp.eq.s32.totalorder %s29, 1
      %p298 = por %p296, %p297
      %p300 = scmp.ne.s32.totalorder %s283, %s299
      %p301 = scmp.eq.s32.totalorder %s29, 0
      %p302 = por %p300, %p301
      %s303 = ssub.s32 %s31, %s38
      %p304 = scmp.eq.s32.totalorder %s303, 0
      %s306 = sadd.s32 %s305, 1
      %s307 = scalar_select %p304, %s305, %s306
      %p310 = pneg %p304
      %p311 = scmp.eq.s32.totalorder %s23, 1
      %p312 = por %p310, %p311
      %p313 = scmp.ne.s32.totalorder %s305, %s308
      %p314 = scmp.eq.s32.totalorder %s23, 0
      %p315 = por %p313, %p314
      %p316 = scmp.ne.s32.totalorder %s305, %s308
      %p317 = scmp.eq.s32.totalorder %s28, 1
      %p318 = por %p316, %p317
      %p319 = scmp.ne.s32.totalorder %s308, %s309
      %p320 = scmp.eq.s32.totalorder %s28, 0
      %p321 = por %p319, %p320
      %p322 = scmp.ne.s32.totalorder %s308, %s309
      %p323 = scmp.eq.s32.totalorder %s29, 1
      %p324 = por %p322, %p323
      %p326 = scmp.ne.s32.totalorder %s309, %s325
      %p327 = scmp.eq.s32.totalorder %s29, 0
      %p328 = por %p326, %p327
      %s329 = ssub.s32 %s31, %s38
      %p330 = scmp.eq.s32.totalorder %s329, 0
      %s332 = sadd.s32 %s331, 1
      %s333 = scalar_select %p330, %s331, %s332
      %p336 = pneg %p330
      %p337 = scmp.eq.s32.totalorder %s23, 1
      %p338 = por %p336, %p337
      %p339 = scmp.ne.s32.totalorder %s331, %s334
      %p340 = scmp.eq.s32.totalorder %s23, 0
      %p341 = por %p339, %p340
      %p342 = scmp.ne.s32.totalorder %s331, %s334
      %p343 = scmp.eq.s32.totalorder %s28, 1
      %p344 = por %p342, %p343
      %p345 = scmp.ne.s32.totalorder %s334, %s335
      %p346 = scmp.eq.s32.totalorder %s28, 0
      %p347 = por %p345, %p346
      %p348 = scmp.ne.s32.totalorder %s334, %s335
      %p349 = scmp.eq.s32.totalorder %s29, 1
      %p350 = por %p348, %p349
      %p352 = scmp.ne.s32.totalorder %s335, %s351
      %p353 = scmp.eq.s32.totalorder %s29, 0
      %p354 = por %p352, %p353
      %s355 = ssub.s32 %s31, %s38
      %p356 = scmp.eq.s32.totalorder %s355, 0
      %s358 = sadd.s32 %s357, 1
      %s359 = scalar_select %p356, %s357, %s358
      %p362 = pneg %p356
      %p363 = scmp.eq.s32.totalorder %s23, 1
      %p364 = por %p362, %p363
      %p365 = scmp.ne.s32.totalorder %s357, %s360
      %p366 = scmp.eq.s32.totalorder %s23, 0
      %p367 = por %p365, %p366
      %p368 = scmp.ne.s32.totalorder %s357, %s360
      %p369 = scmp.eq.s32.totalorder %s28, 1
      %p370 = por %p368, %p369
      %p371 = scmp.ne.s32.totalorder %s360, %s361
      %p372 = scmp.eq.s32.totalorder %s28, 0
      %p373 = por %p371, %p372
      %p374 = scmp.ne.s32.totalorder %s360, %s361
      %p375 = scmp.eq.s32.totalorder %s29, 1
      %p376 = por %p374, %p375
      %p378 = scmp.ne.s32.totalorder %s361, %s377
      %p379 = scmp.eq.s32.totalorder %s29, 0
      %p380 = por %p378, %p379
      %s382 = sadd.s32 %s381, 1
      %p385 = scmp.eq.s32.totalorder %s23, 1
      %p386 = scmp.ne.s32.totalorder %s381, %s383
      %p387 = scmp.eq.s32.totalorder %s23, 0
      %p388 = por %p386, %p387
      %p389 = scmp.ne.s32.totalorder %s381, %s383
      %p390 = scmp.eq.s32.totalorder %s28, 1
      %p391 = por %p389, %p390
      %p392 = scmp.ne.s32.totalorder %s383, %s384
      %p393 = scmp.eq.s32.totalorder %s28, 0
      %p394 = por %p392, %p393
      %p395 = scmp.ne.s32.totalorder %s383, %s384
      %p396 = scmp.eq.s32.totalorder %s29, 1
      %p397 = por %p395, %p396
      %p399 = scmp.ne.s32.totalorder %s384, %s398
      %p400 = scmp.eq.s32.totalorder %s29, 0
      %p401 = por %p399, %p400
      %s403 = sadd.s32 %s402, 1
      %p406 = scmp.eq.s32.totalorder %s23, 1
      %p407 = scmp.ne.s32.totalorder %s402, %s404
      %p408 = scmp.eq.s32.totalorder %s23, 0
      %p409 = por %p407, %p408
      %p410 = scmp.ne.s32.totalorder %s402, %s404
      %p411 = scmp.eq.s32.totalorder %s28, 1
      %p412 = por %p410, %p411
      %p413 = scmp.ne.s32.totalorder %s404, %s405
      %p414 = scmp.eq.s32.totalorder %s28, 0
      %p415 = por %p413, %p414
      %p416 = scmp.ne.s32.totalorder %s404, %s405
      %p417 = scmp.eq.s32.totalorder %s29, 1
      %p418 = por %p416, %p417
      %p420 = scmp.ne.s32.totalorder %s405, %s419
      %p421 = scmp.eq.s32.totalorder %s29, 0
      %p422 = por %p420, %p421
      %s423 = ssub.s32 %s30, %s42
      %p424 = scmp.eq.s32.totalorder %s423, 0
      %s426 = sadd.s32 %s425, 1
      %s427 = scalar_select %p424, %s425, %s426
      %p430 = pneg %p424
      %p431 = scmp.eq.s32.totalorder %s23, 1
      %p432 = por %p430, %p431
      %p433 = scmp.ne.s32.totalorder %s425, %s428
      %p434 = scmp.eq.s32.totalorder %s23, 0
      %p435 = por %p433, %p434
      %p436 = scmp.ne.s32.totalorder %s425, %s428
      %p437 = scmp.eq.s32.totalorder %s28, 1
      %p438 = por %p436, %p437
      %p439 = scmp.ne.s32.totalorder %s428, %s429
      %p440 = scmp.eq.s32.totalorder %s28, 0
      %p441 = por %p439, %p440
      %p442 = scmp.ne.s32.totalorder %s428, %s429
      %p443 = scmp.eq.s32.totalorder %s29, 1
      %p444 = por %p442, %p443
      %p446 = scmp.ne.s32.totalorder %s429, %s445
      %p447 = scmp.eq.s32.totalorder %s29, 0
      %p448 = por %p446, %p447
      %p449 = scmp.le.s32.totalorder 1, %s23
      %p450 = scmp.lt.s32.totalorder %s23, 3
      %p451 = pnand %p449, %p450
      %p452 = pneg %p451
      // Predicated region
      $region9: #{tpu_custom_call.1} parent=5 // pred_check
        _
      $region10: #{tpu_custom_call.1} parent=5 // pred_check_branch
        %454 = sbr.rel (%p451) target = $region12
      $region11: #{tpu_custom_call.1} parent=5 // pred_region
        %s455 = ssub.s32 %s23, 1
        // Predicated region
        $region13: #{tpu_custom_call.1} parent=11 // pred_check
          %p456 = pneg %p61
        $region14: #{tpu_custom_call.1} parent=11 // pred_check_branch
          %458 = sbr.rel (%p456) target = $region16
        $region15: #{tpu_custom_call.1} parent=11 // pred_region
          %s459 = smul.u32 2, %s32
          %s461 = ssub.s32 256, 256
          %462 = vsyncadd [#allocation3], %s461
          %s463 = smul.addr %s459, 128
          %s464 = scalar_lea.hbm %s0, %s463
          %s465 = sshll.u32 [#allocation2], 4
          %s466 = int_to_ptr.vmem [resolvable:$true] %s465
          %471 = dma.hbm_to_vmem [thread:$0]  %s464, 256, %s466, [#allocation3], 128, 128, 8
        $region16: #{tpu_custom_call.1} parent=11 // pred_fallthru
          _
        // Predicated region
        $region17: #{tpu_custom_call.1} parent=11 // pred_check
          %p472 = pneg %p394
        $region18: #{tpu_custom_call.1} parent=11 // pred_check_branch
          %474 = sbr.rel (%p472) target = $region20
        $region19: #{tpu_custom_call.1} parent=11 // pred_region
          _
        $region20: #{tpu_custom_call.1} parent=11 // pred_fallthru
          _
        // Predicated region
        $region21: #{tpu_custom_call.1} parent=11 // pred_check
          %p475 = pneg %p415
        $region22: #{tpu_custom_call.1} parent=11 // pred_check_branch
          %477 = sbr.rel (%p475) target = $region24
        $region23: #{tpu_custom_call.1} parent=11 // pred_region
          _
        $region24: #{tpu_custom_call.1} parent=11 // pred_fallthru
          _
      $region12: #{tpu_custom_call.1} parent=5 // pred_fallthru
        _
      %p478 = scmp.lt.s32.totalorder %s23, 2
      // Predicated region
      $region25: #{tpu_custom_call.1} parent=5 // pred_check
        %p479 = pneg %p478
      $region26: #{tpu_custom_call.1} parent=5 // pred_check_branch
        %481 = sbr.rel (%p479) target = $region28
      $region27: #{tpu_custom_call.1} parent=5 // pred_region
        // Predicated region
        $region29: #{tpu_custom_call.1} parent=27 // pred_check
          %p482 = pneg %p81
        $region30: #{tpu_custom_call.1} parent=27 // pred_check_branch
          %484 = sbr.rel (%p482) target = $region32
        $region31: #{tpu_custom_call.1} parent=27 // pred_region
          %p485 = scmp.lt.s32.totalorder %s31, 1
          %s486 = scalar_select %p485, %s31, 1
          %s487 = scalar_lea.vmem %s1, %s486
        $region32: #{tpu_custom_call.1} parent=27 // pred_fallthru
          _
        // Predicated region
        $region33: #{tpu_custom_call.1} parent=27 // pred_check
          %p488 = pneg %p107
        $region34: #{tpu_custom_call.1} parent=27 // pred_check_branch
          %490 = sbr.rel (%p488) target = $region36
        $region35: #{tpu_custom_call.1} parent=27 // pred_region
          %p491 = scmp.lt.s32.totalorder %s31, 1
          %s492 = scalar_select %p491, %s31, 1
          %s493 = scalar_lea.vmem %s2, %s492
        $region36: #{tpu_custom_call.1} parent=27 // pred_fallthru
          _
        // Predicated region
        $region37: #{tpu_custom_call.1} parent=27 // pred_check
          %p494 = pneg %p133
        $region38: #{tpu_custom_call.1} parent=27 // pred_check_branch
          %496 = sbr.rel (%p494) target = $region40
        $region39: #{tpu_custom_call.1} parent=27 // pred_region
          %p497 = scmp.lt.s32.totalorder %s31, 1
          %s498 = scalar_select %p497, %s31, 1
          %s499 = smul.addr %s498, 4
          %s500 = smul.addr %s499, 8
          %s501 = scalar_lea.vmem %s3, %s500
        $region40: #{tpu_custom_call.1} parent=27 // pred_fallthru
          _
        // Predicated region
        $region41: #{tpu_custom_call.1} parent=27 // pred_check
          %p502 = pneg %p159
        $region42: #{tpu_custom_call.1} parent=27 // pred_check_branch
          %504 = sbr.rel (%p502) target = $region44
        $region43: #{tpu_custom_call.1} parent=27 // pred_region
          %p505 = scmp.lt.s32.totalorder %s31, 1
          %s506 = scalar_select %p505, %s31, 1
          %s507 = scalar_lea.vmem %s4, %s506
        $region44: #{tpu_custom_call.1} parent=27 // pred_fallthru
          _
        // Predicated region
        $region45: #{tpu_custom_call.1} parent=27 // pred_check
          %p508 = pneg %p185
        $region46: #{tpu_custom_call.1} parent=27 // pred_check_branch
          %510 = sbr.rel (%p508) target = $region48
        $region47: #{tpu_custom_call.1} parent=27 // pred_region
          %p511 = scmp.lt.s32.totalorder %s31, 1
          %s512 = scalar_select %p511, %s31, 1
          %s513 = smul.addr %s512, 4
          %s514 = smul.addr %s513, 8
          %s515 = scalar_lea.vmem %s5, %s514
        $region48: #{tpu_custom_call.1} parent=27 // pred_fallthru
          _
        // Predicated region
        $region49: #{tpu_custom_call.1} parent=27 // pred_check
          %p516 = pneg %p211
        $region50: #{tpu_custom_call.1} parent=27 // pred_check_branch
          %518 = sbr.rel (%p516) target = $region52
        $region51: #{tpu_custom_call.1} parent=27 // pred_region
          %p519 = scmp.lt.s32.totalorder %s31, 1
          %s520 = scalar_select %p519, %s31, 1
          %s521 = scalar_lea.vmem %s6, %s520
        $region52: #{tpu_custom_call.1} parent=27 // pred_fallthru
          _
        // Predicated region
        $region53: #{tpu_custom_call.1} parent=27 // pred_check
          %p522 = pneg %p237
        $region54: #{tpu_custom_call.1} parent=27 // pred_check_branch
          %524 = sbr.rel (%p522) target = $region56
        $region55: #{tpu_custom_call.1} parent=27 // pred_region
          %p525 = scmp.lt.s32.totalorder %s31, 1
          %s526 = scalar_select %p525, %s31, 1
          %s527 = scalar_lea.vmem %s7, %s526
        $region56: #{tpu_custom_call.1} parent=27 // pred_fallthru
          _
        // Predicated region
        $region57: #{tpu_custom_call.1} parent=27 // pred_check
          %p528 = pneg %p263
        $region58: #{tpu_custom_call.1} parent=27 // pred_check_branch
          %530 = sbr.rel (%p528) target = $region60
        $region59: #{tpu_custom_call.1} parent=27 // pred_region
          %p531 = scmp.lt.s32.totalorder %s31, 1
          %s532 = scalar_select %p531, %s31, 1
          %s533 = scalar_lea.vmem %s8, %s532
        $region60: #{tpu_custom_call.1} parent=27 // pred_fallthru
          _
        // Predicated region
        $region61: #{tpu_custom_call.1} parent=27 // pred_check
          %p534 = pneg %p289
        $region62: #{tpu_custom_call.1} parent=27 // pred_check_branch
          %536 = sbr.rel (%p534) target = $region64
        $region63: #{tpu_custom_call.1} parent=27 // pred_region
          %p537 = scmp.lt.s32.totalorder %s31, 1
          %s538 = scalar_select %p537, %s31, 1
          %s539 = smul.addr %s538, 4
          %s540 = smul.addr %s539, 8
          %s541 = scalar_lea.vmem %s9, %s540
        $region64: #{tpu_custom_call.1} parent=27 // pred_fallthru
          _
        // Predicated region
        $region65: #{tpu_custom_call.1} parent=27 // pred_check
          %p542 = pneg %p315
        $region66: #{tpu_custom_call.1} parent=27 // pred_check_branch
          %544 = sbr.rel (%p542) target = $region68
        $region67: #{tpu_custom_call.1} parent=27 // pred_region
          %p545 = scmp.lt.s32.totalorder %s31, 1
          %s546 = scalar_select %p545, %s31, 1
          %s547 = scalar_lea.vmem %s10, %s546
        $region68: #{tpu_custom_call.1} parent=27 // pred_fallthru
          _
        // Predicated region
        $region69: #{tpu_custom_call.1} parent=27 // pred_check
          %p548 = pneg %p341
        $region70: #{tpu_custom_call.1} parent=27 // pred_check_branch
          %550 = sbr.rel (%p548) target = $region72
        $region71: #{tpu_custom_call.1} parent=27 // pred_region
          %p551 = scmp.lt.s32.totalorder %s31, 1
          %s552 = scalar_select %p551, %s31, 1
          %s553 = smul.addr %s552, 8
          %s554 = smul.addr %s553, 8
          %s555 = scalar_lea.vmem %s11, %s554
        $region72: #{tpu_custom_call.1} parent=27 // pred_fallthru
          _
        // Predicated region
        $region73: #{tpu_custom_call.1} parent=27 // pred_check
          %p556 = pneg %p367
        $region74: #{tpu_custom_call.1} parent=27 // pred_check_branch
          %558 = sbr.rel (%p556) target = $region76
        $region75: #{tpu_custom_call.1} parent=27 // pred_region
          %p559 = scmp.lt.s32.totalorder %s31, 1
          %s560 = scalar_select %p559, %s31, 1
          %s561 = scalar_lea.vmem %s12, %s560
        $region76: #{tpu_custom_call.1} parent=27 // pred_fallthru
          _
      $region28: #{tpu_custom_call.1} parent=5 // pred_fallthru
        _
      %p562 = scmp.le.s32.totalorder 1, %s23
      %p563 = scmp.lt.s32.totalorder %s23, 3
      %p564 = pnand %p562, %p563
      %p565 = pneg %p564
      // Predicated region
      $region77: #{tpu_custom_call.1} parent=5 // pred_check
        _
      $region78: #{tpu_custom_call.1} parent=5 // pred_check_branch
        %567 = sbr.rel (%p564) target = $region80
      $region79: #{tpu_custom_call.1} parent=5 // pred_region
        %s568 = ssub.s32 %s23, 1
        // Predicated region
        $region81: #{tpu_custom_call.1} parent=79 // pred_check
          %p569 = pneg %p61
        $region82: #{tpu_custom_call.1} parent=79 // pred_check_branch
          %571 = sbr.rel (%p569) target = $region84
        $region83: #{tpu_custom_call.1} parent=79 // pred_region
          %572 = dma.done [#allocation3], 256
        $region84: #{tpu_custom_call.1} parent=79 // pred_fallthru
          _
        %p573 = pneg %p61
        %p574 = pneg %p58
        %p575 = scmp.lt.s32.totalorder %s33, 1
        %s576 = scalar_select %p575, %s33, 1
        %s577 = scalar_lea.vmem %s1, %s576
        %p578 = pneg %p87
        %p579 = pneg %p84
        %p580 = scmp.lt.s32.totalorder %s33, 1
        %s581 = scalar_select %p580, %s33, 1
        %s582 = scalar_lea.vmem %s2, %s581
        %p583 = pneg %p113
        %p584 = pneg %p110
        %p585 = scmp.lt.s32.totalorder %s33, 1
        %s586 = scalar_select %p585, %s33, 1
        %s587 = smul.addr %s586, 4
        %s588 = smul.addr %s587, 8
        %s589 = scalar_lea.vmem %s3, %s588
        %p590 = pneg %p139
        %p591 = pneg %p136
        %p592 = scmp.lt.s32.totalorder %s33, 1
        %s593 = scalar_select %p592, %s33, 1
        %s594 = scalar_lea.vmem %s4, %s593
        %p595 = pneg %p165
        %p596 = pneg %p162
        %p597 = scmp.lt.s32.totalorder %s33, 1
        %s598 = scalar_select %p597, %s33, 1
        %s599 = smul.addr %s598, 4
        %s600 = smul.addr %s599, 8
        %s601 = scalar_lea.vmem %s5, %s600
        %p602 = pneg %p191
        %p603 = pneg %p188
        %p604 = scmp.lt.s32.totalorder %s33, 1
        %s605 = scalar_select %p604, %s33, 1
        %s606 = scalar_lea.vmem %s6, %s605
        %p607 = pneg %p217
        %p608 = pneg %p214
        %p609 = scmp.lt.s32.totalorder %s33, 1
        %s610 = scalar_select %p609, %s33, 1
        %s611 = scalar_lea.vmem %s7, %s610
        %p612 = pneg %p243
        %p613 = pneg %p240
        %p614 = scmp.lt.s32.totalorder %s33, 1
        %s615 = scalar_select %p614, %s33, 1
        %s616 = scalar_lea.vmem %s8, %s615
        %p617 = pneg %p269
        %p618 = pneg %p266
        %p619 = scmp.lt.s32.totalorder %s33, 1
        %s620 = scalar_select %p619, %s33, 1
        %s621 = smul.addr %s620, 4
        %s622 = smul.addr %s621, 8
        %s623 = scalar_lea.vmem %s9, %s622
        %p624 = pneg %p295
        %p625 = pneg %p292
        %p626 = scmp.lt.s32.totalorder %s33, 1
        %s627 = scalar_select %p626, %s33, 1
        %s628 = scalar_lea.vmem %s10, %s627
        %p629 = pneg %p321
        %p630 = pneg %p318
        %p631 = scmp.lt.s32.totalorder %s33, 1
        %s632 = scalar_select %p631, %s33, 1
        %s633 = smul.addr %s632, 8
        %s634 = smul.addr %s633, 8
        %s635 = scalar_lea.vmem %s11, %s634
        %p636 = pneg %p347
        %p637 = pneg %p344
        %p638 = scmp.lt.s32.totalorder %s33, 1
        %s639 = scalar_select %p638, %s33, 1
        %s640 = scalar_lea.vmem %s12, %s639
        %p641 = pneg %p373
        %p642 = pneg %p370
        %p643 = pneg %p394
        %p644 = pneg %p391
        %p645 = pneg %p415
        %p646 = pneg %p412
        %p647 = pneg %p441
        %p648 = pneg %p438
        %s649 = smul.u32 2, %s32
        %p650 = scmp.lt.s32.totalorder %s33, 1
        %s651 = scalar_select %p650, %s33, 1
        %s652 = scalar_lea.vmem %s1, %s651
        %p653 = scmp.lt.s32.totalorder %s33, 1
        %s654 = scalar_select %p653, %s33, 1
        %s655 = scalar_lea.vmem %s2, %s654
        %p656 = scmp.lt.s32.totalorder %s33, 1
        %s657 = scalar_select %p656, %s33, 1
        %s658 = smul.addr %s657, 4
        %s659 = smul.addr %s658, 8
        %s660 = scalar_lea.vmem %s3, %s659
        %p661 = scmp.lt.s32.totalorder %s33, 1
        %s662 = scalar_select %p661, %s33, 1
        %s663 = scalar_lea.vmem %s4, %s662
        %p664 = scmp.lt.s32.totalorder %s33, 1
        %s665 = scalar_select %p664, %s33, 1
        %s666 = smul.addr %s665, 4
        %s667 = smul.addr %s666, 8
        %s668 = scalar_lea.vmem %s5, %s667
        %p669 = scmp.lt.s32.totalorder %s33, 1
        %s670 = scalar_select %p669, %s33, 1
        %s671 = scalar_lea.vmem %s6, %s670
        %p672 = scmp.lt.s32.totalorder %s33, 1
        %s673 = scalar_select %p672, %s33, 1
        %s674 = scalar_lea.vmem %s7, %s673
        %p675 = scmp.lt.s32.totalorder %s33, 1
        %s676 = scalar_select %p675, %s33, 1
        %s677 = scalar_lea.vmem %s8, %s676
        %p678 = scmp.lt.s32.totalorder %s33, 1
        %s679 = scalar_select %p678, %s33, 1
        %s680 = smul.addr %s679, 4
        %s681 = smul.addr %s680, 8
        %s682 = scalar_lea.vmem %s9, %s681
        %p683 = scmp.lt.s32.totalorder %s33, 1
        %s684 = scalar_select %p683, %s33, 1
        %s685 = scalar_lea.vmem %s10, %s684
        %p686 = scmp.lt.s32.totalorder %s33, 1
        %s687 = scalar_select %p686, %s33, 1
        %s688 = smul.addr %s687, 8
        %s689 = smul.addr %s688, 8
        %s690 = scalar_lea.vmem %s11, %s689
        %p691 = scmp.lt.s32.totalorder %s33, 1
        %s692 = scalar_select %p691, %s33, 1
        %s693 = scalar_lea.vmem %s12, %s692
        %s694 = smul.u32 2, %s32
        %p695 = scmp.eq.s32.totalorder %s33, 0
        // Predicated region
        $region85: #{tpu_custom_call.1} parent=79 // pred_check
          %p696 = pneg %p695
        $region86: #{tpu_custom_call.1} parent=79 // pred_check_branch
          %698 = sbr.rel (%p696) target = $region88
        $region87: #{tpu_custom_call.1} parent=79 // pred_region
          %v699 = vld [vmem:[#allocation2] sm:$0xff]
          %v700 = vld [vmem:[#allocation2 + $0x8] sm:$0xff]
          %vm701 = vcmask 261120
          %702 = vst.msk [vmem:[#allocation5] sm:$0xff] %vm701, %v699
          %703 = vst.msk [vmem:[#allocation5 + $0x8] sm:$0xff] %vm701, %v700
        $region88: #{tpu_custom_call.1} parent=79 // pred_fallthru
          _
        %v704 = vld [vmem:[#allocation5] sm:$0xff]
        %v705 = vld [vmem:[#allocation5 + $0x8] sm:$0xff]
        %v706 = vld [vmem:[%s652] sm:$0x1]
        %v707 = vld [vmem:[%s655] sm:$0x1]
        %vm708 = vcmask 261120
        %v709 = vsel %vm708, %v704, 0.0
        %710 = vadd.xlane.f32.xlu0 %v709
        %v711 = vpop.xlane.xlu0 %710
        %v712 = vsel %vm708, %v705, 0.0
        %713 = vadd.xlane.f32.xlu0 %v712
        %v714 = vpop.xlane.xlu0 %713
        %v715 = vrcp.pop 32.0
        %v716 = vmul.f32 %v711, %v715
        %v717 = vmul.f32 %v714, %v715
        %v718 = vsub.f32 %v704, %v716
        %v719 = vsub.f32 %v705, %v717
        %v720 = vmul.f32 %v718, %v718
        %v721 = vmul.f32 %v719, %v719
        %v722 = vsel %vm708, %v720, 0.0
        %723 = vadd.xlane.f32.xlu0 %v722
        %v724 = vpop.xlane.xlu0 %723
        %v725 = vsel %vm708, %v721, 0.0
        %726 = vadd.xlane.f32.xlu0 %v725
        %v727 = vpop.xlane.xlu0 %726
        %v728 = vmul.f32 %v724, %v715
        %v729 = vmul.f32 %v727, %v715
        %v730 = vadd.f32 %v728, 1e-05
        %v731 = vadd.f32 %v729, 1e-05
        %v732 = vrsqrt.pop %v730
        %v733 = vrsqrt.pop %v731
        %v734 = vmul.f32 %v718, %v732
        %v735 = vmul.f32 %v719, %v733
        %v737 = vlaneseq
        %v738 = vshrl.u32 %v737, 7
        %v739 = vsub.s32 0, %v738
        %v740 = vrot.slane %v706, %v739
        %v742 = vmul.f32 %v734, %v740
        %v743 = vmul.f32 %v735, %v740
        %v745 = vlaneseq
        %v746 = vshrl.u32 %v745, 7
        %v747 = vsub.s32 0, %v746
        %v748 = vrot.slane %v707, %v747
        %v750 = vadd.f32 %v742, %v748
        %v751 = vadd.f32 %v743, %v748
        %v752 = vld [vmem:[%s660] sm:$0xff]
        %v753 = vld [vmem:[%s660 + $0x8] sm:$0xff]
        %v754 = vld [vmem:[%s660 + $0x10] sm:$0xff]
        %v755 = vld [vmem:[%s660 + $0x18] sm:$0xff]
        %v756 = vld [vmem:[%s663] sm:$0x1]
        %v758 = vlaneseq
        %v759 = vshrl.u32 %v758, 7
        %v760 = vsub.s32 0, %v759
        %v761 = vrot.slane %v756, %v760
        %v764 = vsel %vm708, %v750, 0
        %v767 = vsel %vm708, %v751, 0
        %769 = vmatprep.subr.mxu0 0.0
        %770 = vmatpush1.msra.mxu0 %v752
        %771 = vmatprep.subr.mxu0 0.0
        %772 = vmatpush1.msra.mxu0 %v753
        %773 = vmatprep.subr.mxu0 0.0
        %774 = vmatpush1.msra.mxu0 %v754
        %775 = vmatprep.subr.mxu0 0.0
        %776 = vmatpush1.msra.mxu0 %v755
        %777 = vmatprep.subr.mxu0 0.0
        %778 = vmatpush1.msra.mxu0 0.0
        %779 = vmatprep.subr.mxu0 0.0
        %780 = vmatpush1.msra.mxu0 0.0
        %781 = vmatprep.subr.mxu0 0.0
        %782 = vmatpush1.msra.mxu0 0.0
        %783 = vmatprep.subr.mxu0 0.0
        %784 = vmatpush1.msra.mxu0 0.0
        %785 = vmatprep.subr.mxu0 0.0
        %786 = vmatpush1.msra.mxu0 0.0
        %787 = vmatprep.subr.mxu0 0.0
        %788 = vmatpush1.msra.mxu0 0.0
        %789 = vmatprep.subr.mxu0 0.0
        %790 = vmatpush1.msra.mxu0 0.0
        %791 = vmatprep.subr.mxu0 0.0
        %792 = vmatpush1.msra.mxu0 0.0
        %793 = vmatprep.subr.mxu0 0.0
        %794 = vmatpush1.msra.mxu0 0.0
        %795 = vmatprep.subr.mxu0 0.0
        %796 = vmatpush1.msra.mxu0 0.0
        %797 = vmatprep.subr.mxu0 0.0
        %798 = vmatpush1.msra.mxu0 0.0
        %799 = vmatprep.subr.mxu0 0.0
        %800 = vmatpush1.msra.mxu0 0.0
        %801 = vmatprep.subr.mxu0 0.0
        %802 = vmatpush1.msra.mxu0 0.0
        %803 = vmatprep.subr.mxu0 0.0
        %804 = vmatpush1.msra.mxu0 0.0
        %805 = vmatprep.subr.mxu0 0.0
        %806 = vmatpush1.msra.mxu0 0.0
        %807 = vmatprep.subr.mxu0 0.0
        %808 = vmatpush1.msra.mxu0 0.0
        %809 = vmatprep.subr.mxu0 0.0
        %810 = vmatpush1.msra.mxu0 0.0
        %811 = vmatprep.subr.mxu0 0.0
        %812 = vmatpush1.msra.mxu0 0.0
        %813 = vmatprep.subr.mxu0 0.0
        %814 = vmatpush1.msra.mxu0 0.0
        %815 = vmatprep.subr.mxu0 0.0
        %816 = vmatpush1.msra.mxu0 0.0
        %817 = vmatprep.subr.mxu0 0.0
        %818 = vmatpush1.msra.mxu0 0.0
        %819 = vmatprep.subr.mxu0 0.0
        %820 = vmatpush1.msra.mxu0 0.0
        %821 = vmatprep.subr.mxu0 0.0
        %822 = vmatpush1.msra.mxu0 0.0
        %823 = vmatprep.subr.mxu0 0.0
        %824 = vmatpush1.msra.mxu0 0.0
        %825 = vmatprep.subr.mxu0 0.0
        %826 = vmatpush1.msra.mxu0 0.0
        %827 = vmatprep.subr.mxu0 0.0
        %828 = vmatpush1.msra.mxu0 0.0
        %829 = vmatprep.subr.mxu0 0.0
        %830 = vmatpush1.msra.mxu0 0.0
        %831 = vmatprep.subr.mxu0 0.0
        %832 = vmatpush1.msra.mxu0 0.0
        %833 = vmatprep.mubr.f32.mxu0 0.0
        %834 = vmatmul.mubr.f32.gmra.mrb[0].mxu0 %v764
        %v835 = vpop.f32.mrb[0].mxu0
        %v836 = vadd.f32 %v761, %v835
        %v837 = vpop.f32.mrb[0].mxu0
        %838 = vmatprep.mubr.f32.mxu0 0.0
        %839 = vmatmul.mubr.f32.gmra.mrb[0].mxu0 %v767
        %v840 = vpop.f32.mrb[0].mxu0
        %v841 = vadd.f32 %v761, %v840
        %v842 = vpop.f32.mrb[0].mxu0
        %843 = vdwg.mxu0
        %v844 = vmul.f32 %v836, 0.35355338
        %v845 = vmul.f32 %v841, 0.35355338
        %847 = vrot.lane.b32.xlu0 %v836, 96
        %v848 = vpop.permute.xlu0 %847
        %vm849 = vcmask 64512
        %v851 = vsel %vm849, %v844, 0
        %v853 = vsel %vm849, %v848, 0
        %855 = vmatprep.subr.mxu0 0.0
        %856 = vmatpush1.xpose.msra.mxu0 %v853
        %857 = vmatprep.subr.mxu0 0.0
        %858 = vmatpush1.xpose.msra.mxu0 0.0
        %859 = vmatprep.subr.mxu0 0.0
        %860 = vmatpush1.xpose.msra.mxu0 0.0
        %861 = vmatprep.subr.mxu0 0.0
        %862 = vmatpush1.xpose.msra.mxu0 0.0
        %863 = vmatprep.subr.mxu0 0.0
        %864 = vmatpush1.xpose.msra.mxu0 0.0
        %865 = vmatprep.subr.mxu0 0.0
        %866 = vmatpush1.xpose.msra.mxu0 0.0
        %867 = vmatprep.subr.mxu0 0.0
        %868 = vmatpush1.xpose.msra.mxu0 0.0
        %869 = vmatprep.subr.mxu0 0.0
        %870 = vmatpush1.xpose.msra.mxu0 0.0
        %871 = vmatprep.subr.mxu0 0.0
        %872 = vmatpush1.xpose.msra.mxu0 0.0
        %873 = vmatprep.subr.mxu0 0.0
        %874 = vmatpush1.xpose.msra.mxu0 0.0
        %875 = vmatprep.subr.mxu0 0.0
        %876 = vmatpush1.xpose.msra.mxu0 0.0
        %877 = vmatprep.subr.mxu0 0.0
        %878 = vmatpush1.xpose.msra.mxu0 0.0
        %879 = vmatprep.subr.mxu0 0.0
        %880 = vmatpush1.xpose.msra.mxu0 0.0
        %881 = vmatprep.subr.mxu0 0.0
        %882 = vmatpush1.xpose.msra.mxu0 0.0
        %883 = vmatprep.subr.mxu0 0.0
        %884 = vmatpush1.xpose.msra.mxu0 0.0
        %885 = vmatprep.subr.mxu0 0.0
        %886 = vmatpush1.xpose.msra.mxu0 0.0
        %887 = vmatprep.subr.mxu0 0.0
        %888 = vmatpush1.xpose.msra.mxu0 0.0
        %889 = vmatprep.subr.mxu0 0.0
        %890 = vmatpush1.xpose.msra.mxu0 0.0
        %891 = vmatprep.subr.mxu0 0.0
        %892 = vmatpush1.xpose.msra.mxu0 0.0
        %893 = vmatprep.subr.mxu0 0.0
        %894 = vmatpush1.xpose.msra.mxu0 0.0
        %895 = vmatprep.subr.mxu0 0.0
        %896 = vmatpush1.xpose.msra.mxu0 0.0
        %897 = vmatprep.subr.mxu0 0.0
        %898 = vmatpush1.xpose.msra.mxu0 0.0
        %899 = vmatprep.subr.mxu0 0.0
        %900 = vmatpush1.xpose.msra.mxu0 0.0
        %901 = vmatprep.subr.mxu0 0.0
        %902 = vmatpush1.xpose.msra.mxu0 0.0
        %903 = vmatprep.subr.mxu0 0.0
        %904 = vmatpush1.xpose.msra.mxu0 0.0
        %905 = vmatprep.subr.mxu0 0.0
        %906 = vmatpush1.xpose.msra.mxu0 0.0
        %907 = vmatprep.subr.mxu0 0.0
        %908 = vmatpush1.xpose.msra.mxu0 0.0
        %909 = vmatprep.subr.mxu0 0.0
        %910 = vmatpush1.xpose.msra.mxu0 0.0
        %911 = vmatprep.subr.mxu0 0.0
        %912 = vmatpush1.xpose.msra.mxu0 0.0
        %913 = vmatprep.subr.mxu0 0.0
        %914 = vmatpush1.xpose.msra.mxu0 0.0
        %915 = vmatprep.subr.mxu0 0.0
        %916 = vmatpush1.xpose.msra.mxu0 0.0
        %917 = vmatprep.subr.mxu0 0.0
        %918 = vmatpush1.xpose.msra.mxu0 0.0
        %919 = vmatprep.mubr.f32.mxu0 0.0
        %920 = vmatmul.mubr.f32.gmra.mrb[0].mxu0 %v851
        %v921 = vpop.f32.mrb[0].mxu0
        %v922 = vadd.f32 0.0, %v921
        %v923 = vpop.f32.mrb[0].mxu0
        %924 = vdwg.mxu0
        %926 = vrot.lane.b32.xlu0 %v841, 96
        %v927 = vpop.permute.xlu0 %926
        %v929 = vsel %vm849, %v845, 0
        %v931 = vsel %vm849, %v927, 0
        %933 = vmatprep.subr.mxu0 0.0
        %934 = vmatpush1.xpose.msra.mxu0 %v931
        %935 = vmatprep.subr.mxu0 0.0
        %936 = vmatpush1.xpose.msra.mxu0 0.0
        %937 = vmatprep.subr.mxu0 0.0
        %938 = vmatpush1.xpose.msra.mxu0 0.0
        %939 = vmatprep.subr.mxu0 0.0
        %940 = vmatpush1.xpose.msra.mxu0 0.0
        %941 = vmatprep.subr.mxu0 0.0
        %942 = vmatpush1.xpose.msra.mxu0 0.0
        %943 = vmatprep.subr.mxu0 0.0
        %944 = vmatpush1.xpose.msra.mxu0 0.0
        %945 = vmatprep.subr.mxu0 0.0
        %946 = vmatpush1.xpose.msra.mxu0 0.0
        %947 = vmatprep.subr.mxu0 0.0
        %948 = vmatpush1.xpose.msra.mxu0 0.0
        %949 = vmatprep.subr.mxu0 0.0
        %950 = vmatpush1.xpose.msra.mxu0 0.0
        %951 = vmatprep.subr.mxu0 0.0
        %952 = vmatpush1.xpose.msra.mxu0 0.0
        %953 = vmatprep.subr.mxu0 0.0
        %954 = vmatpush1.xpose.msra.mxu0 0.0
        %955 = vmatprep.subr.mxu0 0.0
        %956 = vmatpush1.xpose.msra.mxu0 0.0
        %957 = vmatprep.subr.mxu0 0.0
        %958 = vmatpush1.xpose.msra.mxu0 0.0
        %959 = vmatprep.subr.mxu0 0.0
        %960 = vmatpush1.xpose.msra.mxu0 0.0
        %961 = vmatprep.subr.mxu0 0.0
        %962 = vmatpush1.xpose.msra.mxu0 0.0
        %963 = vmatprep.subr.mxu0 0.0
        %964 = vmatpush1.xpose.msra.mxu0 0.0
        %965 = vmatprep.subr.mxu0 0.0
        %966 = vmatpush1.xpose.msra.mxu0 0.0
        %967 = vmatprep.subr.mxu0 0.0
        %968 = vmatpush1.xpose.msra.mxu0 0.0
        %969 = vmatprep.subr.mxu0 0.0
        %970 = vmatpush1.xpose.msra.mxu0 0.0
        %971 = vmatprep.subr.mxu0 0.0
        %972 = vmatpush1.xpose.msra.mxu0 0.0
        %973 = vmatprep.subr.mxu0 0.0
        %974 = vmatpush1.xpose.msra.mxu0 0.0
        %975 = vmatprep.subr.mxu0 0.0
        %976 = vmatpush1.xpose.msra.mxu0 0.0
        %977 = vmatprep.subr.mxu0 0.0
        %978 = vmatpush1.xpose.msra.mxu0 0.0
        %979 = vmatprep.subr.mxu0 0.0
        %980 = vmatpush1.xpose.msra.mxu0 0.0
        %981 = vmatprep.subr.mxu0 0.0
        %982 = vmatpush1.xpose.msra.mxu0 0.0
        %983 = vmatprep.subr.mxu0 0.0
        %984 = vmatpush1.xpose.msra.mxu0 0.0
        %985 = vmatprep.subr.mxu0 0.0
        %986 = vmatpush1.xpose.msra.mxu0 0.0
        %987 = vmatprep.subr.mxu0 0.0
        %988 = vmatpush1.xpose.msra.mxu0 0.0
        %989 = vmatprep.subr.mxu0 0.0
        %990 = vmatpush1.xpose.msra.mxu0 0.0
        %991 = vmatprep.subr.mxu0 0.0
        %992 = vmatpush1.xpose.msra.mxu0 0.0
        %993 = vmatprep.subr.mxu0 0.0
        %994 = vmatpush1.xpose.msra.mxu0 0.0
        %995 = vmatprep.subr.mxu0 0.0
        %996 = vmatpush1.xpose.msra.mxu0 0.0
        %997 = vmatprep.mubr.f32.mxu0 0.0
        %998 = vmatmul.mubr.f32.gmra.mrb[0].mxu0 %v929
        %v999 = vpop.f32.mrb[0].mxu0
        %v1000 = vadd.f32 0.0, %v999
        %v1001 = vpop.f32.mrb[0].mxu0
        %1002 = vdwg.mxu0
        %v1003 = vsel %vm849, %v922, -inf
        %1004 = vmax.xlane.f32.xlu0 %v1003
        %v1005 = vpop.xlane.xlu0 %1004
        %v1006 = vsel %vm849, %v1000, -inf
        %1007 = vmax.xlane.f32.xlu0 %v1006
        %v1008 = vpop.xlane.xlu0 %1007
        %v1009 = vsub.f32 %v922, %v1005
        %v1010 = vsub.f32 %v1000, %v1008
        %v1011 = vmul.f32 %v1009, 1.442695
        %v1012 = vpow.pop %v1011
        %v1013 = vmul.f32 %v1010, 1.442695
        %v1014 = vpow.pop %v1013
        %v1015 = vsel %vm849, %v1012, 0.0
        %1016 = vadd.xlane.f32.xlu0 %v1015
        %v1017 = vpop.xlane.xlu0 %1016
        %v1018 = vsel %vm849, %v1014, 0.0
        %1019 = vadd.xlane.f32.xlu0 %v1018
        %v1020 = vpop.xlane.xlu0 %1019
        %v1021 = vrcp.pop %v1017
        %v1022 = vrcp.pop %v1020
        %v1023 = vmul.f32 %v1012, %v1021
        %v1024 = vmul.f32 %v1014, %v1022
        %1025 = vrot.lane.b32.xlu0 %v836, 64
        %v1026 = vpop.permute.xlu0 %1025
        %v1029 = vsel %vm849, %v1023, 0
        %1031 = vmatprep.subr.mxu0 0.0
        %1032 = vmatpush1.msra.mxu0 %v1026
        %1033 = vmatprep.subr.mxu0 0.0
        %1034 = vmatpush1.msra.mxu0 0.0
        %1035 = vmatprep.subr.mxu0 0.0
        %1036 = vmatpush1.msra.mxu0 0.0
        %1037 = vmatprep.subr.mxu0 0.0
        %1038 = vmatpush1.msra.mxu0 0.0
        %1039 = vmatprep.subr.mxu0 0.0
        %1040 = vmatpush1.msra.mxu0 0.0
        %1041 = vmatprep.subr.mxu0 0.0
        %1042 = vmatpush1.msra.mxu0 0.0
        %1043 = vmatprep.subr.mxu0 0.0
        %1044 = vmatpush1.msra.mxu0 0.0
        %1045 = vmatprep.subr.mxu0 0.0
        %1046 = vmatpush1.msra.mxu0 0.0
        %1047 = vmatprep.subr.mxu0 0.0
        %1048 = vmatpush1.msra.mxu0 0.0
        %1049 = vmatprep.subr.mxu0 0.0
        %1050 = vmatpush1.msra.mxu0 0.0
        %1051 = vmatprep.subr.mxu0 0.0
        %1052 = vmatpush1.msra.mxu0 0.0
        %1053 = vmatprep.subr.mxu0 0.0
        %1054 = vmatpush1.msra.mxu0 0.0
        %1055 = vmatprep.subr.mxu0 0.0
        %1056 = vmatpush1.msra.mxu0 0.0
        %1057 = vmatprep.subr.mxu0 0.0
        %1058 = vmatpush1.msra.mxu0 0.0
        %1059 = vmatprep.subr.mxu0 0.0
        %1060 = vmatpush1.msra.mxu0 0.0
        %1061 = vmatprep.subr.mxu0 0.0
        %1062 = vmatpush1.msra.mxu0 0.0
        %1063 = vmatprep.subr.mxu0 0.0
        %1064 = vmatpush1.msra.mxu0 0.0
        %1065 = vmatprep.subr.mxu0 0.0
        %1066 = vmatpush1.msra.mxu0 0.0
        %1067 = vmatprep.subr.mxu0 0.0
        %1068 = vmatpush1.msra.mxu0 0.0
        %1069 = vmatprep.subr.mxu0 0.0
        %1070 = vmatpush1.msra.mxu0 0.0
        %1071 = vmatprep.subr.mxu0 0.0
        %1072 = vmatpush1.msra.mxu0 0.0
        %1073 = vmatprep.subr.mxu0 0.0
        %1074 = vmatpush1.msra.mxu0 0.0
        %1075 = vmatprep.subr.mxu0 0.0
        %1076 = vmatpush1.msra.mxu0 0.0
        %1077 = vmatprep.subr.mxu0 0.0
        %1078 = vmatpush1.msra.mxu0 0.0
        %1079 = vmatprep.subr.mxu0 0.0
        %1080 = vmatpush1.msra.mxu0 0.0
        %1081 = vmatprep.subr.mxu0 0.0
        %1082 = vmatpush1.msra.mxu0 0.0
        %1083 = vmatprep.subr.mxu0 0.0
        %1084 = vmatpush1.msra.mxu0 0.0
        %1085 = vmatprep.subr.mxu0 0.0
        %1086 = vmatpush1.msra.mxu0 0.0
        %1087 = vmatprep.subr.mxu0 0.0
        %1088 = vmatpush1.msra.mxu0 0.0
        %1089 = vmatprep.subr.mxu0 0.0
        %1090 = vmatpush1.msra.mxu0 0.0
        %1091 = vmatprep.subr.mxu0 0.0
        %1092 = vmatpush1.msra.mxu0 0.0
        %1093 = vmatprep.subr.mxu0 0.0
        %1094 = vmatpush1.msra.mxu0 0.0
        %1095 = vmatprep.mubr.f32.mxu0 0.0
        %1096 = vmatmul.mubr.f32.gmra.mrb[0].mxu0 %v1029
        %v1097 = vpop.f32.mrb[0].mxu0
        %v1098 = vadd.f32 0.0, %v1097
        %v1099 = vpop.f32.mrb[0].mxu0
        %1100 = vdwg.mxu0
        %1101 = vrot.lane.b32.xlu0 %v841, 64
        %v1102 = vpop.permute.xlu0 %1101
        %v1105 = vsel %vm849, %v1024, 0
        %1107 = vmatprep.subr.mxu0 0.0
        %1108 = vmatpush1.msra.mxu0 %v1102
        %1109 = vmatprep.subr.mxu0 0.0
        %1110 = vmatpush1.msra.mxu0 0.0
        %1111 = vmatprep.subr.mxu0 0.0
        %1112 = vmatpush1.msra.mxu0 0.0
        %1113 = vmatprep.subr.mxu0 0.0
        %1114 = vmatpush1.msra.mxu0 0.0
        %1115 = vmatprep.subr.mxu0 0.0
        %1116 = vmatpush1.msra.mxu0 0.0
        %1117 = vmatprep.subr.mxu0 0.0
        %1118 = vmatpush1.msra.mxu0 0.0
        %1119 = vmatprep.subr.mxu0 0.0
        %1120 = vmatpush1.msra.mxu0 0.0
        %1121 = vmatprep.subr.mxu0 0.0
        %1122 = vmatpush1.msra.mxu0 0.0
        %1123 = vmatprep.subr.mxu0 0.0
        %1124 = vmatpush1.msra.mxu0 0.0
        %1125 = vmatprep.subr.mxu0 0.0
        %1126 = vmatpush1.msra.mxu0 0.0
        %1127 = vmatprep.subr.mxu0 0.0
        %1128 = vmatpush1.msra.mxu0 0.0
        %1129 = vmatprep.subr.mxu0 0.0
        %1130 = vmatpush1.msra.mxu0 0.0
        %1131 = vmatprep.subr.mxu0 0.0
        %1132 = vmatpush1.msra.mxu0 0.0
        %1133 = vmatprep.subr.mxu0 0.0
        %1134 = vmatpush1.msra.mxu0 0.0
        %1135 = vmatprep.subr.mxu0 0.0
        %1136 = vmatpush1.msra.mxu0 0.0
        %1137 = vmatprep.subr.mxu0 0.0
        %1138 = vmatpush1.msra.mxu0 0.0
        %1139 = vmatprep.subr.mxu0 0.0
        %1140 = vmatpush1.msra.mxu0 0.0
        %1141 = vmatprep.subr.mxu0 0.0
        %1142 = vmatpush1.msra.mxu0 0.0
        %1143 = vmatprep.subr.mxu0 0.0
        %1144 = vmatpush1.msra.mxu0 0.0
        %1145 = vmatprep.subr.mxu0 0.0
        %1146 = vmatpush1.msra.mxu0 0.0
        %1147 = vmatprep.subr.mxu0 0.0
        %1148 = vmatpush1.msra.mxu0 0.0
        %1149 = vmatprep.subr.mxu0 0.0
        %1150 = vmatpush1.msra.mxu0 0.0
        %1151 = vmatprep.subr.mxu0 0.0
        %1152 = vmatpush1.msra.mxu0 0.0
        %1153 = vmatprep.subr.mxu0 0.0
        %1154 = vmatpush1.msra.mxu0 0.0
        %1155 = vmatprep.subr.mxu0 0.0
        %1156 = vmatpush1.msra.mxu0 0.0
        %1157 = vmatprep.subr.mxu0 0.0
        %1158 = vmatpush1.msra.mxu0 0.0
        %1159 = vmatprep.subr.mxu0 0.0
        %1160 = vmatpush1.msra.mxu0 0.0
        %1161 = vmatprep.subr.mxu0 0.0
        %1162 = vmatpush1.msra.mxu0 0.0
        %1163 = vmatprep.subr.mxu0 0.0
        %1164 = vmatpush1.msra.mxu0 0.0
        %1165 = vmatprep.subr.mxu0 0.0
        %1166 = vmatpush1.msra.mxu0 0.0
        %1167 = vmatprep.subr.mxu0 0.0
        %1168 = vmatpush1.msra.mxu0 0.0
        %1169 = vmatprep.subr.mxu0 0.0
        %1170 = vmatpush1.msra.mxu0 0.0
        %1171 = vmatprep.mubr.f32.mxu0 0.0
        %1172 = vmatmul.mubr.f32.gmra.mrb[0].mxu0 %v1105
        %v1173 = vpop.f32.mrb[0].mxu0
        %v1174 = vadd.f32 0.0, %v1173
        %v1175 = vpop.f32.mrb[0].mxu0
        %1176 = vdwg.mxu0
        %1177 = vrot.lane.b32.xlu0 %v844, 120
        %v1178 = vpop.permute.xlu0 %1177
        %1179 = vrot.lane.b32.xlu0 %v836, 88
        %v1180 = vpop.permute.xlu0 %1179
        %v1181 = vsel %vm849, %v1178, 0
        %v1183 = vsel %vm849, %v1180, 0
        %1185 = vmatprep.subr.mxu0 0.0
        %1186 = vmatpush1.xpose.msra.mxu0 %v1183
        %1187 = vmatprep.subr.mxu0 0.0
        %1188 = vmatpush1.xpose.msra.mxu0 0.0
        %1189 = vmatprep.subr.mxu0 0.0
        %1190 = vmatpush1.xpose.msra.mxu0 0.0
        %1191 = vmatprep.subr.mxu0 0.0
        %1192 = vmatpush1.xpose.msra.mxu0 0.0
        %1193 = vmatprep.subr.mxu0 0.0
        %1194 = vmatpush1.xpose.msra.mxu0 0.0
        %1195 = vmatprep.subr.mxu0 0.0
        %1196 = vmatpush1.xpose.msra.mxu0 0.0
        %1197 = vmatprep.subr.mxu0 0.0
        %1198 = vmatpush1.xpose.msra.mxu0 0.0
        %1199 = vmatprep.subr.mxu0 0.0
        %1200 = vmatpush1.xpose.msra.mxu0 0.0
        %1201 = vmatprep.subr.mxu0 0.0
        %1202 = vmatpush1.xpose.msra.mxu0 0.0
        %1203 = vmatprep.subr.mxu0 0.0
        %1204 = vmatpush1.xpose.msra.mxu0 0.0
        %1205 = vmatprep.subr.mxu0 0.0
        %1206 = vmatpush1.xpose.msra.mxu0 0.0
        %1207 = vmatprep.subr.mxu0 0.0
        %1208 = vmatpush1.xpose.msra.mxu0 0.0
        %1209 = vmatprep.subr.mxu0 0.0
        %1210 = vmatpush1.xpose.msra.mxu0 0.0
        %1211 = vmatprep.subr.mxu0 0.0
        %1212 = vmatpush1.xpose.msra.mxu0 0.0
        %1213 = vmatprep.subr.mxu0 0.0
        %1214 = vmatpush1.xpose.msra.mxu0 0.0
        %1215 = vmatprep.subr.mxu0 0.0
        %1216 = vmatpush1.xpose.msra.mxu0 0.0
        %1217 = vmatprep.subr.mxu0 0.0
        %1218 = vmatpush1.xpose.msra.mxu0 0.0
        %1219 = vmatprep.subr.mxu0 0.0
        %1220 = vmatpush1.xpose.msra.mxu0 0.0
        %1221 = vmatprep.subr.mxu0 0.0
        %1222 = vmatpush1.xpose.msra.mxu0 0.0
        %1223 = vmatprep.subr.mxu0 0.0
        %1224 = vmatpush1.xpose.msra.mxu0 0.0
        %1225 = vmatprep.subr.mxu0 0.0
        %1226 = vmatpush1.xpose.msra.mxu0 0.0
        %1227 = vmatprep.subr.mxu0 0.0
        %1228 = vmatpush1.xpose.msra.mxu0 0.0
        %1229 = vmatprep.subr.mxu0 0.0
        %1230 = vmatpush1.xpose.msra.mxu0 0.0
        %1231 = vmatprep.subr.mxu0 0.0
        %1232 = vmatpush1.xpose.msra.mxu0 0.0
        %1233 = vmatprep.subr.mxu0 0.0
        %1234 = vmatpush1.xpose.msra.mxu0 0.0
        %1235 = vmatprep.subr.mxu0 0.0
        %1236 = vmatpush1.xpose.msra.mxu0 0.0
        %1237 = vmatprep.subr.mxu0 0.0
        %1238 = vmatpush1.xpose.msra.mxu0 0.0
        %1239 = vmatprep.subr.mxu0 0.0
        %1240 = vmatpush1.xpose.msra.mxu0 0.0
        %1241 = vmatprep.subr.mxu0 0.0
        %1242 = vmatpush1.xpose.msra.mxu0 0.0
        %1243 = vmatprep.subr.mxu0 0.0
        %1244 = vmatpush1.xpose.msra.mxu0 0.0
        %1245 = vmatprep.subr.mxu0 0.0
        %1246 = vmatpush1.xpose.msra.mxu0 0.0
        %1247 = vmatprep.subr.mxu0 0.0
        %1248 = vmatpush1.xpose.msra.mxu0 0.0
        %1249 = vmatprep.mubr.f32.mxu0 0.0
        %1250 = vmatmul.mubr.f32.gmra.mrb[0].mxu0 %v1181
        %v1251 = vpop.f32.mrb[0].mxu0
        %v1252 = vadd.f32 0.0, %v1251
        %v1253 = vpop.f32.mrb[0].mxu0
        %1254 = vdwg.mxu0
        %1255 = vrot.lane.b32.xlu0 %v845, 120
        %v1256 = vpop.permute.xlu0 %1255
        %1257 = vrot.lane.b32.xlu0 %v841, 88
        %v1258 = vpop.permute.xlu0 %1257
        %v1259 = vsel %vm849, %v1256, 0
        %v1261 = vsel %vm849, %v1258, 0
        %1263 = vmatprep.subr.mxu0 0.0
        %1264 = vmatpush1.xpose.msra.mxu0 %v1261
        %1265 = vmatprep.subr.mxu0 0.0
        %1266 = vmatpush1.xpose.msra.mxu0 0.0
        %1267 = vmatprep.subr.mxu0 0.0
        %1268 = vmatpush1.xpose.msra.mxu0 0.0
        %1269 = vmatprep.subr.mxu0 0.0
        %1270 = vmatpush1.xpose.msra.mxu0 0.0
        %1271 = vmatprep.subr.mxu0 0.0
        %1272 = vmatpush1.xpose.msra.mxu0 0.0
        %1273 = vmatprep.subr.mxu0 0.0
        %1274 = vmatpush1.xpose.msra.mxu0 0.0
        %1275 = vmatprep.subr.mxu0 0.0
        %1276 = vmatpush1.xpose.msra.mxu0 0.0
        %1277 = vmatprep.subr.mxu0 0.0
        %1278 = vmatpush1.xpose.msra.mxu0 0.0
        %1279 = vmatprep.subr.mxu0 0.0
        %1280 = vmatpush1.xpose.msra.mxu0 0.0
        %1281 = vmatprep.subr.mxu0 0.0
        %1282 = vmatpush1.xpose.msra.mxu0 0.0
        %1283 = vmatprep.subr.mxu0 0.0
        %1284 = vmatpush1.xpose.msra.mxu0 0.0
        %1285 = vmatprep.subr.mxu0 0.0
        %1286 = vmatpush1.xpose.msra.mxu0 0.0
        %1287 = vmatprep.subr.mxu0 0.0
        %1288 = vmatpush1.xpose.msra.mxu0 0.0
        %1289 = vmatprep.subr.mxu0 0.0
        %1290 = vmatpush1.xpose.msra.mxu0 0.0
        %1291 = vmatprep.subr.mxu0 0.0
        %1292 = vmatpush1.xpose.msra.mxu0 0.0
        %1293 = vmatprep.subr.mxu0 0.0
        %1294 = vmatpush1.xpose.msra.mxu0 0.0
        %1295 = vmatprep.subr.mxu0 0.0
        %1296 = vmatpush1.xpose.msra.mxu0 0.0
        %1297 = vmatprep.subr.mxu0 0.0
        %1298 = vmatpush1.xpose.msra.mxu0 0.0
        %1299 = vmatprep.subr.mxu0 0.0
        %1300 = vmatpush1.xpose.msra.mxu0 0.0
        %1301 = vmatprep.subr.mxu0 0.0
        %1302 = vmatpush1.xpose.msra.mxu0 0.0
        %1303 = vmatprep.subr.mxu0 0.0
        %1304 = vmatpush1.xpose.msra.mxu0 0.0
        %1305 = vmatprep.subr.mxu0 0.0
        %1306 = vmatpush1.xpose.msra.mxu0 0.0
        %1307 = vmatprep.subr.mxu0 0.0
        %1308 = vmatpush1.xpose.msra.mxu0 0.0
        %1309 = vmatprep.subr.mxu0 0.0
        %1310 = vmatpush1.xpose.msra.mxu0 0.0
        %1311 = vmatprep.subr.mxu0 0.0
        %1312 = vmatpush1.xpose.msra.mxu0 0.0
        %1313 = vmatprep.subr.mxu0 0.0
        %1314 = vmatpush1.xpose.msra.mxu0 0.0
        %1315 = vmatprep.subr.mxu0 0.0
        %1316 = vmatpush1.xpose.msra.mxu0 0.0
        %1317 = vmatprep.subr.mxu0 0.0
        %1318 = vmatpush1.xpose.msra.mxu0 0.0
        %1319 = vmatprep.subr.mxu0 0.0
        %1320 = vmatpush1.xpose.msra.mxu0 0.0
        %1321 = vmatprep.subr.mxu0 0.0
        %1322 = vmatpush1.xpose.msra.mxu0 0.0
        %1323 = vmatprep.subr.mxu0 0.0
        %1324 = vmatpush1.xpose.msra.mxu0 0.0
        %1325 = vmatprep.subr.mxu0 0.0
        %1326 = vmatpush1.xpose.msra.mxu0 0.0
        %1327 = vmatprep.mubr.f32.mxu0 0.0
        %1328 = vmatmul.mubr.f32.gmra.mrb[0].mxu0 %v1259
        %v1329 = vpop.f32.mrb[0].mxu0
        %v1330 = vadd.f32 0.0, %v1329
        %v1331 = vpop.f32.mrb[0].mxu0
        %1332 = vdwg.mxu0
        %v1333 = vsel %vm849, %v1252, -inf
        %1334 = vmax.xlane.f32.xlu0 %v1333
        %v1335 = vpop.xlane.xlu0 %1334
        %v1336 = vsel %vm849, %v1330, -inf
        %1337 = vmax.xlane.f32.xlu0 %v1336
        %v1338 = vpop.xlane.xlu0 %1337
        %v1339 = vsub.f32 %v1252, %v1335
        %v1340 = vsub.f32 %v1330, %v1338
        %v1341 = vmul.f32 %v1339, 1.442695
        %v1342 = vpow.pop %v1341
        %v1343 = vmul.f32 %v1340, 1.442695
        %v1344 = vpow.pop %v1343
        %v1345 = vsel %vm849, %v1342, 0.0
        %1346 = vadd.xlane.f32.xlu0 %v1345
        %v1347 = vpop.xlane.xlu0 %1346
        %v1348 = vsel %vm849, %v1344, 0.0
        %1349 = vadd.xlane.f32.xlu0 %v1348
        %v1350 = vpop.xlane.xlu0 %1349
        %v1351 = vrcp.pop %v1347
        %v1352 = vrcp.pop %v1350
        %v1353 = vmul.f32 %v1342, %v1351
        %v1354 = vmul.f32 %v1344, %v1352
        %1355 = vrot.lane.b32.xlu0 %v836, 56
        %v1356 = vpop.permute.xlu0 %1355
        %v1359 = vsel %vm849, %v1353, 0
        %1361 = vmatprep.subr.mxu0 0.0
        %1362 = vmatpush1.msra.mxu0 %v1356
        %1363 = vmatprep.subr.mxu0 0.0
        %1364 = vmatpush1.msra.mxu0 0.0
        %1365 = vmatprep.subr.mxu0 0.0
        %1366 = vmatpush1.msra.mxu0 0.0
        %1367 = vmatprep.subr.mxu0 0.0
        %1368 = vmatpush1.msra.mxu0 0.0
        %1369 = vmatprep.subr.mxu0 0.0
        %1370 = vmatpush1.msra.mxu0 0.0
        %1371 = vmatprep.subr.mxu0 0.0
        %1372 = vmatpush1.msra.mxu0 0.0
        %1373 = vmatprep.subr.mxu0 0.0
        %1374 = vmatpush1.msra.mxu0 0.0
        %1375 = vmatprep.subr.mxu0 0.0
        %1376 = vmatpush1.msra.mxu0 0.0
        %1377 = vmatprep.subr.mxu0 0.0
        %1378 = vmatpush1.msra.mxu0 0.0
        %1379 = vmatprep.subr.mxu0 0.0
        %1380 = vmatpush1.msra.mxu0 0.0
        %1381 = vmatprep.subr.mxu0 0.0
        %1382 = vmatpush1.msra.mxu0 0.0
        %1383 = vmatprep.subr.mxu0 0.0
        %1384 = vmatpush1.msra.mxu0 0.0
        %1385 = vmatprep.subr.mxu0 0.0
        %1386 = vmatpush1.msra.mxu0 0.0
        %1387 = vmatprep.subr.mxu0 0.0
        %1388 = vmatpush1.msra.mxu0 0.0
        %1389 = vmatprep.subr.mxu0 0.0
        %1390 = vmatpush1.msra.mxu0 0.0
        %1391 = vmatprep.subr.mxu0 0.0
        %1392 = vmatpush1.msra.mxu0 0.0
        %1393 = vmatprep.subr.mxu0 0.0
        %1394 = vmatpush1.msra.mxu0 0.0
        %1395 = vmatprep.subr.mxu0 0.0
        %1396 = vmatpush1.msra.mxu0 0.0
        %1397 = vmatprep.subr.mxu0 0.0
        %1398 = vmatpush1.msra.mxu0 0.0
        %1399 = vmatprep.subr.mxu0 0.0
        %1400 = vmatpush1.msra.mxu0 0.0
        %1401 = vmatprep.subr.mxu0 0.0
        %1402 = vmatpush1.msra.mxu0 0.0
        %1403 = vmatprep.subr.mxu0 0.0
        %1404 = vmatpush1.msra.mxu0 0.0
        %1405 = vmatprep.subr.mxu0 0.0
        %1406 = vmatpush1.msra.mxu0 0.0
        %1407 = vmatprep.subr.mxu0 0.0
        %1408 = vmatpush1.msra.mxu0 0.0
        %1409 = vmatprep.subr.mxu0 0.0
        %1410 = vmatpush1.msra.mxu0 0.0
        %1411 = vmatprep.subr.mxu0 0.0
        %1412 = vmatpush1.msra.mxu0 0.0
        %1413 = vmatprep.subr.mxu0 0.0
        %1414 = vmatpush1.msra.mxu0 0.0
        %1415 = vmatprep.subr.mxu0 0.0
        %1416 = vmatpush1.msra.mxu0 0.0
        %1417 = vmatprep.subr.mxu0 0.0
        %1418 = vmatpush1.msra.mxu0 0.0
        %1419 = vmatprep.subr.mxu0 0.0
        %1420 = vmatpush1.msra.mxu0 0.0
        %1421 = vmatprep.subr.mxu0 0.0
        %1422 = vmatpush1.msra.mxu0 0.0
        %1423 = vmatprep.subr.mxu0 0.0
        %1424 = vmatpush1.msra.mxu0 0.0
        %1425 = vmatprep.mubr.f32.mxu0 0.0
        %1426 = vmatmul.mubr.f32.gmra.mrb[0].mxu0 %v1359
        %v1427 = vpop.f32.mrb[0].mxu0
        %v1428 = vadd.f32 0.0, %v1427
        %v1429 = vpop.f32.mrb[0].mxu0
        %1430 = vdwg.mxu0
        %1431 = vrot.lane.b32.xlu0 %v841, 56
        %v1432 = vpop.permute.xlu0 %1431
        %v1435 = vsel %vm849, %v1354, 0
        %1437 = vmatprep.subr.mxu0 0.0
        %1438 = vmatpush1.msra.mxu0 %v1432
        %1439 = vmatprep.subr.mxu0 0.0
        %1440 = vmatpush1.msra.mxu0 0.0
        %1441 = vmatprep.subr.mxu0 0.0
        %1442 = vmatpush1.msra.mxu0 0.0
        %1443 = vmatprep.subr.mxu0 0.0
        %1444 = vmatpush1.msra.mxu0 0.0
        %1445 = vmatprep.subr.mxu0 0.0
        %1446 = vmatpush1.msra.mxu0 0.0
        %1447 = vmatprep.subr.mxu0 0.0
        %1448 = vmatpush1.msra.mxu0 0.0
        %1449 = vmatprep.subr.mxu0 0.0
        %1450 = vmatpush1.msra.mxu0 0.0
        %1451 = vmatprep.subr.mxu0 0.0
        %1452 = vmatpush1.msra.mxu0 0.0
        %1453 = vmatprep.subr.mxu0 0.0
        %1454 = vmatpush1.msra.mxu0 0.0
        %1455 = vmatprep.subr.mxu0 0.0
        %1456 = vmatpush1.msra.mxu0 0.0
        %1457 = vmatprep.subr.mxu0 0.0
        %1458 = vmatpush1.msra.mxu0 0.0
        %1459 = vmatprep.subr.mxu0 0.0
        %1460 = vmatpush1.msra.mxu0 0.0
        %1461 = vmatprep.subr.mxu0 0.0
        %1462 = vmatpush1.msra.mxu0 0.0
        %1463 = vmatprep.subr.mxu0 0.0
        %1464 = vmatpush1.msra.mxu0 0.0
        %1465 = vmatprep.subr.mxu0 0.0
        %1466 = vmatpush1.msra.mxu0 0.0
        %1467 = vmatprep.subr.mxu0 0.0
        %1468 = vmatpush1.msra.mxu0 0.0
        %1469 = vmatprep.subr.mxu0 0.0
        %1470 = vmatpush1.msra.mxu0 0.0
        %1471 = vmatprep.subr.mxu0 0.0
        %1472 = vmatpush1.msra.mxu0 0.0
        %1473 = vmatprep.subr.mxu0 0.0
        %1474 = vmatpush1.msra.mxu0 0.0
        %1475 = vmatprep.subr.mxu0 0.0
        %1476 = vmatpush1.msra.mxu0 0.0
        %1477 = vmatprep.subr.mxu0 0.0
        %1478 = vmatpush1.msra.mxu0 0.0
        %1479 = vmatprep.subr.mxu0 0.0
        %1480 = vmatpush1.msra.mxu0 0.0
        %1481 = vmatprep.subr.mxu0 0.0
        %1482 = vmatpush1.msra.mxu0 0.0
        %1483 = vmatprep.subr.mxu0 0.0
        %1484 = vmatpush1.msra.mxu0 0.0
        %1485 = vmatprep.subr.mxu0 0.0
        %1486 = vmatpush1.msra.mxu0 0.0
        %1487 = vmatprep.subr.mxu0 0.0
        %1488 = vmatpush1.msra.mxu0 0.0
        %1489 = vmatprep.subr.mxu0 0.0
        %1490 = vmatpush1.msra.mxu0 0.0
        %1491 = vmatprep.subr.mxu0 0.0
        %1492 = vmatpush1.msra.mxu0 0.0
        %1493 = vmatprep.subr.mxu0 0.0
        %1494 = vmatpush1.msra.mxu0 0.0
        %1495 = vmatprep.subr.mxu0 0.0
        %1496 = vmatpush1.msra.mxu0 0.0
        %1497 = vmatprep.subr.mxu0 0.0
        %1498 = vmatpush1.msra.mxu0 0.0
        %1499 = vmatprep.subr.mxu0 0.0
        %1500 = vmatpush1.msra.mxu0 0.0
        %1501 = vmatprep.mubr.f32.mxu0 0.0
        %1502 = vmatmul.mubr.f32.gmra.mrb[0].mxu0 %v1435
        %v1503 = vpop.f32.mrb[0].mxu0
        %v1504 = vadd.f32 0.0, %v1503
        %v1505 = vpop.f32.mrb[0].mxu0
        %1506 = vdwg.mxu0
        %1507 = vrot.lane.b32.xlu0 %v844, 112
        %v1508 = vpop.permute.xlu0 %1507
        %1509 = vrot.lane.b32.xlu0 %v836, 80
        %v1510 = vpop.permute.xlu0 %1509
        %v1511 = vsel %vm849, %v1508, 0
        %v1513 = vsel %vm849, %v1510, 0
        %1515 = vmatprep.subr.mxu0 0.0
        %1516 = vmatpush1.xpose.msra.mxu0 %v1513
        %1517 = vmatprep.subr.mxu0 0.0
        %1518 = vmatpush1.xpose.msra.mxu0 0.0
        %1519 = vmatprep.subr.mxu0 0.0
        %1520 = vmatpush1.xpose.msra.mxu0 0.0
        %1521 = vmatprep.subr.mxu0 0.0
        %1522 = vmatpush1.xpose.msra.mxu0 0.0
        %1523 = vmatprep.subr.mxu0 0.0
        %1524 = vmatpush1.xpose.msra.mxu0 0.0
        %1525 = vmatprep.subr.mxu0 0.0
        %1526 = vmatpush1.xpose.msra.mxu0 0.0
        %1527 = vmatprep.subr.mxu0 0.0
        %1528 = vmatpush1.xpose.msra.mxu0 0.0
        %1529 = vmatprep.subr.mxu0 0.0
        %1530 = vmatpush1.xpose.msra.mxu0 0.0
        %1531 = vmatprep.subr.mxu0 0.0
        %1532 = vmatpush1.xpose.msra.mxu0 0.0
        %1533 = vmatprep.subr.mxu0 0.0
        %1534 = vmatpush1.xpose.msra.mxu0 0.0
        %1535 = vmatprep.subr.mxu0 0.0
        %1536 = vmatpush1.xpose.msra.mxu0 0.0
        %1537 = vmatprep.subr.mxu0 0.0
        %1538 = vmatpush1.xpose.msra.mxu0 0.0
        %1539 = vmatprep.subr.mxu0 0.0
        %1540 = vmatpush1.xpose.msra.mxu0 0.0
        %1541 = vmatprep.subr.mxu0 0.0
        %1542 = vmatpush1.xpose.msra.mxu0 0.0
        %1543 = vmatprep.subr.mxu0 0.0
        %1544 = vmatpush1.xpose.msra.mxu0 0.0
        %1545 = vmatprep.subr.mxu0 0.0
        %1546 = vmatpush1.xpose.msra.mxu0 0.0
        %1547 = vmatprep.subr.mxu0 0.0
        %1548 = vmatpush1.xpose.msra.mxu0 0.0
        %1549 = vmatprep.subr.mxu0 0.0
        %1550 = vmatpush1.xpose.msra.mxu0 0.0
        %1551 = vmatprep.subr.mxu0 0.0
        %1552 = vmatpush1.xpose.msra.mxu0 0.0
        %1553 = vmatprep.subr.mxu0 0.0
        %1554 = vmatpush1.xpose.msra.mxu0 0.0
        %1555 = vmatprep.subr.mxu0 0.0
        %1556 = vmatpush1.xpose.msra.mxu0 0.0
        %1557 = vmatprep.subr.mxu0 0.0
        %1558 = vmatpush1.xpose.msra.mxu0 0.0
        %1559 = vmatprep.subr.mxu0 0.0
        %1560 = vmatpush1.xpose.msra.mxu0 0.0
        %1561 = vmatprep.subr.mxu0 0.0
        %1562 = vmatpush1.xpose.msra.mxu0 0.0
        %1563 = vmatprep.subr.mxu0 0.0
        %1564 = vmatpush1.xpose.msra.mxu0 0.0
        %1565 = vmatprep.subr.mxu0 0.0
        %1566 = vmatpush1.xpose.msra.mxu0 0.0
        %1567 = vmatprep.subr.mxu0 0.0
        %1568 = vmatpush1.xpose.msra.mxu0 0.0
        %1569 = vmatprep.subr.mxu0 0.0
        %1570 = vmatpush1.xpose.msra.mxu0 0.0
        %1571 = vmatprep.subr.mxu0 0.0
        %1572 = vmatpush1.xpose.msra.mxu0 0.0
        %1573 = vmatprep.subr.mxu0 0.0
        %1574 = vmatpush1.xpose.msra.mxu0 0.0
        %1575 = vmatprep.subr.mxu0 0.0
        %1576 = vmatpush1.xpose.msra.mxu0 0.0
        %1577 = vmatprep.subr.mxu0 0.0
        %1578 = vmatpush1.xpose.msra.mxu0 0.0
        %1579 = vmatprep.mubr.f32.mxu0 0.0
        %1580 = vmatmul.mubr.f32.gmra.mrb[0].mxu0 %v1511
        %v1581 = vpop.f32.mrb[0].mxu0
        %v1582 = vadd.f32 0.0, %v1581
        %v1583 = vpop.f32.mrb[0].mxu0
        %1584 = vdwg.mxu0
        %1585 = vrot.lane.b32.xlu0 %v845, 112
        %v1586 = vpop.permute.xlu0 %1585
        %1587 = vrot.lane.b32.xlu0 %v841, 80
        %v1588 = vpop.permute.xlu0 %1587
        %v1589 = vsel %vm849, %v1586, 0
        %v1591 = vsel %vm849, %v1588, 0
        %1593 = vmatprep.subr.mxu0 0.0
        %1594 = vmatpush1.xpose.msra.mxu0 %v1591
        %1595 = vmatprep.subr.mxu0 0.0
        %1596 = vmatpush1.xpose.msra.mxu0 0.0
        %1597 = vmatprep.subr.mxu0 0.0
        %1598 = vmatpush1.xpose.msra.mxu0 0.0
        %1599 = vmatprep.subr.mxu0 0.0
        %1600 = vmatpush1.xpose.msra.mxu0 0.0
        %1601 = vmatprep.subr.mxu0 0.0
        %1602 = vmatpush1.xpose.msra.mxu0 0.0
        %1603 = vmatprep.subr.mxu0 0.0
        %1604 = vmatpush1.xpose.msra.mxu0 0.0
        %1605 = vmatprep.subr.mxu0 0.0
        %1606 = vmatpush1.xpose.msra.mxu0 0.0
        %1607 = vmatprep.subr.mxu0 0.0
        %1608 = vmatpush1.xpose.msra.mxu0 0.0
        %1609 = vmatprep.subr.mxu0 0.0
        %1610 = vmatpush1.xpose.msra.mxu0 0.0
        %1611 = vmatprep.subr.mxu0 0.0
        %1612 = vmatpush1.xpose.msra.mxu0 0.0
        %1613 = vmatprep.subr.mxu0 0.0
        %1614 = vmatpush1.xpose.msra.mxu0 0.0
        %1615 = vmatprep.subr.mxu0 0.0
        %1616 = vmatpush1.xpose.msra.mxu0 0.0
        %1617 = vmatprep.subr.mxu0 0.0
        %1618 = vmatpush1.xpose.msra.mxu0 0.0
        %1619 = vmatprep.subr.mxu0 0.0
        %1620 = vmatpush1.xpose.msra.mxu0 0.0
        %1621 = vmatprep.subr.mxu0 0.0
        %1622 = vmatpush1.xpose.msra.mxu0 0.0
        %1623 = vmatprep.subr.mxu0 0.0
        %1624 = vmatpush1.xpose.msra.mxu0 0.0
        %1625 = vmatprep.subr.mxu0 0.0
        %1626 = vmatpush1.xpose.msra.mxu0 0.0
        %1627 = vmatprep.subr.mxu0 0.0
        %1628 = vmatpush1.xpose.msra.mxu0 0.0
        %1629 = vmatprep.subr.mxu0 0.0
        %1630 = vmatpush1.xpose.msra.mxu0 0.0
        %1631 = vmatprep.subr.mxu0 0.0
        %1632 = vmatpush1.xpose.msra.mxu0 0.0
        %1633 = vmatprep.subr.mxu0 0.0
        %1634 = vmatpush1.xpose.msra.mxu0 0.0
        %1635 = vmatprep.subr.mxu0 0.0
        %1636 = vmatpush1.xpose.msra.mxu0 0.0
        %1637 = vmatprep.subr.mxu0 0.0
        %1638 = vmatpush1.xpose.msra.mxu0 0.0
        %1639 = vmatprep.subr.mxu0 0.0
        %1640 = vmatpush1.xpose.msra.mxu0 0.0
        %1641 = vmatprep.subr.mxu0 0.0
        %1642 = vmatpush1.xpose.msra.mxu0 0.0
        %1643 = vmatprep.subr.mxu0 0.0
        %1644 = vmatpush1.xpose.msra.mxu0 0.0
        %1645 = vmatprep.subr.mxu0 0.0
        %1646 = vmatpush1.xpose.msra.mxu0 0.0
        %1647 = vmatprep.subr.mxu0 0.0
        %1648 = vmatpush1.xpose.msra.mxu0 0.0
        %1649 = vmatprep.subr.mxu0 0.0
        %1650 = vmatpush1.xpose.msra.mxu0 0.0
        %1651 = vmatprep.subr.mxu0 0.0
        %1652 = vmatpush1.xpose.msra.mxu0 0.0
        %1653 = vmatprep.subr.mxu0 0.0
        %1654 = vmatpush1.xpose.msra.mxu0 0.0
        %1655 = vmatprep.subr.mxu0 0.0
        %1656 = vmatpush1.xpose.msra.mxu0 0.0
        %1657 = vmatprep.mubr.f32.mxu0 0.0
        %1658 = vmatmul.mubr.f32.gmra.mrb[0].mxu0 %v1589
        %v1659 = vpop.f32.mrb[0].mxu0
        %v1660 = vadd.f32 0.0, %v1659
        %v1661 = vpop.f32.mrb[0].mxu0
        %1662 = vdwg.mxu0
        %v1663 = vsel %vm849, %v1582, -inf
        %1664 = vmax.xlane.f32.xlu0 %v1663
        %v1665 = vpop.xlane.xlu0 %1664
        %v1666 = vsel %vm849, %v1660, -inf
        %1667 = vmax.xlane.f32.xlu0 %v1666
        %v1668 = vpop.xlane.xlu0 %1667
        %v1669 = vsub.f32 %v1582, %v1665
        %v1670 = vsub.f32 %v1660, %v1668
        %v1671 = vmul.f32 %v1669, 1.442695
        %v1672 = vpow.pop %v1671
        %v1673 = vmul.f32 %v1670, 1.442695
        %v1674 = vpow.pop %v1673
        %v1675 = vsel %vm849, %v1672, 0.0
        %1676 = vadd.xlane.f32.xlu0 %v1675
        %v1677 = vpop.xlane.xlu0 %1676
        %v1678 = vsel %vm849, %v1674, 0.0
        %1679 = vadd.xlane.f32.xlu0 %v1678
        %v1680 = vpop.xlane.xlu0 %1679
        %v1681 = vrcp.pop %v1677
        %v1682 = vrcp.pop %v1680
        %v1683 = vmul.f32 %v1672, %v1681
        %v1684 = vmul.f32 %v1674, %v1682
        %1685 = vrot.lane.b32.xlu0 %v836, 48
        %v1686 = vpop.permute.xlu0 %1685
        %v1689 = vsel %vm849, %v1683, 0
        %1691 = vmatprep.subr.mxu0 0.0
        %1692 = vmatpush1.msra.mxu0 %v1686
        %1693 = vmatprep.subr.mxu0 0.0
        %1694 = vmatpush1.msra.mxu0 0.0
        %1695 = vmatprep.subr.mxu0 0.0
        %1696 = vmatpush1.msra.mxu0 0.0
        %1697 = vmatprep.subr.mxu0 0.0
        %1698 = vmatpush1.msra.mxu0 0.0
        %1699 = vmatprep.subr.mxu0 0.0
        %1700 = vmatpush1.msra.mxu0 0.0
        %1701 = vmatprep.subr.mxu0 0.0
        %1702 = vmatpush1.msra.mxu0 0.0
        %1703 = vmatprep.subr.mxu0 0.0
        %1704 = vmatpush1.msra.mxu0 0.0
        %1705 = vmatprep.subr.mxu0 0.0
        %1706 = vmatpush1.msra.mxu0 0.0
        %1707 = vmatprep.subr.mxu0 0.0
        %1708 = vmatpush1.msra.mxu0 0.0
        %1709 = vmatprep.subr.mxu0 0.0
        %1710 = vmatpush1.msra.mxu0 0.0
        %1711 = vmatprep.subr.mxu0 0.0
        %1712 = vmatpush1.msra.mxu0 0.0
        %1713 = vmatprep.subr.mxu0 0.0
        %1714 = vmatpush1.msra.mxu0 0.0
        %1715 = vmatprep.subr.mxu0 0.0
        %1716 = vmatpush1.msra.mxu0 0.0
        %1717 = vmatprep.subr.mxu0 0.0
        %1718 = vmatpush1.msra.mxu0 0.0
        %1719 = vmatprep.subr.mxu0 0.0
        %1720 = vmatpush1.msra.mxu0 0.0
        %1721 = vmatprep.subr.mxu0 0.0
        %1722 = vmatpush1.msra.mxu0 0.0
        %1723 = vmatprep.subr.mxu0 0.0
        %1724 = vmatpush1.msra.mxu0 0.0
        %1725 = vmatprep.subr.mxu0 0.0
        %1726 = vmatpush1.msra.mxu0 0.0
        %1727 = vmatprep.subr.mxu0 0.0
        %1728 = vmatpush1.msra.mxu0 0.0
        %1729 = vmatprep.subr.mxu0 0.0
        %1730 = vmatpush1.msra.mxu0 0.0
        %1731 = vmatprep.subr.mxu0 0.0
        %1732 = vmatpush1.msra.mxu0 0.0
        %1733 = vmatprep.subr.mxu0 0.0
        %1734 = vmatpush1.msra.mxu0 0.0
        %1735 = vmatprep.subr.mxu0 0.0
        %1736 = vmatpush1.msra.mxu0 0.0
        %1737 = vmatprep.subr.mxu0 0.0
        %1738 = vmatpush1.msra.mxu0 0.0
        %1739 = vmatprep.subr.mxu0 0.0
        %1740 = vmatpush1.msra.mxu0 0.0
        %1741 = vmatprep.subr.mxu0 0.0
        %1742 = vmatpush1.msra.mxu0 0.0
        %1743 = vmatprep.subr.mxu0 0.0
        %1744 = vmatpush1.msra.mxu0 0.0
        %1745 = vmatprep.subr.mxu0 0.0
        %1746 = vmatpush1.msra.mxu0 0.0
        %1747 = vmatprep.subr.mxu0 0.0
        %1748 = vmatpush1.msra.mxu0 0.0
        %1749 = vmatprep.subr.mxu0 0.0
        %1750 = vmatpush1.msra.mxu0 0.0
        %1751 = vmatprep.subr.mxu0 0.0
        %1752 = vmatpush1.msra.mxu0 0.0
        %1753 = vmatprep.subr.mxu0 0.0
        %1754 = vmatpush1.msra.mxu0 0.0
        %1755 = vmatprep.mubr.f32.mxu0 0.0
        %1756 = vmatmul.mubr.f32.gmra.mrb[0].mxu0 %v1689
        %v1757 = vpop.f32.mrb[0].mxu0
        %v1758 = vadd.f32 0.0, %v1757
        %v1759 = vpop.f32.mrb[0].mxu0
        %1760 = vdwg.mxu0
        %1761 = vrot.lane.b32.xlu0 %v841, 48
        %v1762 = vpop.permute.xlu0 %1761
        %v1765 = vsel %vm849, %v1684, 0
        %1767 = vmatprep.subr.mxu0 0.0
        %1768 = vmatpush1.msra.mxu0 %v1762
        %1769 = vmatprep.subr.mxu0 0.0
        %1770 = vmatpush1.msra.mxu0 0.0
        %1771 = vmatprep.subr.mxu0 0.0
        %1772 = vmatpush1.msra.mxu0 0.0
        %1773 = vmatprep.subr.mxu0 0.0
        %1774 = vmatpush1.msra.mxu0 0.0
        %1775 = vmatprep.subr.mxu0 0.0
        %1776 = vmatpush1.msra.mxu0 0.0
        %1777 = vmatprep.subr.mxu0 0.0
        %1778 = vmatpush1.msra.mxu0 0.0
        %1779 = vmatprep.subr.mxu0 0.0
        %1780 = vmatpush1.msra.mxu0 0.0
        %1781 = vmatprep.subr.mxu0 0.0
        %1782 = vmatpush1.msra.mxu0 0.0
        %1783 = vmatprep.subr.mxu0 0.0
        %1784 = vmatpush1.msra.mxu0 0.0
        %1785 = vmatprep.subr.mxu0 0.0
        %1786 = vmatpush1.msra.mxu0 0.0
        %1787 = vmatprep.subr.mxu0 0.0
        %1788 = vmatpush1.msra.mxu0 0.0
        %1789 = vmatprep.subr.mxu0 0.0
        %1790 = vmatpush1.msra.mxu0 0.0
        %1791 = vmatprep.subr.mxu0 0.0
        %1792 = vmatpush1.msra.mxu0 0.0
        %1793 = vmatprep.subr.mxu0 0.0
        %1794 = vmatpush1.msra.mxu0 0.0
        %1795 = vmatprep.subr.mxu0 0.0
        %1796 = vmatpush1.msra.mxu0 0.0
        %1797 = vmatprep.subr.mxu0 0.0
        %1798 = vmatpush1.msra.mxu0 0.0
        %1799 = vmatprep.subr.mxu0 0.0
        %1800 = vmatpush1.msra.mxu0 0.0
        %1801 = vmatprep.subr.mxu0 0.0
        %1802 = vmatpush1.msra.mxu0 0.0
        %1803 = vmatprep.subr.mxu0 0.0
        %1804 = vmatpush1.msra.mxu0 0.0
        %1805 = vmatprep.subr.mxu0 0.0
        %1806 = vmatpush1.msra.mxu0 0.0
        %1807 = vmatprep.subr.mxu0 0.0
        %1808 = vmatpush1.msra.mxu0 0.0
        %1809 = vmatprep.subr.mxu0 0.0
        %1810 = vmatpush1.msra.mxu0 0.0
        %1811 = vmatprep.subr.mxu0 0.0
        %1812 = vmatpush1.msra.mxu0 0.0
        %1813 = vmatprep.subr.mxu0 0.0
        %1814 = vmatpush1.msra.mxu0 0.0
        %1815 = vmatprep.subr.mxu0 0.0
        %1816 = vmatpush1.msra.mxu0 0.0
        %1817 = vmatprep.subr.mxu0 0.0
        %1818 = vmatpush1.msra.mxu0 0.0
        %1819 = vmatprep.subr.mxu0 0.0
        %1820 = vmatpush1.msra.mxu0 0.0
        %1821 = vmatprep.subr.mxu0 0.0
        %1822 = vmatpush1.msra.mxu0 0.0
        %1823 = vmatprep.subr.mxu0 0.0
        %1824 = vmatpush1.msra.mxu0 0.0
        %1825 = vmatprep.subr.mxu0 0.0
        %1826 = vmatpush1.msra.mxu0 0.0
        %1827 = vmatprep.subr.mxu0 0.0
        %1828 = vmatpush1.msra.mxu0 0.0
        %1829 = vmatprep.subr.mxu0 0.0
        %1830 = vmatpush1.msra.mxu0 0.0
        %1831 = vmatprep.mubr.f32.mxu0 0.0
        %1832 = vmatmul.mubr.f32.gmra.mrb[0].mxu0 %v1765
        %v1833 = vpop.f32.mrb[0].mxu0
        %v1834 = vadd.f32 0.0, %v1833
        %v1835 = vpop.f32.mrb[0].mxu0
        %1836 = vdwg.mxu0
        %1837 = vrot.lane.b32.xlu0 %v844, 104
        %v1838 = vpop.permute.xlu0 %1837
        %1839 = vrot.lane.b32.xlu0 %v836, 72
        %v1840 = vpop.permute.xlu0 %1839
        %v1841 = vsel %vm849, %v1838, 0
        %v1843 = vsel %vm849, %v1840, 0
        %1845 = vmatprep.subr.mxu0 0.0
        %1846 = vmatpush1.xpose.msra.mxu0 %v1843
        %1847 = vmatprep.subr.mxu0 0.0
        %1848 = vmatpush1.xpose.msra.mxu0 0.0
        %1849 = vmatprep.subr.mxu0 0.0
        %1850 = vmatpush1.xpose.msra.mxu0 0.0
        %1851 = vmatprep.subr.mxu0 0.0
        %1852 = vmatpush1.xpose.msra.mxu0 0.0
        %1853 = vmatprep.subr.mxu0 0.0
        %1854 = vmatpush1.xpose.msra.mxu0 0.0
        %1855 = vmatprep.subr.mxu0 0.0
        %1856 = vmatpush1.xpose.msra.mxu0 0.0
        %1857 = vmatprep.subr.mxu0 0.0
        %1858 = vmatpush1.xpose.msra.mxu0 0.0
        %1859 = vmatprep.subr.mxu0 0.0
        %1860 = vmatpush1.xpose.msra.mxu0 0.0
        %1861 = vmatprep.subr.mxu0 0.0
        %1862 = vmatpush1.xpose.msra.mxu0 0.0
        %1863 = vmatprep.subr.mxu0 0.0
        %1864 = vmatpush1.xpose.msra.mxu0 0.0
        %1865 = vmatprep.subr.mxu0 0.0
        %1866 = vmatpush1.xpose.msra.mxu0 0.0
        %1867 = vmatprep.subr.mxu0 0.0
        %1868 = vmatpush1.xpose.msra.mxu0 0.0
        %1869 = vmatprep.subr.mxu0 0.0
        %1870 = vmatpush1.xpose.msra.mxu0 0.0
        %1871 = vmatprep.subr.mxu0 0.0
        %1872 = vmatpush1.xpose.msra.mxu0 0.0
        %1873 = vmatprep.subr.mxu0 0.0
        %1874 = vmatpush1.xpose.msra.mxu0 0.0
        %1875 = vmatprep.subr.mxu0 0.0
        %1876 = vmatpush1.xpose.msra.mxu0 0.0
        %1877 = vmatprep.subr.mxu0 0.0
        %1878 = vmatpush1.xpose.msra.mxu0 0.0
        %1879 = vmatprep.subr.mxu0 0.0
        %1880 = vmatpush1.xpose.msra.mxu0 0.0
        %1881 = vmatprep.subr.mxu0 0.0
        %1882 = vmatpush1.xpose.msra.mxu0 0.0
        %1883 = vmatprep.subr.mxu0 0.0
        %1884 = vmatpush1.xpose.msra.mxu0 0.0
        %1885 = vmatprep.subr.mxu0 0.0
        %1886 = vmatpush1.xpose.msra.mxu0 0.0
        %1887 = vmatprep.subr.mxu0 0.0
        %1888 = vmatpush1.xpose.msra.mxu0 0.0
        %1889 = vmatprep.subr.mxu0 0.0
        %1890 = vmatpush1.xpose.msra.mxu0 0.0
        %1891 = vmatprep.subr.mxu0 0.0
        %1892 = vmatpush1.xpose.msra.mxu0 0.0
        %1893 = vmatprep.subr.mxu0 0.0
        %1894 = vmatpush1.xpose.msra.mxu0 0.0
        %1895 = vmatprep.subr.mxu0 0.0
        %1896 = vmatpush1.xpose.msra.mxu0 0.0
        %1897 = vmatprep.subr.mxu0 0.0
        %1898 = vmatpush1.xpose.msra.mxu0 0.0
        %1899 = vmatprep.subr.mxu0 0.0
        %1900 = vmatpush1.xpose.msra.mxu0 0.0
        %1901 = vmatprep.subr.mxu0 0.0
        %1902 = vmatpush1.xpose.msra.mxu0 0.0
        %1903 = vmatprep.subr.mxu0 0.0
        %1904 = vmatpush1.xpose.msra.mxu0 0.0
        %1905 = vmatprep.subr.mxu0 0.0
        %1906 = vmatpush1.xpose.msra.mxu0 0.0
        %1907 = vmatprep.subr.mxu0 0.0
        %1908 = vmatpush1.xpose.msra.mxu0 0.0
        %1909 = vmatprep.mubr.f32.mxu0 0.0
        %1910 = vmatmul.mubr.f32.gmra.mrb[0].mxu0 %v1841
        %v1911 = vpop.f32.mrb[0].mxu0
        %v1912 = vadd.f32 0.0, %v1911
        %v1913 = vpop.f32.mrb[0].mxu0
        %1914 = vdwg.mxu0
        %1915 = vrot.lane.b32.xlu0 %v845, 104
        %v1916 = vpop.permute.xlu0 %1915
        %1917 = vrot.lane.b32.xlu0 %v841, 72
        %v1918 = vpop.permute.xlu0 %1917
        %v1919 = vsel %vm849, %v1916, 0
        %v1921 = vsel %vm849, %v1918, 0
        %1923 = vmatprep.subr.mxu0 0.0
        %1924 = vmatpush1.xpose.msra.mxu0 %v1921
        %1925 = vmatprep.subr.mxu0 0.0
        %1926 = vmatpush1.xpose.msra.mxu0 0.0
        %1927 = vmatprep.subr.mxu0 0.0
        %1928 = vmatpush1.xpose.msra.mxu0 0.0
        %1929 = vmatprep.subr.mxu0 0.0
        %1930 = vmatpush1.xpose.msra.mxu0 0.0
        %1931 = vmatprep.subr.mxu0 0.0
        %1932 = vmatpush1.xpose.msra.mxu0 0.0
        %1933 = vmatprep.subr.mxu0 0.0
        %1934 = vmatpush1.xpose.msra.mxu0 0.0
        %1935 = vmatprep.subr.mxu0 0.0
        %1936 = vmatpush1.xpose.msra.mxu0 0.0
        %1937 = vmatprep.subr.mxu0 0.0
        %1938 = vmatpush1.xpose.msra.mxu0 0.0
        %1939 = vmatprep.subr.mxu0 0.0
        %1940 = vmatpush1.xpose.msra.mxu0 0.0
        %1941 = vmatprep.subr.mxu0 0.0
        %1942 = vmatpush1.xpose.msra.mxu0 0.0
        %1943 = vmatprep.subr.mxu0 0.0
        %1944 = vmatpush1.xpose.msra.mxu0 0.0
        %1945 = vmatprep.subr.mxu0 0.0
        %1946 = vmatpush1.xpose.msra.mxu0 0.0
        %1947 = vmatprep.subr.mxu0 0.0
        %1948 = vmatpush1.xpose.msra.mxu0 0.0
        %1949 = vmatprep.subr.mxu0 0.0
        %1950 = vmatpush1.xpose.msra.mxu0 0.0
        %1951 = vmatprep.subr.mxu0 0.0
        %1952 = vmatpush1.xpose.msra.mxu0 0.0
        %1953 = vmatprep.subr.mxu0 0.0
        %1954 = vmatpush1.xpose.msra.mxu0 0.0
        %1955 = vmatprep.subr.mxu0 0.0
        %1956 = vmatpush1.xpose.msra.mxu0 0.0
        %1957 = vmatprep.subr.mxu0 0.0
        %1958 = vmatpush1.xpose.msra.mxu0 0.0
        %1959 = vmatprep.subr.mxu0 0.0
        %1960 = vmatpush1.xpose.msra.mxu0 0.0
        %1961 = vmatprep.subr.mxu0 0.0
        %1962 = vmatpush1.xpose.msra.mxu0 0.0
        %1963 = vmatprep.subr.mxu0 0.0
        %1964 = vmatpush1.xpose.msra.mxu0 0.0
        %1965 = vmatprep.subr.mxu0 0.0
        %1966 = vmatpush1.xpose.msra.mxu0 0.0
        %1967 = vmatprep.subr.mxu0 0.0
        %1968 = vmatpush1.xpose.msra.mxu0 0.0
        %1969 = vmatprep.subr.mxu0 0.0
        %1970 = vmatpush1.xpose.msra.mxu0 0.0
        %1971 = vmatprep.subr.mxu0 0.0
        %1972 = vmatpush1.xpose.msra.mxu0 0.0
        %1973 = vmatprep.subr.mxu0 0.0
        %1974 = vmatpush1.xpose.msra.mxu0 0.0
        %1975 = vmatprep.subr.mxu0 0.0
        %1976 = vmatpush1.xpose.msra.mxu0 0.0
        %1977 = vmatprep.subr.mxu0 0.0
        %1978 = vmatpush1.xpose.msra.mxu0 0.0
        %1979 = vmatprep.subr.mxu0 0.0
        %1980 = vmatpush1.xpose.msra.mxu0 0.0
        %1981 = vmatprep.subr.mxu0 0.0
        %1982 = vmatpush1.xpose.msra.mxu0 0.0
        %1983 = vmatprep.subr.mxu0 0.0
        %1984 = vmatpush1.xpose.msra.mxu0 0.0
        %1985 = vmatprep.subr.mxu0 0.0
        %1986 = vmatpush1.xpose.msra.mxu0 0.0
        %1987 = vmatprep.mubr.f32.mxu0 0.0
        %1988 = vmatmul.mubr.f32.gmra.mrb[0].mxu0 %v1919
        %v1989 = vpop.f32.mrb[0].mxu0
        %v1990 = vadd.f32 0.0, %v1989
        %v1991 = vpop.f32.mrb[0].mxu0
        %1992 = vdwg.mxu0
        %v1993 = vsel %vm849, %v1912, -inf
        %1994 = vmax.xlane.f32.xlu0 %v1993
        %v1995 = vpop.xlane.xlu0 %1994
        %v1996 = vsel %vm849, %v1990, -inf
        %1997 = vmax.xlane.f32.xlu0 %v1996
        %v1998 = vpop.xlane.xlu0 %1997
        %v1999 = vsub.f32 %v1912, %v1995
        %v2000 = vsub.f32 %v1990, %v1998
        %v2001 = vmul.f32 %v1999, 1.442695
        %v2002 = vpow.pop %v2001
        %v2003 = vmul.f32 %v2000, 1.442695
        %v2004 = vpow.pop %v2003
        %v2005 = vsel %vm849, %v2002, 0.0
        %2006 = vadd.xlane.f32.xlu0 %v2005
        %v2007 = vpop.xlane.xlu0 %2006
        %v2008 = vsel %vm849, %v2004, 0.0
        %2009 = vadd.xlane.f32.xlu0 %v2008
        %v2010 = vpop.xlane.xlu0 %2009
        %v2011 = vrcp.pop %v2007
        %v2012 = vrcp.pop %v2010
        %v2013 = vmul.f32 %v2002, %v2011
        %v2014 = vmul.f32 %v2004, %v2012
        %2015 = vrot.lane.b32.xlu0 %v836, 40
        %v2016 = vpop.permute.xlu0 %2015
        %v2019 = vsel %vm849, %v2013, 0
        %2021 = vmatprep.subr.mxu0 0.0
        %2022 = vmatpush1.msra.mxu0 %v2016
        %2023 = vmatprep.subr.mxu0 0.0
        %2024 = vmatpush1.msra.mxu0 0.0
        %2025 = vmatprep.subr.mxu0 0.0
        %2026 = vmatpush1.msra.mxu0 0.0
        %2027 = vmatprep.subr.mxu0 0.0
        %2028 = vmatpush1.msra.mxu0 0.0
        %2029 = vmatprep.subr.mxu0 0.0
        %2030 = vmatpush1.msra.mxu0 0.0
        %2031 = vmatprep.subr.mxu0 0.0
        %2032 = vmatpush1.msra.mxu0 0.0
        %2033 = vmatprep.subr.mxu0 0.0
        %2034 = vmatpush1.msra.mxu0 0.0
        %2035 = vmatprep.subr.mxu0 0.0
        %2036 = vmatpush1.msra.mxu0 0.0
        %2037 = vmatprep.subr.mxu0 0.0
        %2038 = vmatpush1.msra.mxu0 0.0
        %2039 = vmatprep.subr.mxu0 0.0
        %2040 = vmatpush1.msra.mxu0 0.0
        %2041 = vmatprep.subr.mxu0 0.0
        %2042 = vmatpush1.msra.mxu0 0.0
        %2043 = vmatprep.subr.mxu0 0.0
        %2044 = vmatpush1.msra.mxu0 0.0
        %2045 = vmatprep.subr.mxu0 0.0
        %2046 = vmatpush1.msra.mxu0 0.0
        %2047 = vmatprep.subr.mxu0 0.0
        %2048 = vmatpush1.msra.mxu0 0.0
        %2049 = vmatprep.subr.mxu0 0.0
        %2050 = vmatpush1.msra.mxu0 0.0
        %2051 = vmatprep.subr.mxu0 0.0
        %2052 = vmatpush1.msra.mxu0 0.0
        %2053 = vmatprep.subr.mxu0 0.0
        %2054 = vmatpush1.msra.mxu0 0.0
        %2055 = vmatprep.subr.mxu0 0.0
        %2056 = vmatpush1.msra.mxu0 0.0
        %2057 = vmatprep.subr.mxu0 0.0
        %2058 = vmatpush1.msra.mxu0 0.0
        %2059 = vmatprep.subr.mxu0 0.0
        %2060 = vmatpush1.msra.mxu0 0.0
        %2061 = vmatprep.subr.mxu0 0.0
        %2062 = vmatpush1.msra.mxu0 0.0
        %2063 = vmatprep.subr.mxu0 0.0
        %2064 = vmatpush1.msra.mxu0 0.0
        %2065 = vmatprep.subr.mxu0 0.0
        %2066 = vmatpush1.msra.mxu0 0.0
        %2067 = vmatprep.subr.mxu0 0.0
        %2068 = vmatpush1.msra.mxu0 0.0
        %2069 = vmatprep.subr.mxu0 0.0
        %2070 = vmatpush1.msra.mxu0 0.0
        %2071 = vmatprep.subr.mxu0 0.0
        %2072 = vmatpush1.msra.mxu0 0.0
        %2073 = vmatprep.subr.mxu0 0.0
        %2074 = vmatpush1.msra.mxu0 0.0
        %2075 = vmatprep.subr.mxu0 0.0
        %2076 = vmatpush1.msra.mxu0 0.0
        %2077 = vmatprep.subr.mxu0 0.0
        %2078 = vmatpush1.msra.mxu0 0.0
        %2079 = vmatprep.subr.mxu0 0.0
        %2080 = vmatpush1.msra.mxu0 0.0
        %2081 = vmatprep.subr.mxu0 0.0
        %2082 = vmatpush1.msra.mxu0 0.0
        %2083 = vmatprep.subr.mxu0 0.0
        %2084 = vmatpush1.msra.mxu0 0.0
        %2085 = vmatprep.mubr.f32.mxu0 0.0
        %2086 = vmatmul.mubr.f32.gmra.mrb[0].mxu0 %v2019
        %v2087 = vpop.f32.mrb[0].mxu0
        %v2088 = vadd.f32 0.0, %v2087
        %v2089 = vpop.f32.mrb[0].mxu0
        %2090 = vdwg.mxu0
        %2091 = vrot.lane.b32.xlu0 %v841, 40
        %v2092 = vpop.permute.xlu0 %2091
        %v2095 = vsel %vm849, %v2014, 0
        %2097 = vmatprep.subr.mxu0 0.0
        %2098 = vmatpush1.msra.mxu0 %v2092
        %2099 = vmatprep.subr.mxu0 0.0
        %2100 = vmatpush1.msra.mxu0 0.0
        %2101 = vmatprep.subr.mxu0 0.0
        %2102 = vmatpush1.msra.mxu0 0.0
        %2103 = vmatprep.subr.mxu0 0.0
        %2104 = vmatpush1.msra.mxu0 0.0
        %2105 = vmatprep.subr.mxu0 0.0
        %2106 = vmatpush1.msra.mxu0 0.0
        %2107 = vmatprep.subr.mxu0 0.0
        %2108 = vmatpush1.msra.mxu0 0.0
        %2109 = vmatprep.subr.mxu0 0.0
        %2110 = vmatpush1.msra.mxu0 0.0
        %2111 = vmatprep.subr.mxu0 0.0
        %2112 = vmatpush1.msra.mxu0 0.0
        %2113 = vmatprep.subr.mxu0 0.0
        %2114 = vmatpush1.msra.mxu0 0.0
        %2115 = vmatprep.subr.mxu0 0.0
        %2116 = vmatpush1.msra.mxu0 0.0
        %2117 = vmatprep.subr.mxu0 0.0
        %2118 = vmatpush1.msra.mxu0 0.0
        %2119 = vmatprep.subr.mxu0 0.0
        %2120 = vmatpush1.msra.mxu0 0.0
        %2121 = vmatprep.subr.mxu0 0.0
        %2122 = vmatpush1.msra.mxu0 0.0
        %2123 = vmatprep.subr.mxu0 0.0
        %2124 = vmatpush1.msra.mxu0 0.0
        %2125 = vmatprep.subr.mxu0 0.0
        %2126 = vmatpush1.msra.mxu0 0.0
        %2127 = vmatprep.subr.mxu0 0.0
        %2128 = vmatpush1.msra.mxu0 0.0
        %2129 = vmatprep.subr.mxu0 0.0
        %2130 = vmatpush1.msra.mxu0 0.0
        %2131 = vmatprep.subr.mxu0 0.0
        %2132 = vmatpush1.msra.mxu0 0.0
        %2133 = vmatprep.subr.mxu0 0.0
        %2134 = vmatpush1.msra.mxu0 0.0
        %2135 = vmatprep.subr.mxu0 0.0
        %2136 = vmatpush1.msra.mxu0 0.0
        %2137 = vmatprep.subr.mxu0 0.0
        %2138 = vmatpush1.msra.mxu0 0.0
        %2139 = vmatprep.subr.mxu0 0.0
        %2140 = vmatpush1.msra.mxu0 0.0
        %2141 = vmatprep.subr.mxu0 0.0
        %2142 = vmatpush1.msra.mxu0 0.0
        %2143 = vmatprep.subr.mxu0 0.0
        %2144 = vmatpush1.msra.mxu0 0.0
        %2145 = vmatprep.subr.mxu0 0.0
        %2146 = vmatpush1.msra.mxu0 0.0
        %2147 = vmatprep.subr.mxu0 0.0
        %2148 = vmatpush1.msra.mxu0 0.0
        %2149 = vmatprep.subr.mxu0 0.0
        %2150 = vmatpush1.msra.mxu0 0.0
        %2151 = vmatprep.subr.mxu0 0.0
        %2152 = vmatpush1.msra.mxu0 0.0
        %2153 = vmatprep.subr.mxu0 0.0
        %2154 = vmatpush1.msra.mxu0 0.0
        %2155 = vmatprep.subr.mxu0 0.0
        %2156 = vmatpush1.msra.mxu0 0.0
        %2157 = vmatprep.subr.mxu0 0.0
        %2158 = vmatpush1.msra.mxu0 0.0
        %2159 = vmatprep.subr.mxu0 0.0
        %2160 = vmatpush1.msra.mxu0 0.0
        %2161 = vmatprep.mubr.f32.mxu0 0.0
        %2162 = vmatmul.mubr.f32.gmra.mrb[0].mxu0 %v2095
        %v2163 = vpop.f32.mrb[0].mxu0
        %v2164 = vadd.f32 0.0, %v2163
        %v2165 = vpop.f32.mrb[0].mxu0
        %2166 = vdwg.mxu0
        %2169 = vrot.lane.b32.xlu0 %v1428, 8
        %v2170 = vpop.permute.xlu0 %2169
        %2171 = vrot.lane.b32.xlu0 %v1504, 8
        %v2172 = vpop.permute.xlu0 %2171
        %2177 = vrot.lane.b32.xlu0 %v1758, 16
        %v2178 = vpop.permute.xlu0 %2177
        %2179 = vrot.lane.b32.xlu0 %v1834, 16
        %v2180 = vpop.permute.xlu0 %2179
        %2185 = vrot.lane.b32.xlu0 %v2088, 24
        %v2186 = vpop.permute.xlu0 %2185
        %2187 = vrot.lane.b32.xlu0 %v2164, 24
        %v2188 = vpop.permute.xlu0 %2187
        %v2191 = vsel %vm849, %v1098, %v2170
        %v2192 = vsel %vm849, %v1174, %v2172
        %vm2193 = vcmask 130048
        %v2194 = vsel %vm2193, %v2191, %v2178
        %v2195 = vsel %vm2193, %v2192, %v2180
        %vm2196 = vcmask 195584
        %v2197 = vsel %vm2196, %v2194, %v2186
        %v2198 = vsel %vm2196, %v2195, %v2188
        %v2199 = vld [vmem:[%s668] sm:$0xff]
        %v2200 = vld [vmem:[%s668 + $0x8] sm:$0xff]
        %v2201 = vld [vmem:[%s668 + $0x10] sm:$0xff]
        %v2202 = vld [vmem:[%s668 + $0x18] sm:$0xff]
        %v2203 = vld [vmem:[%s671] sm:$0x1]
        %v2205 = vlaneseq
        %v2206 = vshrl.u32 %v2205, 7
        %v2207 = vsub.s32 0, %v2206
        %v2208 = vrot.slane %v2203, %v2207
        %v2211 = vsel %vm708, %v2197, 0
        %v2214 = vsel %vm708, %v2198, 0
        %2216 = vmatprep.subr.mxu0 0.0
        %2217 = vmatpush1.msra.mxu0 %v2199
        %2218 = vmatprep.subr.mxu0 0.0
        %2219 = vmatpush1.msra.mxu0 %v2200
        %2220 = vmatprep.subr.mxu0 0.0
        %2221 = vmatpush1.msra.mxu0 %v2201
        %2222 = vmatprep.subr.mxu0 0.0
        %2223 = vmatpush1.msra.mxu0 %v2202
        %2224 = vmatprep.subr.mxu0 0.0
        %2225 = vmatpush1.msra.mxu0 0.0
        %2226 = vmatprep.subr.mxu0 0.0
        %2227 = vmatpush1.msra.mxu0 0.0
        %2228 = vmatprep.subr.mxu0 0.0
        %2229 = vmatpush1.msra.mxu0 0.0
        %2230 = vmatprep.subr.mxu0 0.0
        %2231 = vmatpush1.msra.mxu0 0.0
        %2232 = vmatprep.subr.mxu0 0.0
        %2233 = vmatpush1.msra.mxu0 0.0
        %2234 = vmatprep.subr.mxu0 0.0
        %2235 = vmatpush1.msra.mxu0 0.0
        %2236 = vmatprep.subr.mxu0 0.0
        %2237 = vmatpush1.msra.mxu0 0.0
        %2238 = vmatprep.subr.mxu0 0.0
        %2239 = vmatpush1.msra.mxu0 0.0
        %2240 = vmatprep.subr.mxu0 0.0
        %2241 = vmatpush1.msra.mxu0 0.0
        %2242 = vmatprep.subr.mxu0 0.0
        %2243 = vmatpush1.msra.mxu0 0.0
        %2244 = vmatprep.subr.mxu0 0.0
        %2245 = vmatpush1.msra.mxu0 0.0
        %2246 = vmatprep.subr.mxu0 0.0
        %2247 = vmatpush1.msra.mxu0 0.0
        %2248 = vmatprep.subr.mxu0 0.0
        %2249 = vmatpush1.msra.mxu0 0.0
        %2250 = vmatprep.subr.mxu0 0.0
        %2251 = vmatpush1.msra.mxu0 0.0
        %2252 = vmatprep.subr.mxu0 0.0
        %2253 = vmatpush1.msra.mxu0 0.0
        %2254 = vmatprep.subr.mxu0 0.0
        %2255 = vmatpush1.msra.mxu0 0.0
        %2256 = vmatprep.subr.mxu0 0.0
        %2257 = vmatpush1.msra.mxu0 0.0
        %2258 = vmatprep.subr.mxu0 0.0
        %2259 = vmatpush1.msra.mxu0 0.0
        %2260 = vmatprep.subr.mxu0 0.0
        %2261 = vmatpush1.msra.mxu0 0.0
        %2262 = vmatprep.subr.mxu0 0.0
        %2263 = vmatpush1.msra.mxu0 0.0
        %2264 = vmatprep.subr.mxu0 0.0
        %2265 = vmatpush1.msra.mxu0 0.0
        %2266 = vmatprep.subr.mxu0 0.0
        %2267 = vmatpush1.msra.mxu0 0.0
        %2268 = vmatprep.subr.mxu0 0.0
        %2269 = vmatpush1.msra.mxu0 0.0
        %2270 = vmatprep.subr.mxu0 0.0
        %2271 = vmatpush1.msra.mxu0 0.0
        %2272 = vmatprep.subr.mxu0 0.0
        %2273 = vmatpush1.msra.mxu0 0.0
        %2274 = vmatprep.subr.mxu0 0.0
        %2275 = vmatpush1.msra.mxu0 0.0
        %2276 = vmatprep.subr.mxu0 0.0
        %2277 = vmatpush1.msra.mxu0 0.0
        %2278 = vmatprep.subr.mxu0 0.0
        %2279 = vmatpush1.msra.mxu0 0.0
        %2280 = vmatprep.mubr.f32.mxu0 0.0
        %2281 = vmatmul.mubr.f32.gmra.mrb[0].mxu0 %v2211
        %v2282 = vpop.f32.mrb[0].mxu0
        %v2283 = vadd.f32 %v2208, %v2282
        %v2284 = vpop.f32.mrb[0].mxu0
        %2285 = vmatprep.mubr.f32.mxu0 0.0
        %2286 = vmatmul.mubr.f32.gmra.mrb[0].mxu0 %v2214
        %v2287 = vpop.f32.mrb[0].mxu0
        %v2288 = vadd.f32 %v2208, %v2287
        %v2289 = vpop.f32.mrb[0].mxu0
        %2290 = vdwg.mxu0
        %v2291 = vadd.f32 %v704, %v2283
        %v2292 = vadd.f32 %v705, %v2288
        %v2293 = vld [vmem:[%s674] sm:$0x1]
        %v2294 = vld [vmem:[%s677] sm:$0x1]
        %v2295 = vsel %vm708, %v2291, 0.0
        %2296 = vadd.xlane.f32.xlu0 %v2295
        %v2297 = vpop.xlane.xlu0 %2296
        %v2298 = vsel %vm708, %v2292, 0.0
        %2299 = vadd.xlane.f32.xlu0 %v2298
        %v2300 = vpop.xlane.xlu0 %2299
        %v2301 = vmul.f32 %v2297, %v715
        %v2302 = vmul.f32 %v2300, %v715
        %v2303 = vsub.f32 %v2291, %v2301
        %v2304 = vsub.f32 %v2292, %v2302
        %v2305 = vmul.f32 %v2303, %v2303
        %v2306 = vmul.f32 %v2304, %v2304
        %v2307 = vsel %vm708, %v2305, 0.0
        %2308 = vadd.xlane.f32.xlu0 %v2307
        %v2309 = vpop.xlane.xlu0 %2308
        %v2310 = vsel %vm708, %v2306, 0.0
        %2311 = vadd.xlane.f32.xlu0 %v2310
        %v2312 = vpop.xlane.xlu0 %2311
        %v2313 = vmul.f32 %v2309, %v715
        %v2314 = vmul.f32 %v2312, %v715
        %v2315 = vadd.f32 %v2313, 1e-05
        %v2316 = vadd.f32 %v2314, 1e-05
        %v2317 = vrsqrt.pop %v2315
        %v2318 = vrsqrt.pop %v2316
        %v2319 = vmul.f32 %v2303, %v2317
        %v2320 = vmul.f32 %v2304, %v2318
        %v2322 = vlaneseq
        %v2323 = vshrl.u32 %v2322, 7
        %v2324 = vsub.s32 0, %v2323
        %v2325 = vrot.slane %v2293, %v2324
        %v2327 = vmul.f32 %v2319, %v2325
        %v2328 = vmul.f32 %v2320, %v2325
        %v2330 = vlaneseq
        %v2331 = vshrl.u32 %v2330, 7
        %v2332 = vsub.s32 0, %v2331
        %v2333 = vrot.slane %v2294, %v2332
        %v2335 = vadd.f32 %v2327, %v2333
        %v2336 = vadd.f32 %v2328, %v2333
        %v2337 = vld [vmem:[%s682] sm:$0xff]
        %v2338 = vld [vmem:[%s682 + $0x8] sm:$0xff]
        %v2339 = vld [vmem:[%s682 + $0x10] sm:$0xff]
        %v2340 = vld [vmem:[%s682 + $0x18] sm:$0xff]
        %v2341 = vld [vmem:[%s685] sm:$0x1]
        %v2343 = vlaneseq
        %v2344 = vshrl.u32 %v2343, 7
        %v2345 = vsub.s32 0, %v2344
        %v2346 = vrot.slane %v2341, %v2345
        %v2349 = vsel %vm708, %v2335, 0
        %v2352 = vsel %vm708, %v2336, 0
        %2354 = vmatprep.subr.mxu0 0.0
        %2355 = vmatpush1.msra.mxu0 %v2337
        %2356 = vmatprep.subr.mxu0 0.0
        %2357 = vmatpush1.msra.mxu0 %v2338
        %2358 = vmatprep.subr.mxu0 0.0
        %2359 = vmatpush1.msra.mxu0 %v2339
        %2360 = vmatprep.subr.mxu0 0.0
        %2361 = vmatpush1.msra.mxu0 %v2340
        %2362 = vmatprep.subr.mxu0 0.0
        %2363 = vmatpush1.msra.mxu0 0.0
        %2364 = vmatprep.subr.mxu0 0.0
        %2365 = vmatpush1.msra.mxu0 0.0
        %2366 = vmatprep.subr.mxu0 0.0
        %2367 = vmatpush1.msra.mxu0 0.0
        %2368 = vmatprep.subr.mxu0 0.0
        %2369 = vmatpush1.msra.mxu0 0.0
        %2370 = vmatprep.subr.mxu0 0.0
        %2371 = vmatpush1.msra.mxu0 0.0
        %2372 = vmatprep.subr.mxu0 0.0
        %2373 = vmatpush1.msra.mxu0 0.0
        %2374 = vmatprep.subr.mxu0 0.0
        %2375 = vmatpush1.msra.mxu0 0.0
        %2376 = vmatprep.subr.mxu0 0.0
        %2377 = vmatpush1.msra.mxu0 0.0
        %2378 = vmatprep.subr.mxu0 0.0
        %2379 = vmatpush1.msra.mxu0 0.0
        %2380 = vmatprep.subr.mxu0 0.0
        %2381 = vmatpush1.msra.mxu0 0.0
        %2382 = vmatprep.subr.mxu0 0.0
        %2383 = vmatpush1.msra.mxu0 0.0
        %2384 = vmatprep.subr.mxu0 0.0
        %2385 = vmatpush1.msra.mxu0 0.0
        %2386 = vmatprep.subr.mxu0 0.0
        %2387 = vmatpush1.msra.mxu0 0.0
        %2388 = vmatprep.subr.mxu0 0.0
        %2389 = vmatpush1.msra.mxu0 0.0
        %2390 = vmatprep.subr.mxu0 0.0
        %2391 = vmatpush1.msra.mxu0 0.0
        %2392 = vmatprep.subr.mxu0 0.0
        %2393 = vmatpush1.msra.mxu0 0.0
        %2394 = vmatprep.subr.mxu0 0.0
        %2395 = vmatpush1.msra.mxu0 0.0
        %2396 = vmatprep.subr.mxu0 0.0
        %2397 = vmatpush1.msra.mxu0 0.0
        %2398 = vmatprep.subr.mxu0 0.0
        %2399 = vmatpush1.msra.mxu0 0.0
        %2400 = vmatprep.subr.mxu0 0.0
        %2401 = vmatpush1.msra.mxu0 0.0
        %2402 = vmatprep.subr.mxu0 0.0
        %2403 = vmatpush1.msra.mxu0 0.0
        %2404 = vmatprep.subr.mxu0 0.0
        %2405 = vmatpush1.msra.mxu0 0.0
        %2406 = vmatprep.subr.mxu0 0.0
        %2407 = vmatpush1.msra.mxu0 0.0
        %2408 = vmatprep.subr.mxu0 0.0
        %2409 = vmatpush1.msra.mxu0 0.0
        %2410 = vmatprep.subr.mxu0 0.0
        %2411 = vmatpush1.msra.mxu0 0.0
        %2412 = vmatprep.subr.mxu0 0.0
        %2413 = vmatpush1.msra.mxu0 0.0
        %2414 = vmatprep.subr.mxu0 0.0
        %2415 = vmatpush1.msra.mxu0 0.0
        %2416 = vmatprep.subr.mxu0 0.0
        %2417 = vmatpush1.msra.mxu0 0.0
        %2418 = vmatprep.mubr.f32.mxu0 0.0
        %2419 = vmatmul.mubr.f32.gmra.mrb[0].mxu0 %v2349
        %v2420 = vpop.f32.mrb[0].mxu0
        %v2421 = vadd.f32 %v2346, %v2420
        %v2422 = vpop.f32.mrb[0].mxu0
        %2423 = vmatprep.mubr.f32.mxu0 0.0
        %2424 = vmatmul.mubr.f32.gmra.mrb[0].mxu0 %v2352
        %v2425 = vpop.f32.mrb[0].mxu0
        %v2426 = vadd.f32 %v2346, %v2425
        %v2427 = vpop.f32.mrb[0].mxu0
        %2428 = vdwg.mxu0
        %v2429 = vmax.f32 %v2421, 0.0
        %v2430 = vmax.f32 %v2426, 0.0
        %v2431 = vld [vmem:[%s690] sm:$0xff]
        %v2432 = vld [vmem:[%s690 + $0x8] sm:$0xff]
        %v2433 = vld [vmem:[%s690 + $0x10] sm:$0xff]
        %v2434 = vld [vmem:[%s690 + $0x18] sm:$0xff]
        %v2435 = vld [vmem:[%s690 + $0x20] sm:$0xff]
        %v2436 = vld [vmem:[%s690 + $0x28] sm:$0xff]
        %v2437 = vld [vmem:[%s690 + $0x30] sm:$0xff]
        %v2438 = vld [vmem:[%s690 + $0x38] sm:$0xff]
        %v2439 = vld [vmem:[%s693] sm:$0x1]
        %v2441 = vlaneseq
        %v2442 = vshrl.u32 %v2441, 7
        %v2443 = vsub.s32 0, %v2442
        %v2444 = vrot.slane %v2439, %v2443
        %vm2446 = vcmask 523264
        %v2448 = vsel %vm2446, %v2429, 0
        %v2451 = vsel %vm2446, %v2430, 0
        %2453 = vmatprep.subr.mxu0 0.0
        %2454 = vmatpush1.msra.mxu0 %v2431
        %2455 = vmatprep.subr.mxu0 0.0
        %2456 = vmatpush1.msra.mxu0 %v2432
        %2457 = vmatprep.subr.mxu0 0.0
        %2458 = vmatpush1.msra.mxu0 %v2433
        %2459 = vmatprep.subr.mxu0 0.0
        %2460 = vmatpush1.msra.mxu0 %v2434
        %2461 = vmatprep.subr.mxu0 0.0
        %2462 = vmatpush1.msra.mxu0 %v2435
        %2463 = vmatprep.subr.mxu0 0.0
        %2464 = vmatpush1.msra.mxu0 %v2436
        %2465 = vmatprep.subr.mxu0 0.0
        %2466 = vmatpush1.msra.mxu0 %v2437
        %2467 = vmatprep.subr.mxu0 0.0
        %2468 = vmatpush1.msra.mxu0 %v2438
        %2469 = vmatprep.subr.mxu0 0.0
        %2470 = vmatpush1.msra.mxu0 0.0
        %2471 = vmatprep.subr.mxu0 0.0
        %2472 = vmatpush1.msra.mxu0 0.0
        %2473 = vmatprep.subr.mxu0 0.0
        %2474 = vmatpush1.msra.mxu0 0.0
        %2475 = vmatprep.subr.mxu0 0.0
        %2476 = vmatpush1.msra.mxu0 0.0
        %2477 = vmatprep.subr.mxu0 0.0
        %2478 = vmatpush1.msra.mxu0 0.0
        %2479 = vmatprep.subr.mxu0 0.0
        %2480 = vmatpush1.msra.mxu0 0.0
        %2481 = vmatprep.subr.mxu0 0.0
        %2482 = vmatpush1.msra.mxu0 0.0
        %2483 = vmatprep.subr.mxu0 0.0
        %2484 = vmatpush1.msra.mxu0 0.0
        %2485 = vmatprep.subr.mxu0 0.0
        %2486 = vmatpush1.msra.mxu0 0.0
        %2487 = vmatprep.subr.mxu0 0.0
        %2488 = vmatpush1.msra.mxu0 0.0
        %2489 = vmatprep.subr.mxu0 0.0
        %2490 = vmatpush1.msra.mxu0 0.0
        %2491 = vmatprep.subr.mxu0 0.0
        %2492 = vmatpush1.msra.mxu0 0.0
        %2493 = vmatprep.subr.mxu0 0.0
        %2494 = vmatpush1.msra.mxu0 0.0
        %2495 = vmatprep.subr.mxu0 0.0
        %2496 = vmatpush1.msra.mxu0 0.0
        %2497 = vmatprep.subr.mxu0 0.0
        %2498 = vmatpush1.msra.mxu0 0.0
        %2499 = vmatprep.subr.mxu0 0.0
        %2500 = vmatpush1.msra.mxu0 0.0
        %2501 = vmatprep.subr.mxu0 0.0
        %2502 = vmatpush1.msra.mxu0 0.0
        %2503 = vmatprep.subr.mxu0 0.0
        %2504 = vmatpush1.msra.mxu0 0.0
        %2505 = vmatprep.subr.mxu0 0.0
        %2506 = vmatpush1.msra.mxu0 0.0
        %2507 = vmatprep.subr.mxu0 0.0
        %2508 = vmatpush1.msra.mxu0 0.0
        %2509 = vmatprep.subr.mxu0 0.0
        %2510 = vmatpush1.msra.mxu0 0.0
        %2511 = vmatprep.subr.mxu0 0.0
        %2512 = vmatpush1.msra.mxu0 0.0
        %2513 = vmatprep.subr.mxu0 0.0
        %2514 = vmatpush1.msra.mxu0 0.0
        %2515 = vmatprep.subr.mxu0 0.0
        %2516 = vmatpush1.msra.mxu0 0.0
        %2517 = vmatprep.mubr.f32.mxu0 0.0
        %2518 = vmatmul.mubr.f32.gmra.mrb[0].mxu0 %v2448
        %v2519 = vpop.f32.mrb[0].mxu0
        %v2520 = vadd.f32 %v2444, %v2519
        %v2521 = vpop.f32.mrb[0].mxu0
        %2522 = vmatprep.mubr.f32.mxu0 0.0
        %2523 = vmatmul.mubr.f32.gmra.mrb[0].mxu0 %v2451
        %v2524 = vpop.f32.mrb[0].mxu0
        %v2525 = vadd.f32 %v2444, %v2524
        %v2526 = vpop.f32.mrb[0].mxu0
        %2527 = vdwg.mxu0
        %v2528 = vadd.f32 %v2291, %v2520
        %v2529 = vadd.f32 %v2292, %v2525
        %p2530 = scmp.lt.s32.totalorder %s33, 1
        // Predicated region
        $region89: #{tpu_custom_call.1} parent=79 // pred_check
          %p2531 = pneg %p2530
        $region90: #{tpu_custom_call.1} parent=79 // pred_check_branch
          %2533 = sbr.rel (%p2531) target = $region92
        $region91: #{tpu_custom_call.1} parent=79 // pred_region
          %2534 = vst.msk [vmem:[#allocation5] sm:$0xff] %vm708, %v2528
          %2535 = vst.msk [vmem:[#allocation5 + $0x8] sm:$0xff] %vm708, %v2529
        $region92: #{tpu_custom_call.1} parent=79 // pred_fallthru
          _
        %p2536 = scmp.eq.s32.totalorder %s33, 1
        // Predicated region
        $region93: #{tpu_custom_call.1} parent=79 // pred_check
          %p2537 = pneg %p2536
        $region94: #{tpu_custom_call.1} parent=79 // pred_check_branch
          %2539 = sbr.rel (%p2537) target = $region96
        $region95: #{tpu_custom_call.1} parent=79 // pred_region
          %v2540 = vld [vmem:[%s13] sm:$0x1]
          %v2541 = vld [vmem:[%s14] sm:$0x1]
          %v2542 = vsel %vm708, %v2528, 0.0
          %2543 = vadd.xlane.f32.xlu0 %v2542
          %v2544 = vpop.xlane.xlu0 %2543
          %v2545 = vsel %vm708, %v2529, 0.0
          %2546 = vadd.xlane.f32.xlu0 %v2545
          %v2547 = vpop.xlane.xlu0 %2546
          %v2548 = vmul.f32 %v2544, %v715
          %v2549 = vmul.f32 %v2547, %v715
          %v2550 = vsub.f32 %v2528, %v2548
          %v2551 = vsub.f32 %v2529, %v2549
          %v2552 = vmul.f32 %v2550, %v2550
          %v2553 = vmul.f32 %v2551, %v2551
          %v2554 = vsel %vm708, %v2552, 0.0
          %2555 = vadd.xlane.f32.xlu0 %v2554
          %v2556 = vpop.xlane.xlu0 %2555
          %v2557 = vsel %vm708, %v2553, 0.0
          %2558 = vadd.xlane.f32.xlu0 %v2557
          %v2559 = vpop.xlane.xlu0 %2558
          %v2560 = vmul.f32 %v2556, %v715
          %v2561 = vmul.f32 %v2559, %v715
          %v2562 = vadd.f32 %v2560, 1e-05
          %v2563 = vadd.f32 %v2561, 1e-05
          %v2564 = vrsqrt.pop %v2562
          %v2565 = vrsqrt.pop %v2563
          %v2566 = vmul.f32 %v2550, %v2564
          %v2567 = vmul.f32 %v2551, %v2565
          %v2569 = vlaneseq
          %v2570 = vshrl.u32 %v2569, 7
          %v2571 = vsub.s32 0, %v2570
          %v2572 = vrot.slane %v2540, %v2571
          %v2574 = vmul.f32 %v2566, %v2572
          %v2575 = vmul.f32 %v2567, %v2572
          %v2577 = vlaneseq
          %v2578 = vshrl.u32 %v2577, 7
          %v2579 = vsub.s32 0, %v2578
          %v2580 = vrot.slane %v2541, %v2579
          %v2582 = vadd.f32 %v2574, %v2580
          %v2583 = vadd.f32 %v2575, %v2580
          %2584 = vst.msk [vmem:[#allocation5] sm:$0xff] %vm708, %v2582
          %2585 = vst.msk [vmem:[#allocation5 + $0x8] sm:$0xff] %vm708, %v2583
        $region96: #{tpu_custom_call.1} parent=79 // pred_fallthru
          _
        // Predicated region
        $region97: #{tpu_custom_call.1} parent=79 // pred_check
          %p2586 = pneg %p438
        $region98: #{tpu_custom_call.1} parent=79 // pred_check_branch
          %2588 = sbr.rel (%p2586) target = $region100
        $region99: #{tpu_custom_call.1} parent=79 // pred_region
          %s2589 = smul.u32 2, %s32
          %s2591 = ssub.s32 256, 256
          %2592 = vsyncadd [#allocation4], %s2591
          %s2593 = smul.addr %s2589, 128
          %s2594 = scalar_lea.hbm %s15, %s2593
          %s2595 = sshll.u32 [#allocation5], 4
          %s2596 = int_to_ptr.vmem [resolvable:$true] %s2595
          %2601 = dma.vmem_to_hbm [thread:$0]  %s2596, 256, %s2594, [#allocation4], 128, 128, 8
        $region100: #{tpu_custom_call.1} parent=79 // pred_fallthru
          _
        // Predicated region
        $region101: #{tpu_custom_call.1} parent=79 // pred_check
          %p2602 = pneg %p438
        $region102: #{tpu_custom_call.1} parent=79 // pred_check_branch
          %2604 = sbr.rel (%p2602) target = $region104
        $region103: #{tpu_custom_call.1} parent=79 // pred_region
          %2605 = dma.done [#allocation4], 256
        $region104: #{tpu_custom_call.1} parent=79 // pred_fallthru
          _
      $region80: #{tpu_custom_call.1} parent=5 // pred_fallthru
        _
      %p2606 = scmp.le.s32.totalorder 2, %s23
      // Predicated region
      $region105: #{tpu_custom_call.1} parent=5 // pred_check
        %p2607 = pneg %p2606
      $region106: #{tpu_custom_call.1} parent=5 // pred_check_branch
        %2609 = sbr.rel (%p2607) target = $region108
      $region107: #{tpu_custom_call.1} parent=5 // pred_region
        %s2610 = ssub.s32 %s23, 2
      $region108: #{tpu_custom_call.1} parent=5 // pred_fallthru
        _
    $region6: #{tpu_custom_call.1} parent=1 // loop_footer
      %s27 = sadd.s32 1, %s23
    $region7: #{tpu_custom_call.1} parent=1 // loop_footer_branch
      %22 = sbr.rel target = $region3
    $region8: #{tpu_custom_call.1} parent=1 // loop_exit
      _
    %2611 = vsyncpa [#allocation3], 1
    %s2612 = scalar_lea.sflag [#allocation3], 1
    %2613 = vsyncpa %s2612, 1
    %2614 = vsyncpa [#allocation4], 1
    %s2615 = scalar_lea.sflag [#allocation4], 1
    %2616 = vsyncpa %s2615, 1

</llo_original>
